<compile_context>
chip_gen: v7x
topology: tpu7x:2x2x1
jax: 0.10.0
libtpu: 0.0.40
codegen_flags: <defaults>
</compile_context>

<pallas_src>
import functools
import math

import jax
import jax.numpy as jnp
from jax.experimental import pallas as pl
from jax.experimental.pallas import tpu as pltpu


def mha_kernel(q_ref, k_ref, v_ref, mask_ref,
               wq_ref, wk_ref, wv_ref, wo_ref,
               out_ref, *rest, h, d_k, with_scores):
    if with_scores:
        scores_ref = rest[0]
        kt_scr, v_scr, ctx_scr = rest[1:]
    else:
        scores_ref = None
        kt_scr, v_scr, ctx_scr = rest

    cdt = q_ref.dtype
    neg_big = jnp.float32(-1e9)

    # ---- K / V projection, once per batch ----------------------------------
    # Grid axis 1 (query tiles) MUST stay "arbitrary" (sequential): the
    # head-major scratch persists across all query tiles of the current batch.
    @pl.when(pl.program_id(1) == 0)
    def _():
        k_raw = k_ref[0]                                   # (S, D)
        v_raw = v_ref[0]                                   # (S, D)
        for hh in range(h):                                # once per batch
            k_h = jnp.dot(k_raw, wk_ref[hh],
                          preferred_element_type=jnp.float32)          # (S, d_k)
            # One transpose per head per *batch* (amortized over query tiles):
            # the inner loop then sees K_h^T via a leading-dim index only.
            kt_scr[hh] = k_h.astype(cdt).T                              # (d_k, S)
            v_scr[hh] = jnp.dot(v_raw, wv_ref[hh],
                                preferred_element_type=jnp.float32
                                ).astype(cdt)                           # (S, d_k)

    q_tile = q_ref[0]                                      # (tq, D)

    # ---- per-query-tile attention, static head loop -------------------------
    for hh in range(h):
        # Per-head Q projection; 1/sqrt(d_k) is pre-folded into wq on the host.
        q_h = jnp.dot(q_tile, wq_ref[hh],
                      preferred_element_type=jnp.float32).astype(cdt)   # (tq, d_k)
        # Plain (tq, d_k) @ (d_k, S) against pre-transposed head-major K.
        s = jnp.dot(q_h, kt_scr[hh], preferred_element_type=jnp.float32)  # (tq, S)
        # masked_fill(mask == 0, -1e9); mask tile read straight from VMEM.
        s = jnp.where(mask_ref[0, 0] == 0, neg_big, s)
        # Numerically stable softmax over the key axis.
        m = jnp.max(s, axis=-1, keepdims=True)
        e = jnp.exp(s - m)
        denom = jnp.sum(e, axis=-1, keepdims=True)
        # Exact reciprocal when scores are exposed to the caller (rows sum to 1),
        # fast EUP approximation otherwise.
        attn = e * pl.reciprocal(denom, approx=not with_scores)
        if with_scores:
            scores_ref[0, hh] = attn.astype(scores_ref.dtype)
        # Head context written at its column offset into the ctx scratch
        # (cheap masked stores, no loop-carried accumulator).
        ctx = jnp.dot(attn.astype(cdt), v_scr[hh],
                      preferred_element_type=jnp.float32)               # (tq, d_k)
        ctx_scr[:, hh * d_k:(hh + 1) * d_k] = ctx.astype(cdt)

    # Single full-contraction output projection (tq, D) @ (D, D).
    out_ref[0] = jnp.dot(ctx_scr[...], wo_ref[...],
                         preferred_element_type=jnp.float32).astype(out_ref.dtype)


def mha_forward(q, k, v, mask, wq, wk, wv, wo, *, h, tq=None,
                compute_dtype=None, return_scores=False, scores_dtype=None):
    """Forward pass of MultiHeadAttentionBlock.

    Returns (output, attention_scores); attention_scores is None unless
    return_scores=True (the PyTorch module only keeps it for inspection).
    """
    B, S, D = q.shape
    assert D % h == 0, "d_model is not divisible by h"
    d_k = D // h

    if compute_dtype is not None:       # e.g. jnp.bfloat16 for MXU peak
        q, k, v = (x.astype(compute_dtype) for x in (q, k, v))
        wq, wk, wv, wo = (w.astype(compute_dtype) for w in (wq, wk, wv, wo))
    cdt = q.dtype
    if scores_dtype is None:
        scores_dtype = cdt              # bf16 scores halve the write stream

    if tq is None:
        # 128 fits the v7x 64 MiB budget; 256 is worth trying on v5e/v6e
        # (128 MiB VMEM) once the scores output is disabled.
        tq = min(S, 128)
    sublane = 16 if jnp.dtype(cdt).itemsize == 2 else 8
    assert S % tq == 0, "seq_len must be divisible by the query tile"
    assert tq % sublane == 0 or tq == S, (
        f"query tile must be a multiple of {sublane} for {jnp.dtype(cdt).name} "
        f"(or equal the full sequence)")
    n_qt = S // tq

    # ---- host-side weight preparation ---------------------------------------
    # PyTorch nn.Linear weight layout is (out, in).  The kernel consumes
    # head-major (h, D_in, d_k) slabs so head selection is a leading-dim index
    # (no lane slicing in the inner loop), plus wo^T (in, out) for the single
    # (tq, D) @ (D, D) output projection.
    def head_major(w):
        return jnp.transpose(w.T.reshape(D, h, d_k), (1, 0, 2))

    scale = 1.0 / math.sqrt(d_k)
    wq_hm = (head_major(wq).astype(jnp.float32) * scale).astype(cdt)
    wk_hm = head_major(wk)
    wv_hm = head_major(wv)
    wo_t = wo.T

    # Mask semantics: 0 => masked.  Ship as int8 (4x smaller DMA stream than
    # f32); broadcast so (B,1,1,S)-style padding masks also work.
    mask_i8 = jnp.broadcast_to(mask != 0, (B, 1, S, S)).astype(jnp.int8)
    mask_f32 = mask_i8.astype(jnp.float32)     # conservative fallback path

    kernel = functools.partial(mha_kernel, h=h, d_k=d_k,
                               with_scores=return_scores)

    itemsize = jnp.dtype(cdt).itemsize
    s_itemsize = jnp.dtype(scores_dtype).itemsize

    # Pessimistic per-core VMEM footprint (everything double-buffered, v_scr
    # lane-padded to 128) used to set an explicit scoped-VMEM limit.
    vmem_est = (
        2 * tq * D * itemsize                           # q blocks
        + 2 * 2 * S * D * itemsize                      # k, v blocks
        + 2 * tq * S * 4                                # mask blocks
        + 2 * (3 * h * D * d_k + D * D) * itemsize      # weights
        + 2 * tq * D * itemsize                         # out blocks
        + (2 * h * tq * S * s_itemsize if return_scores else 0)
        + (h * d_k * S + h * S * max(d_k, 128) + tq * D) * itemsize)  # scratch
    try:
        vmem_cap = int(pltpu.get_tpu_info().vmem_capacity_bytes)
    except Exception:
        vmem_cap = 64 * 1024 * 1024     # v7x-safe default
    vmem_limit = int(min(max(vmem_est * 3 // 2 + (2 << 20), 32 << 20),
                         max(vmem_cap - (4 << 20), 32 << 20)))

    flops = 2 * B * (4 * S * D * D + 2 * S * S * D)
    transcendentals = B * h * S * S
    bytes_accessed = ((4 * B * S * D + 4 * D * D) * itemsize + B * S * S
                      + (B * h * S * S * s_itemsize if return_scores else 0))
    cost = pl.CostEstimate(flops=int(flops),
                           transcendentals=int(transcendentals),
                           bytes_accessed=int(bytes_accessed))

    def build_and_run(conservative):
        if conservative:
            def spec(shape, imap, single=False):
                return pl.BlockSpec(shape, imap)
            mask_in = mask_f32
        else:
            def spec(shape, imap, single=False):
                if single:
                    # Constant / once-per-batch inputs: single-buffered to
                    # halve their VMEM footprint (no perf cost).
                    return pl.BlockSpec(shape, imap,
                                        pipeline_mode=pl.Buffered(buffer_count=1))
                return pl.BlockSpec(shape, imap)
            mask_in = mask_i8

        in_specs = [
            spec((1, tq, D), lambda b, qi: (b, qi, 0)),               # q (query tiled)
            spec((1, S, D), lambda b, qi: (b, 0, 0), single=True),    # k (per batch)
            spec((1, S, D), lambda b, qi: (b, 0, 0), single=True),    # v (per batch)
            spec((1, 1, tq, S), lambda b, qi: (b, 0, qi, 0)),         # mask
            spec((h, D, d_k), lambda b, qi: (0, 0, 0), single=True),  # w_q (head-major, scaled)
            spec((h, D, d_k), lambda b, qi: (0, 0, 0), single=True),  # w_k (head-major)
            spec((h, D, d_k), lambda b, qi: (0, 0, 0), single=True),  # w_v (head-major)
            spec((D, D), lambda b, qi: (0, 0), single=True),          # w_o^T
        ]
        out_spec = pl.BlockSpec((1, tq, D), lambda b, qi: (b, qi, 0))
        if return_scores:
            out_shape = (jax.ShapeDtypeStruct((B, S, D), cdt),
                         jax.ShapeDtypeStruct((B, h, S, S), scores_dtype))
            out_specs = (out_spec,
                         pl.BlockSpec((1, h, tq, S), lambda b, qi: (b, 0, qi, 0)))
        else:
            out_shape = jax.ShapeDtypeStruct((B, S, D), cdt)
            out_specs = out_spec

        return pl.pallas_call(
            kernel,
            out_shape=out_shape,
            grid=(B, n_qt),
            in_specs=in_specs,
            out_specs=out_specs,
            scratch_shapes=[
                pltpu.VMEM((h, d_k, S), cdt),   # K^T, head-major (per batch)
                pltpu.VMEM((h, S, d_k), cdt),   # V,   head-major (per batch)
                pltpu.VMEM((tq, D), cdt),       # concatenated head contexts
            ],
            compiler_params=pltpu.CompilerParams(
                # Batch axis sharded across TensorCores; query-tile axis must
                # stay sequential ("arbitrary") for per-batch K/V scratch reuse.
                dimension_semantics=("parallel", "arbitrary"),
                vmem_limit_bytes=vmem_limit),
            cost_estimate=cost,
        )(q, k, v, mask_in, wq_hm, wk_hm, wv_hm, wo_t)

    try:
        result = build_and_run(conservative=False)
    except Exception:
        # Fallback: default double buffering + f32 mask (always-supported path).
        result = build_and_run(conservative=True)

    if return_scores:
        out, scores = result
        return out, scores
    return result, None


def mha_reference(q, k, v, mask, wq, wk, wv, wo, *, h):
    # Pure-JAX reference mirroring the PyTorch module (eval mode), f32 math.
    B, S, D = q.shape
    d_k = D // h
    Q = (q @ wq.T).reshape(B, S, h, d_k).transpose(0, 2, 1, 3)
    K = (k @ wk.T).reshape(B, S, h, d_k).transpose(0, 2, 1, 3)
    V = (v @ wv.T).reshape(B, S, h, d_k).transpose(0, 2, 1, 3)
    scores = jnp.einsum("bhqd,bhkd->bhqk", Q, K) / math.sqrt(d_k)
    scores = jnp.where(mask == 0.0, -1e9, scores)
    attn = jax.nn.softmax(scores, axis=-1)
    x = jnp.einsum("bhqk,bhkd->bhqd", attn, V)
    x = x.transpose(0, 2, 1, 3).reshape(B, S, D)
    return x @ wo.T, attn


if __name__ == "__main__":
    def run_case(B, S, D, h, tq, compute_dtype, return_scores, atol, rtol, name):
        key = jax.random.PRNGKey(0)
        kq, kk, kv, kwq, kwk, kwv, kwo = jax.random.split(key, 7)

        q = jax.random.normal(kq, (B, S, D), dtype=jnp.float32)
        k = jax.random.normal(kk, (B, S, D), dtype=jnp.float32)
        v = jax.random.normal(kv, (B, S, D), dtype=jnp.float32)

        # Causal mask (mask==0 is masked), broadcast over heads as in PyTorch usage.
        mask = jnp.tril(jnp.ones((S, S), dtype=jnp.float32))[None, None, :, :]
        mask = jnp.broadcast_to(mask, (B, 1, S, S))

        # nn.Linear default init U(-1/sqrt(fan_in), 1/sqrt(fan_in)), bias=False.
        bound = 1.0 / math.sqrt(D)
        wq = jax.random.uniform(kwq, (D, D), jnp.float32, -bound, bound)
        wk = jax.random.uniform(kwk, (D, D), jnp.float32, -bound, bound)
        wv = jax.random.uniform(kwv, (D, D), jnp.float32, -bound, bound)
        wo = jax.random.uniform(kwo, (D, D), jnp.float32, -bound, bound)

        out, scores = mha_forward(q, k, v, mask, wq, wk, wv, wo, h=h, tq=tq,
                                  compute_dtype=compute_dtype,
                                  return_scores=return_scores)
        out = jax.block_until_ready(out)

        # Reference in f32 on the (possibly down-cast) operands the kernel saw.
        if compute_dtype is not None:
            q, k, v = (x.astype(compute_dtype).astype(jnp.float32) for x in (q, k, v))
            wq, wk, wv, wo = (w.astype(compute_dtype).astype(jnp.float32)
                              for w in (wq, wk, wv, wo))
        ref_out, ref_attn = mha_reference(q, k, v, mask, wq, wk, wv, wo, h=h)

        assert jnp.allclose(out.astype(jnp.float32), ref_out, atol=atol, rtol=rtol), \
            f"{name}: output mismatch"
        if return_scores:
            scores = jax.block_until_ready(scores)
            assert jnp.allclose(scores.astype(jnp.float32), ref_attn,
                                atol=atol, rtol=rtol), \
                f"{name}: attention scores mismatch"
        else:
            assert scores is None

    # f32, single query tile, with the optional scores output enabled.
    run_case(2, 8, 32, 4, 8, None, True, 2e-3, 2e-3, "f32 S=8 scores")
    # f32, two query tiles per batch, fast path (no scores materialization):
    # exercises the per-batch K/V scratch reuse across query tiles.
    run_case(2, 16, 32, 4, 8, None, False, 2e-3, 2e-3, "f32 S=16 tq=8 no-scores")
    # bf16 compute path (f32 accumulation), bf16 scores, bf16-packing-aligned tq.
    run_case(2, 32, 32, 4, 16, jnp.bfloat16, True, 5e-2, 5e-2, "bf16 S=32 tq=16")

    print("KERNEL_OK")
</pallas_src>

<mosaic_0001>
module attributes {stable_mosaic.version = 11 : i64} {
  func.func @mha_kernel(%arg0: i32, %arg1: i32, %arg2: memref<1x8x32xf32, #tpu.memory_space<vmem>>, %arg3: memref<1x8x32xf32, #tpu.memory_space<vmem>>, %arg4: memref<1x8x32xf32, #tpu.memory_space<vmem>>, %arg5: memref<1x1x8x8xi8, #tpu.memory_space<vmem>>, %arg6: memref<4x32x8xf32, #tpu.memory_space<vmem>>, %arg7: memref<4x32x8xf32, #tpu.memory_space<vmem>>, %arg8: memref<4x32x8xf32, #tpu.memory_space<vmem>>, %arg9: memref<32x32xf32, #tpu.memory_space<vmem>>, %arg10: memref<1x8x32xf32, #tpu.memory_space<vmem>>, %arg11: memref<1x4x8x8xf32, #tpu.memory_space<vmem>>, %arg12: memref<4x8x8xf32, #tpu.memory_space<vmem>>, %arg13: memref<4x8x8xf32, #tpu.memory_space<vmem>>, %arg14: memref<8x32xf32, #tpu.memory_space<vmem>>) attributes {dimension_semantics = [#tpu.dimension_semantics<parallel>, #tpu.dimension_semantics<arbitrary>], iteration_bounds = array<i64: 2, 1>, scalar_prefetch = 0 : i64, scratch_operands = 3 : i64, tpu.core_type = #tpu.core_type<tc>, window_params = [{transform_indices = @transform_0, window_bounds = array<i64: 1, 8, 32>}, {pipeline_mode = #tpu.pipeline_mode<synchronous>, transform_indices = @transform_1, window_bounds = array<i64: 1, 8, 32>}, {pipeline_mode = #tpu.pipeline_mode<synchronous>, transform_indices = @transform_2, window_bounds = array<i64: 1, 8, 32>}, {transform_indices = @transform_3, window_bounds = array<i64: 1, 1, 8, 8>}, {pipeline_mode = #tpu.pipeline_mode<synchronous>, transform_indices = @transform_4, window_bounds = array<i64: 4, 32, 8>}, {pipeline_mode = #tpu.pipeline_mode<synchronous>, transform_indices = @transform_5, window_bounds = array<i64: 4, 32, 8>}, {pipeline_mode = #tpu.pipeline_mode<synchronous>, transform_indices = @transform_6, window_bounds = array<i64: 4, 32, 8>}, {pipeline_mode = #tpu.pipeline_mode<synchronous>, transform_indices = @transform_7, window_bounds = array<i64: 32, 32>}, {transform_indices = @transform_8, window_bounds = array<i64: 1, 8, 32>}, {transform_indices = @transform_9, window_bounds = array<i64: 1, 4, 8, 8>}]} {
    %c0_i32 = arith.constant 0 : i32
    %0 = arith.cmpi eq, %arg1, %c0_i32 : i32
    %1 = arith.extui %0 : i1 to i32
    %c0_i32_0 = arith.constant 0 : i32
    %2 = arith.cmpi ne, %1, %c0_i32_0 : i32
    scf.if %2 {
      %c0_107 = arith.constant 0 : index
      %c0_108 = arith.constant 0 : index
      %c0_109 = arith.constant 0 : index
      %127 = vector.load %arg3[%c0_107, %c0_108, %c0_109] : memref<1x8x32xf32, #tpu.memory_space<vmem>>, vector<1x8x32xf32>
      %128 = vector.shape_cast %127 : vector<1x8x32xf32> to vector<8x32xf32>
      %c0_110 = arith.constant 0 : index
      %c0_111 = arith.constant 0 : index
      %c0_112 = arith.constant 0 : index
      %129 = vector.load %arg4[%c0_110, %c0_111, %c0_112] : memref<1x8x32xf32, #tpu.memory_space<vmem>>, vector<1x8x32xf32>
      %130 = vector.shape_cast %129 : vector<1x8x32xf32> to vector<8x32xf32>
      %c0_113 = arith.constant 0 : index
      %c0_114 = arith.constant 0 : index
      %c0_115 = arith.constant 0 : index
      %131 = vector.load %arg7[%c0_113, %c0_114, %c0_115] : memref<4x32x8xf32, #tpu.memory_space<vmem>>, vector<1x32x8xf32>
      %132 = vector.shape_cast %131 : vector<1x32x8xf32> to vector<32x8xf32>
      %cst_116 = arith.constant dense<0.000000e+00> : vector<8x8xf32>
      %133 = tpu.matmul %128, %132, %cst_116 {dimension_numbers = #tpu.dot_dimension_numbers<[1], [0], [0], [1], [0, 0, 1, 1], [], []>} : vector<8x32xf32>, vector<32x8xf32>, vector<8x8xf32> -> vector<8x8xf32>
      %134 = tpu.transpose %133, [1, 0] : vector<8x8xf32> -> vector<8x8xf32>
      %c0_117 = arith.constant 0 : index
      %c0_118 = arith.constant 0 : index
      %c0_119 = arith.constant 0 : index
      %135 = vector.load %arg12[%c0_117, %c0_118, %c0_119] : memref<4x8x8xf32, #tpu.memory_space<vmem>>, vector<1x8x8xf32>
      %136 = vector.shape_cast %135 : vector<1x8x8xf32> to vector<8x8xf32>
      %137 = vector.shape_cast %134 : vector<8x8xf32> to vector<1x8x8xf32>
      tpu.vector_store %arg12[%c0_117, %c0_118, %c0_119], %137 {strides = array<i32>} : memref<4x8x8xf32, #tpu.memory_space<vmem>>, vector<1x8x8xf32>,
      %c0_120 = arith.constant 0 : index
      %c0_121 = arith.constant 0 : index
      %c0_122 = arith.constant 0 : index
      %138 = vector.load %arg8[%c0_120, %c0_121, %c0_122] : memref<4x32x8xf32, #tpu.memory_space<vmem>>, vector<1x32x8xf32>
      %139 = vector.shape_cast %138 : vector<1x32x8xf32> to vector<32x8xf32>
      %cst_123 = arith.constant dense<0.000000e+00> : vector<8x8xf32>
      %140 = tpu.matmul %130, %139, %cst_123 {dimension_numbers = #tpu.dot_dimension_numbers<[1], [0], [0], [1], [0, 0, 1, 1], [], []>} : vector<8x32xf32>, vector<32x8xf32>, vector<8x8xf32> -> vector<8x8xf32>
      %c0_124 = arith.constant 0 : index
      %c0_125 = arith.constant 0 : index
      %c0_126 = arith.constant 0 : index
      %141 = vector.load %arg13[%c0_124, %c0_125, %c0_126] : memref<4x8x8xf32, #tpu.memory_space<vmem>>, vector<1x8x8xf32>
      %142 = vector.shape_cast %141 : vector<1x8x8xf32> to vector<8x8xf32>
      %143 = vector.shape_cast %140 : vector<8x8xf32> to vector<1x8x8xf32>
      tpu.vector_store %arg13[%c0_124, %c0_125, %c0_126], %143 {strides = array<i32>} : memref<4x8x8xf32, #tpu.memory_space<vmem>>, vector<1x8x8xf32>,
      %c1_127 = arith.constant 1 : index
      %c0_128 = arith.constant 0 : index
      %c0_129 = arith.constant 0 : index
      %144 = vector.load %arg7[%c1_127, %c0_128, %c0_129] : memref<4x32x8xf32, #tpu.memory_space<vmem>>, vector<1x32x8xf32>
      %145 = vector.shape_cast %144 : vector<1x32x8xf32> to vector<32x8xf32>
      %cst_130 = arith.constant dense<0.000000e+00> : vector<8x8xf32>
      %146 = tpu.matmul %128, %145, %cst_130 {dimension_numbers = #tpu.dot_dimension_numbers<[1], [0], [0], [1], [0, 0, 1, 1], [], []>} : vector<8x32xf32>, vector<32x8xf32>, vector<8x8xf32> -> vector<8x8xf32>
      %147 = tpu.transpose %146, [1, 0] : vector<8x8xf32> -> vector<8x8xf32>
      %c1_131 = arith.constant 1 : index
      %c0_132 = arith.constant 0 : index
      %c0_133 = arith.constant 0 : index
      %148 = vector.load %arg12[%c1_131, %c0_132, %c0_133] : memref<4x8x8xf32, #tpu.memory_space<vmem>>, vector<1x8x8xf32>
      %149 = vector.shape_cast %148 : vector<1x8x8xf32> to vector<8x8xf32>
      %150 = vector.shape_cast %147 : vector<8x8xf32> to vector<1x8x8xf32>
      tpu.vector_store %arg12[%c1_131, %c0_132, %c0_133], %150 {strides = array<i32>} : memref<4x8x8xf32, #tpu.memory_space<vmem>>, vector<1x8x8xf32>,
      %c1_134 = arith.constant 1 : index
      %c0_135 = arith.constant 0 : index
      %c0_136 = arith.constant 0 : index
      %151 = vector.load %arg8[%c1_134, %c0_135, %c0_136] : memref<4x32x8xf32, #tpu.memory_space<vmem>>, vector<1x32x8xf32>
      %152 = vector.shape_cast %151 : vector<1x32x8xf32> to vector<32x8xf32>
      %cst_137 = arith.constant dense<0.000000e+00> : vector<8x8xf32>
      %153 = tpu.matmul %130, %152, %cst_137 {dimension_numbers = #tpu.dot_dimension_numbers<[1], [0], [0], [1], [0, 0, 1, 1], [], []>} : vector<8x32xf32>, vector<32x8xf32>, vector<8x8xf32> -> vector<8x8xf32>
      %c1_138 = arith.constant 1 : index
      %c0_139 = arith.constant 0 : index
      %c0_140 = arith.constant 0 : index
      %154 = vector.load %arg13[%c1_138, %c0_139, %c0_140] : memref<4x8x8xf32, #tpu.memory_space<vmem>>, vector<1x8x8xf32>
      %155 = vector.shape_cast %154 : vector<1x8x8xf32> to vector<8x8xf32>
      %156 = vector.shape_cast %153 : vector<8x8xf32> to vector<1x8x8xf32>
      tpu.vector_store %arg13[%c1_138, %c0_139, %c0_140], %156 {strides = array<i32>} : memref<4x8x8xf32, #tpu.memory_space<vmem>>, vector<1x8x8xf32>,
      %c2_141 = arith.constant 2 : index
      %c0_142 = arith.constant 0 : index
      %c0_143 = arith.constant 0 : index
      %157 = vector.load %arg7[%c2_141, %c0_142, %c0_143] : memref<4x32x8xf32, #tpu.memory_space<vmem>>, vector<1x32x8xf32>
      %158 = vector.shape_cast %157 : vector<1x32x8xf32> to vector<32x8xf32>
      %cst_144 = arith.constant dense<0.000000e+00> : vector<8x8xf32>
      %159 = tpu.matmul %128, %158, %cst_144 {dimension_numbers = #tpu.dot_dimension_numbers<[1], [0], [0], [1], [0, 0, 1, 1], [], []>} : vector<8x32xf32>, vector<32x8xf32>, vector<8x8xf32> -> vector<8x8xf32>
      %160 = tpu.transpose %159, [1, 0] : vector<8x8xf32> -> vector<8x8xf32>
      %c2_145 = arith.constant 2 : index
      %c0_146 = arith.constant 0 : index
      %c0_147 = arith.constant 0 : index
      %161 = vector.load %arg12[%c2_145, %c0_146, %c0_147] : memref<4x8x8xf32, #tpu.memory_space<vmem>>, vector<1x8x8xf32>
      %162 = vector.shape_cast %161 : vector<1x8x8xf32> to vector<8x8xf32>
      %163 = vector.shape_cast %160 : vector<8x8xf32> to vector<1x8x8xf32>
      tpu.vector_store %arg12[%c2_145, %c0_146, %c0_147], %163 {strides = array<i32>} : memref<4x8x8xf32, #tpu.memory_space<vmem>>, vector<1x8x8xf32>,
      %c2_148 = arith.constant 2 : index
      %c0_149 = arith.constant 0 : index
      %c0_150 = arith.constant 0 : index
      %164 = vector.load %arg8[%c2_148, %c0_149, %c0_150] : memref<4x32x8xf32, #tpu.memory_space<vmem>>, vector<1x32x8xf32>
      %165 = vector.shape_cast %164 : vector<1x32x8xf32> to vector<32x8xf32>
      %cst_151 = arith.constant dense<0.000000e+00> : vector<8x8xf32>
      %166 = tpu.matmul %130, %165, %cst_151 {dimension_numbers = #tpu.dot_dimension_numbers<[1], [0], [0], [1], [0, 0, 1, 1], [], []>} : vector<8x32xf32>, vector<32x8xf32>, vector<8x8xf32> -> vector<8x8xf32>
      %c2_152 = arith.constant 2 : index
      %c0_153 = arith.constant 0 : index
      %c0_154 = arith.constant 0 : index
      %167 = vector.load %arg13[%c2_152, %c0_153, %c0_154] : memref<4x8x8xf32, #tpu.memory_space<vmem>>, vector<1x8x8xf32>
      %168 = vector.shape_cast %167 : vector<1x8x8xf32> to vector<8x8xf32>
      %169 = vector.shape_cast %166 : vector<8x8xf32> to vector<1x8x8xf32>
      tpu.vector_store %arg13[%c2_152, %c0_153, %c0_154], %169 {strides = array<i32>} : memref<4x8x8xf32, #tpu.memory_space<vmem>>, vector<1x8x8xf32>,
      %c3_155 = arith.constant 3 : index
      %c0_156 = arith.constant 0 : index
      %c0_157 = arith.constant 0 : index
      %170 = vector.load %arg7[%c3_155, %c0_156, %c0_157] : memref<4x32x8xf32, #tpu.memory_space<vmem>>, vector<1x32x8xf32>
      %171 = vector.shape_cast %170 : vector<1x32x8xf32> to vector<32x8xf32>
      %cst_158 = arith.constant dense<0.000000e+00> : vector<8x8xf32>
      %172 = tpu.matmul %128, %171, %cst_158 {dimension_numbers = #tpu.dot_dimension_numbers<[1], [0], [0], [1], [0, 0, 1, 1], [], []>} : vector<8x32xf32>, vector<32x8xf32>, vector<8x8xf32> -> vector<8x8xf32>
      %173 = tpu.transpose %172, [1, 0] : vector<8x8xf32> -> vector<8x8xf32>
      %c3_159 = arith.constant 3 : index
      %c0_160 = arith.constant 0 : index
      %c0_161 = arith.constant 0 : index
      %174 = vector.load %arg12[%c3_159, %c0_160, %c0_161] : memref<4x8x8xf32, #tpu.memory_space<vmem>>, vector<1x8x8xf32>
      %175 = vector.shape_cast %174 : vector<1x8x8xf32> to vector<8x8xf32>
      %176 = vector.shape_cast %173 : vector<8x8xf32> to vector<1x8x8xf32>
      tpu.vector_store %arg12[%c3_159, %c0_160, %c0_161], %176 {strides = array<i32>} : memref<4x8x8xf32, #tpu.memory_space<vmem>>, vector<1x8x8xf32>,
      %c3_162 = arith.constant 3 : index
      %c0_163 = arith.constant 0 : index
      %c0_164 = arith.constant 0 : index
      %177 = vector.load %arg8[%c3_162, %c0_163, %c0_164] : memref<4x32x8xf32, #tpu.memory_space<vmem>>, vector<1x32x8xf32>
      %178 = vector.shape_cast %177 : vector<1x32x8xf32> to vector<32x8xf32>
      %cst_165 = arith.constant dense<0.000000e+00> : vector<8x8xf32>
      %179 = tpu.matmul %130, %178, %cst_165 {dimension_numbers = #tpu.dot_dimension_numbers<[1], [0], [0], [1], [0, 0, 1, 1], [], []>} : vector<8x32xf32>, vector<32x8xf32>, vector<8x8xf32> -> vector<8x8xf32>
      %c3_166 = arith.constant 3 : index
      %c0_167 = arith.constant 0 : index
      %c0_168 = arith.constant 0 : index
      %180 = vector.load %arg13[%c3_166, %c0_167, %c0_168] : memref<4x8x8xf32, #tpu.memory_space<vmem>>, vector<1x8x8xf32>
      %181 = vector.shape_cast %180 : vector<1x8x8xf32> to vector<8x8xf32>
      %182 = vector.shape_cast %179 : vector<8x8xf32> to vector<1x8x8xf32>
      tpu.vector_store %arg13[%c3_166, %c0_167, %c0_168], %182 {strides = array<i32>} : memref<4x8x8xf32, #tpu.memory_space<vmem>>, vector<1x8x8xf32>,
    } else {
    }
    %c0 = arith.constant 0 : index
    %c0_1 = arith.constant 0 : index
    %c0_2 = arith.constant 0 : index
    %3 = vector.load %arg2[%c0, %c0_1, %c0_2] : memref<1x8x32xf32, #tpu.memory_space<vmem>>, vector<1x8x32xf32>
    %4 = vector.shape_cast %3 : vector<1x8x32xf32> to vector<8x32xf32>
    %c0_3 = arith.constant 0 : index
    %c0_4 = arith.constant 0 : index
    %c0_5 = arith.constant 0 : index
    %5 = vector.load %arg6[%c0_3, %c0_4, %c0_5] : memref<4x32x8xf32, #tpu.memory_space<vmem>>, vector<1x32x8xf32>
    %6 = vector.shape_cast %5 : vector<1x32x8xf32> to vector<32x8xf32>
    %cst = arith.constant dense<0.000000e+00> : vector<8x8xf32>
    %7 = tpu.matmul %4, %6, %cst {dimension_numbers = #tpu.dot_dimension_numbers<[1], [0], [0], [1], [0, 0, 1, 1], [], []>} : vector<8x32xf32>, vector<32x8xf32>, vector<8x8xf32> -> vector<8x8xf32>
    %c0_6 = arith.constant 0 : index
    %c0_7 = arith.constant 0 : index
    %c0_8 = arith.constant 0 : index
    %8 = vector.load %arg12[%c0_6, %c0_7, %c0_8] : memref<4x8x8xf32, #tpu.memory_space<vmem>>, vector<1x8x8xf32>
    %9 = vector.shape_cast %8 : vector<1x8x8xf32> to vector<8x8xf32>
    %cst_9 = arith.constant dense<0.000000e+00> : vector<8x8xf32>
    %10 = tpu.matmul %7, %9, %cst_9 {dimension_numbers = #tpu.dot_dimension_numbers<[1], [0], [0], [1], [0, 0, 1, 1], [], []>} : vector<8x8xf32>, vector<8x8xf32>, vector<8x8xf32> -> vector<8x8xf32>
    %c0_10 = arith.constant 0 : index
    %c0_11 = arith.constant 0 : index
    %c0_12 = arith.constant 0 : index
    %c0_13 = arith.constant 0 : index
    %11 = vector.load %arg5[%c0_10, %c0_11, %c0_12, %c0_13] : memref<1x1x8x8xi8, #tpu.memory_space<vmem>>, vector<1x1x8x8xi8>
    %12 = vector.shape_cast %11 : vector<1x1x8x8xi8> to vector<8x8xi8>
    %c0_i8 = arith.constant 0 : i8
    %13 = vector.broadcast %c0_i8 : i8 to vector<8x8xi8>
    %14 = arith.cmpi eq, %12, %13 : vector<8x8xi8>
    %cst_14 = arith.constant -1.000000e+09 : f32
    %15 = vector.broadcast %cst_14 : f32 to vector<8x8xf32>
    %16 = arith.select %14, %15, %10 : vector<8x8xi1>, vector<8x8xf32>
    %cst_15 = arith.constant dense<0xFF800000> : vector<8xf32>
    %17 = vector.multi_reduction <maximumf>, %16, %cst_15 [1] : vector<8x8xf32> to vector<8xf32>
    %18 = vector.shape_cast %17 : vector<8xf32> to vector<8x1xf32>
    %19 = vector.broadcast %18 : vector<8x1xf32> to vector<8x8xf32>
    %20 = arith.subf %16, %19 : vector<8x8xf32>
    %21 = math.exp %20 : vector<8x8xf32>
    %cst_16 = arith.constant dense<0.000000e+00> : vector<8xf32>
    %22 = vector.multi_reduction <add>, %21, %cst_16 [1] : vector<8x8xf32> to vector<8xf32>
    %23 = vector.shape_cast %22 : vector<8xf32> to vector<8x1xf32>
    %24 = tpu.reciprocal %23 : vector<8x1xf32> -> vector<8x1xf32>
    %25 = vector.broadcast %24 : vector<8x1xf32> to vector<8x8xf32>
    %26 = arith.mulf %21, %25 : vector<8x8xf32>
    %c0_17 = arith.constant 0 : index
    %c0_18 = arith.constant 0 : index
    %c0_19 = arith.constant 0 : index
    %c0_20 = arith.constant 0 : index
    %27 = vector.load %arg11[%c0_17, %c0_18, %c0_19, %c0_20] : memref<1x4x8x8xf32, #tpu.memory_space<vmem>>, vector<1x1x8x8xf32>
    %28 = vector.shape_cast %27 : vector<1x1x8x8xf32> to vector<8x8xf32>
    %29 = vector.shape_cast %26 : vector<8x8xf32> to vector<1x1x8x8xf32>
    tpu.vector_store %arg11[%c0_17, %c0_18, %c0_19, %c0_20], %29 {strides = array<i32>} : memref<1x4x8x8xf32, #tpu.memory_space<vmem>>, vector<1x1x8x8xf32>,
    %c0_21 = arith.constant 0 : index
    %c0_22 = arith.constant 0 : index
    %c0_23 = arith.constant 0 : index
    %30 = vector.load %arg13[%c0_21, %c0_22, %c0_23] : memref<4x8x8xf32, #tpu.memory_space<vmem>>, vector<1x8x8xf32>
    %31 = vector.shape_cast %30 : vector<1x8x8xf32> to vector<8x8xf32>
    %cst_24 = arith.constant dense<0.000000e+00> : vector<8x8xf32>
    %32 = tpu.matmul %26, %31, %cst_24 {dimension_numbers = #tpu.dot_dimension_numbers<[1], [0], [0], [1], [0, 0, 1, 1], [], []>} : vector<8x8xf32>, vector<8x8xf32>, vector<8x8xf32> -> vector<8x8xf32>
    %c0_25 = arith.constant 0 : index
    %c0_26 = arith.constant 0 : index
    %33 = vector.load %arg14[%c0_25, %c0_26] : memref<8x32xf32, #tpu.memory_space<vmem>>, vector<8x8xf32>
    tpu.vector_store %arg14[%c0_25, %c0_26], %32 {strides = array<i32>} : memref<8x32xf32, #tpu.memory_space<vmem>>, vector<8x8xf32>,
    %c1 = arith.constant 1 : index
    %c0_27 = arith.constant 0 : index
    %c0_28 = arith.constant 0 : index
    %34 = vector.load %arg6[%c1, %c0_27, %c0_28] : memref<4x32x8xf32, #tpu.memory_space<vmem>>, vector<1x32x8xf32>
    %35 = vector.shape_cast %34 : vector<1x32x8xf32> to vector<32x8xf32>
    %cst_29 = arith.constant dense<0.000000e+00> : vector<8x8xf32>
    %36 = tpu.matmul %4, %35, %cst_29 {dimension_numbers = #tpu.dot_dimension_numbers<[1], [0], [0], [1], [0, 0, 1, 1], [], []>} : vector<8x32xf32>, vector<32x8xf32>, vector<8x8xf32> -> vector<8x8xf32>
    %c1_30 = arith.constant 1 : index
    %c0_31 = arith.constant 0 : index
    %c0_32 = arith.constant 0 : index
    %37 = vector.load %arg12[%c1_30, %c0_31, %c0_32] : memref<4x8x8xf32, #tpu.memory_space<vmem>>, vector<1x8x8xf32>
    %38 = vector.shape_cast %37 : vector<1x8x8xf32> to vector<8x8xf32>
    %cst_33 = arith.constant dense<0.000000e+00> : vector<8x8xf32>
    %39 = tpu.matmul %36, %38, %cst_33 {dimension_numbers = #tpu.dot_dimension_numbers<[1], [0], [0], [1], [0, 0, 1, 1], [], []>} : vector<8x8xf32>, vector<8x8xf32>, vector<8x8xf32> -> vector<8x8xf32>
    %c0_34 = arith.constant 0 : index
    %c0_35 = arith.constant 0 : index
    %c0_36 = arith.constant 0 : index
    %c0_37 = arith.constant 0 : index
    %40 = vector.load %arg5[%c0_34, %c0_35, %c0_36, %c0_37] : memref<1x1x8x8xi8, #tpu.memory_space<vmem>>, vector<1x1x8x8xi8>
    %41 = vector.shape_cast %40 : vector<1x1x8x8xi8> to vector<8x8xi8>
    %c0_i8_38 = arith.constant 0 : i8
    %42 = vector.broadcast %c0_i8_38 : i8 to vector<8x8xi8>
    %43 = arith.cmpi eq, %41, %42 : vector<8x8xi8>
    %cst_39 = arith.constant -1.000000e+09 : f32
    %44 = vector.broadcast %cst_39 : f32 to vector<8x8xf32>
    %45 = arith.select %43, %44, %39 : vector<8x8xi1>, vector<8x8xf32>
    %cst_40 = arith.constant dense<0xFF800000> : vector<8xf32>
    %46 = vector.multi_reduction <maximumf>, %45, %cst_40 [1] : vector<8x8xf32> to vector<8xf32>
    %47 = vector.shape_cast %46 : vector<8xf32> to vector<8x1xf32>
    %48 = vector.broadcast %47 : vector<8x1xf32> to vector<8x8xf32>
    %49 = arith.subf %45, %48 : vector<8x8xf32>
    %50 = math.exp %49 : vector<8x8xf32>
    %cst_41 = arith.constant dense<0.000000e+00> : vector<8xf32>
    %51 = vector.multi_reduction <add>, %50, %cst_41 [1] : vector<8x8xf32> to vector<8xf32>
    %52 = vector.shape_cast %51 : vector<8xf32> to vector<8x1xf32>
    %53 = tpu.reciprocal %52 : vector<8x1xf32> -> vector<8x1xf32>
    %54 = vector.broadcast %53 : vector<8x1xf32> to vector<8x8xf32>
    %55 = arith.mulf %50, %54 : vector<8x8xf32>
    %c0_42 = arith.constant 0 : index
    %c1_43 = arith.constant 1 : index
    %c0_44 = arith.constant 0 : index
    %c0_45 = arith.constant 0 : index
    %56 = vector.load %arg11[%c0_42, %c1_43, %c0_44, %c0_45] : memref<1x4x8x8xf32, #tpu.memory_space<vmem>>, vector<1x1x8x8xf32>
    %57 = vector.shape_cast %56 : vector<1x1x8x8xf32> to vector<8x8xf32>
    %58 = vector.shape_cast %55 : vector<8x8xf32> to vector<1x1x8x8xf32>
    tpu.vector_store %arg11[%c0_42, %c1_43, %c0_44, %c0_45], %58 {strides = array<i32>} : memref<1x4x8x8xf32, #tpu.memory_space<vmem>>, vector<1x1x8x8xf32>,
    %c1_46 = arith.constant 1 : index
    %c0_47 = arith.constant 0 : index
    %c0_48 = arith.constant 0 : index
    %59 = vector.load %arg13[%c1_46, %c0_47, %c0_48] : memref<4x8x8xf32, #tpu.memory_space<vmem>>, vector<1x8x8xf32>
    %60 = vector.shape_cast %59 : vector<1x8x8xf32> to vector<8x8xf32>
    %cst_49 = arith.constant dense<0.000000e+00> : vector<8x8xf32>
    %61 = tpu.matmul %55, %60, %cst_49 {dimension_numbers = #tpu.dot_dimension_numbers<[1], [0], [0], [1], [0, 0, 1, 1], [], []>} : vector<8x8xf32>, vector<8x8xf32>, vector<8x8xf32> -> vector<8x8xf32>
    %c0_50 = arith.constant 0 : index
    %c8 = arith.constant 8 : index
    %62 = vector.load %arg14[%c0_50, %c8] : memref<8x32xf32, #tpu.memory_space<vmem>>, vector<8x8xf32>
    tpu.vector_store %arg14[%c0_50, %c8], %61 {strides = array<i32>} : memref<8x32xf32, #tpu.memory_space<vmem>>, vector<8x8xf32>,
    %c2 = arith.constant 2 : index
    %c0_51 = arith.constant 0 : index
    %c0_52 = arith.constant 0 : index
    %63 = vector.load %arg6[%c2, %c0_51, %c0_52] : memref<4x32x8xf32, #tpu.memory_space<vmem>>, vector<1x32x8xf32>
    %64 = vector.shape_cast %63 : vector<1x32x8xf32> to vector<32x8xf32>
    %cst_53 = arith.constant dense<0.000000e+00> : vector<8x8xf32>
    %65 = tpu.matmul %4, %64, %cst_53 {dimension_numbers = #tpu.dot_dimension_numbers<[1], [0], [0], [1], [0, 0, 1, 1], [], []>} : vector<8x32xf32>, vector<32x8xf32>, vector<8x8xf32> -> vector<8x8xf32>
    %c2_54 = arith.constant 2 : index
    %c0_55 = arith.constant 0 : index
    %c0_56 = arith.constant 0 : index
    %66 = vector.load %arg12[%c2_54, %c0_55, %c0_56] : memref<4x8x8xf32, #tpu.memory_space<vmem>>, vector<1x8x8xf32>
    %67 = vector.shape_cast %66 : vector<1x8x8xf32> to vector<8x8xf32>
    %cst_57 = arith.constant dense<0.000000e+00> : vector<8x8xf32>
    %68 = tpu.matmul %65, %67, %cst_57 {dimension_numbers = #tpu.dot_dimension_numbers<[1], [0], [0], [1], [0, 0, 1, 1], [], []>} : vector<8x8xf32>, vector<8x8xf32>, vector<8x8xf32> -> vector<8x8xf32>
    %c0_58 = arith.constant 0 : index
    %c0_59 = arith.constant 0 : index
    %c0_60 = arith.constant 0 : index
    %c0_61 = arith.constant 0 : index
    %69 = vector.load %arg5[%c0_58, %c0_59, %c0_60, %c0_61] : memref<1x1x8x8xi8, #tpu.memory_space<vmem>>, vector<1x1x8x8xi8>
    %70 = vector.shape_cast %69 : vector<1x1x8x8xi8> to vector<8x8xi8>
    %c0_i8_62 = arith.constant 0 : i8
    %71 = vector.broadcast %c0_i8_62 : i8 to vector<8x8xi8>
    %72 = arith.cmpi eq, %70, %71 : vector<8x8xi8>
    %cst_63 = arith.constant -1.000000e+09 : f32
    %73 = vector.broadcast %cst_63 : f32 to vector<8x8xf32>
    %74 = arith.select %72, %73, %68 : vector<8x8xi1>, vector<8x8xf32>
    %cst_64 = arith.constant dense<0xFF800000> : vector<8xf32>
    %75 = vector.multi_reduction <maximumf>, %74, %cst_64 [1] : vector<8x8xf32> to vector<8xf32>
    %76 = vector.shape_cast %75 : vector<8xf32> to vector<8x1xf32>
    %77 = vector.broadcast %76 : vector<8x1xf32> to vector<8x8xf32>
    %78 = arith.subf %74, %77 : vector<8x8xf32>
    %79 = math.exp %78 : vector<8x8xf32>
    %cst_65 = arith.constant dense<0.000000e+00> : vector<8xf32>
    %80 = vector.multi_reduction <add>, %79, %cst_65 [1] : vector<8x8xf32> to vector<8xf32>
    %81 = vector.shape_cast %80 : vector<8xf32> to vector<8x1xf32>
    %82 = tpu.reciprocal %81 : vector<8x1xf32> -> vector<8x1xf32>
    %83 = vector.broadcast %82 : vector<8x1xf32> to vector<8x8xf32>
    %84 = arith.mulf %79, %83 : vector<8x8xf32>
    %c0_66 = arith.constant 0 : index
    %c2_67 = arith.constant 2 : index
    %c0_68 = arith.constant 0 : index
    %c0_69 = arith.constant 0 : index
    %85 = vector.load %arg11[%c0_66, %c2_67, %c0_68, %c0_69] : memref<1x4x8x8xf32, #tpu.memory_space<vmem>>, vector<1x1x8x8xf32>
    %86 = vector.shape_cast %85 : vector<1x1x8x8xf32> to vector<8x8xf32>
    %87 = vector.shape_cast %84 : vector<8x8xf32> to vector<1x1x8x8xf32>
    tpu.vector_store %arg11[%c0_66, %c2_67, %c0_68, %c0_69], %87 {strides = array<i32>} : memref<1x4x8x8xf32, #tpu.memory_space<vmem>>, vector<1x1x8x8xf32>,
    %c2_70 = arith.constant 2 : index
    %c0_71 = arith.constant 0 : index
    %c0_72 = arith.constant 0 : index
    %88 = vector.load %arg13[%c2_70, %c0_71, %c0_72] : memref<4x8x8xf32, #tpu.memory_space<vmem>>, vector<1x8x8xf32>
    %89 = vector.shape_cast %88 : vector<1x8x8xf32> to vector<8x8xf32>
    %cst_73 = arith.constant dense<0.000000e+00> : vector<8x8xf32>
    %90 = tpu.matmul %84, %89, %cst_73 {dimension_numbers = #tpu.dot_dimension_numbers<[1], [0], [0], [1], [0, 0, 1, 1], [], []>} : vector<8x8xf32>, vector<8x8xf32>, vector<8x8xf32> -> vector<8x8xf32>
    %c0_74 = arith.constant 0 : index
    %c16 = arith.constant 16 : index
    %91 = vector.load %arg14[%c0_74, %c16] : memref<8x32xf32, #tpu.memory_space<vmem>>, vector<8x8xf32>
    tpu.vector_store %arg14[%c0_74, %c16], %90 {strides = array<i32>} : memref<8x32xf32, #tpu.memory_space<vmem>>, vector<8x8xf32>,
    %c3 = arith.constant 3 : index
    %c0_75 = arith.constant 0 : index
    %c0_76 = arith.constant 0 : index
    %92 = vector.load %arg6[%c3, %c0_75, %c0_76] : memref<4x32x8xf32, #tpu.memory_space<vmem>>, vector<1x32x8xf32>
    %93 = vector.shape_cast %92 : vector<1x32x8xf32> to vector<32x8xf32>
    %cst_77 = arith.constant dense<0.000000e+00> : vector<8x8xf32>
    %94 = tpu.matmul %4, %93, %cst_77 {dimension_numbers = #tpu.dot_dimension_numbers<[1], [0], [0], [1], [0, 0, 1, 1], [], []>} : vector<8x32xf32>, vector<32x8xf32>, vector<8x8xf32> -> vector<8x8xf32>
    %c3_78 = arith.constant 3 : index
    %c0_79 = arith.constant 0 : index
    %c0_80 = arith.constant 0 : index
    %95 = vector.load %arg12[%c3_78, %c0_79, %c0_80] : memref<4x8x8xf32, #tpu.memory_space<vmem>>, vector<1x8x8xf32>
    %96 = vector.shape_cast %95 : vector<1x8x8xf32> to vector<8x8xf32>
    %cst_81 = arith.constant dense<0.000000e+00> : vector<8x8xf32>
    %97 = tpu.matmul %94, %96, %cst_81 {dimension_numbers = #tpu.dot_dimension_numbers<[1], [0], [0], [1], [0, 0, 1, 1], [], []>} : vector<8x8xf32>, vector<8x8xf32>, vector<8x8xf32> -> vector<8x8xf32>
    %c0_82 = arith.constant 0 : index
    %c0_83 = arith.constant 0 : index
    %c0_84 = arith.constant 0 : index
    %c0_85 = arith.constant 0 : index
    %98 = vector.load %arg5[%c0_82, %c0_83, %c0_84, %c0_85] : memref<1x1x8x8xi8, #tpu.memory_space<vmem>>, vector<1x1x8x8xi8>
    %99 = vector.shape_cast %98 : vector<1x1x8x8xi8> to vector<8x8xi8>
    %c0_i8_86 = arith.constant 0 : i8
    %100 = vector.broadcast %c0_i8_86 : i8 to vector<8x8xi8>
    %101 = arith.cmpi eq, %99, %100 : vector<8x8xi8>
    %cst_87 = arith.constant -1.000000e+09 : f32
    %102 = vector.broadcast %cst_87 : f32 to vector<8x8xf32>
    %103 = arith.select %101, %102, %97 : vector<8x8xi1>, vector<8x8xf32>
    %cst_88 = arith.constant dense<0xFF800000> : vector<8xf32>
    %104 = vector.multi_reduction <maximumf>, %103, %cst_88 [1] : vector<8x8xf32> to vector<8xf32>
    %105 = vector.shape_cast %104 : vector<8xf32> to vector<8x1xf32>
    %106 = vector.broadcast %105 : vector<8x1xf32> to vector<8x8xf32>
    %107 = arith.subf %103, %106 : vector<8x8xf32>
    %108 = math.exp %107 : vector<8x8xf32>
    %cst_89 = arith.constant dense<0.000000e+00> : vector<8xf32>
    %109 = vector.multi_reduction <add>, %108, %cst_89 [1] : vector<8x8xf32> to vector<8xf32>
    %110 = vector.shape_cast %109 : vector<8xf32> to vector<8x1xf32>
    %111 = tpu.reciprocal %110 : vector<8x1xf32> -> vector<8x1xf32>
    %112 = vector.broadcast %111 : vector<8x1xf32> to vector<8x8xf32>
    %113 = arith.mulf %108, %112 : vector<8x8xf32>
    %c0_90 = arith.constant 0 : index
    %c3_91 = arith.constant 3 : index
    %c0_92 = arith.constant 0 : index
    %c0_93 = arith.constant 0 : index
    %114 = vector.load %arg11[%c0_90, %c3_91, %c0_92, %c0_93] : memref<1x4x8x8xf32, #tpu.memory_space<vmem>>, vector<1x1x8x8xf32>
    %115 = vector.shape_cast %114 : vector<1x1x8x8xf32> to vector<8x8xf32>
    %116 = vector.shape_cast %113 : vector<8x8xf32> to vector<1x1x8x8xf32>
    tpu.vector_store %arg11[%c0_90, %c3_91, %c0_92, %c0_93], %116 {strides = array<i32>} : memref<1x4x8x8xf32, #tpu.memory_space<vmem>>, vector<1x1x8x8xf32>,
    %c3_94 = arith.constant 3 : index
    %c0_95 = arith.constant 0 : index
    %c0_96 = arith.constant 0 : index
    %117 = vector.load %arg13[%c3_94, %c0_95, %c0_96] : memref<4x8x8xf32, #tpu.memory_space<vmem>>, vector<1x8x8xf32>
    %118 = vector.shape_cast %117 : vector<1x8x8xf32> to vector<8x8xf32>
    %cst_97 = arith.constant dense<0.000000e+00> : vector<8x8xf32>
    %119 = tpu.matmul %113, %118, %cst_97 {dimension_numbers = #tpu.dot_dimension_numbers<[1], [0], [0], [1], [0, 0, 1, 1], [], []>} : vector<8x8xf32>, vector<8x8xf32>, vector<8x8xf32> -> vector<8x8xf32>
    %c0_98 = arith.constant 0 : index
    %c24 = arith.constant 24 : index
    %120 = vector.load %arg14[%c0_98, %c24] : memref<8x32xf32, #tpu.memory_space<vmem>>, vector<8x8xf32>
    tpu.vector_store %arg14[%c0_98, %c24], %119 {strides = array<i32>} : memref<8x32xf32, #tpu.memory_space<vmem>>, vector<8x8xf32>,
    %c0_99 = arith.constant 0 : index
    %c0_100 = arith.constant 0 : index
    %121 = vector.load %arg14[%c0_99, %c0_100] : memref<8x32xf32, #tpu.memory_space<vmem>>, vector<8x32xf32>
    %c0_101 = arith.constant 0 : index
    %c0_102 = arith.constant 0 : index
    %122 = vector.load %arg9[%c0_101, %c0_102] : memref<32x32xf32, #tpu.memory_space<vmem>>, vector<32x32xf32>
    %cst_103 = arith.constant dense<0.000000e+00> : vector<8x32xf32>
    %123 = tpu.matmul %121, %122, %cst_103 {dimension_numbers = #tpu.dot_dimension_numbers<[1], [0], [0], [1], [0, 0, 1, 1], [], []>} : vector<8x32xf32>, vector<32x32xf32>, vector<8x32xf32> -> vector<8x32xf32>
    %c0_104 = arith.constant 0 : index
    %c0_105 = arith.constant 0 : index
    %c0_106 = arith.constant 0 : index
    %124 = vector.load %arg10[%c0_104, %c0_105, %c0_106] : memref<1x8x32xf32, #tpu.memory_space<vmem>>, vector<1x8x32xf32>
    %125 = vector.shape_cast %124 : vector<1x8x32xf32> to vector<8x32xf32>
    %126 = vector.shape_cast %123 : vector<8x32xf32> to vector<1x8x32xf32>
    tpu.vector_store %arg10[%c0_104, %c0_105, %c0_106], %126 {strides = array<i32>} : memref<1x8x32xf32, #tpu.memory_space<vmem>>, vector<1x8x32xf32>,
    return
  }
  func.func @transform_0(%arg0: i32, %arg1: i32) -> (i32, i32, i32) {
    %c0_i32 = arith.constant 0 : i32
    %c0_i32_0 = arith.constant 0 : i32
    return %arg0, %arg1, %c0_i32 : i32, i32, i32
  }
  func.func @transform_1(%arg0: i32, %arg1: i32) -> (i32, i32, i32) {
    %c0_i32 = arith.constant 0 : i32
    %c0_i32_0 = arith.constant 0 : i32
    %c0_i32_1 = arith.constant 0 : i32
    return %arg0, %c0_i32, %c0_i32_0 : i32, i32, i32
  }
  func.func @transform_2(%arg0: i32, %arg1: i32) -> (i32, i32, i32) {
    %c0_i32 = arith.constant 0 : i32
    %c0_i32_0 = arith.constant 0 : i32
    %c0_i32_1 = arith.constant 0 : i32
    return %arg0, %c0_i32, %c0_i32_0 : i32, i32, i32
  }
  func.func @transform_3(%arg0: i32, %arg1: i32) -> (i32, i32, i32, i32) {
    %c0_i32 = arith.constant 0 : i32
    %c0_i32_0 = arith.constant 0 : i32
    %c0_i32_1 = arith.constant 0 : i32
    return %arg0, %c0_i32, %arg1, %c0_i32_0 : i32, i32, i32, i32
  }
  func.func @transform_4(%arg0: i32, %arg1: i32) -> (i32, i32, i32) {
    %c0_i32 = arith.constant 0 : i32
    %c0_i32_0 = arith.constant 0 : i32
    %c0_i32_1 = arith.constant 0 : i32
    %c0_i32_2 = arith.constant 0 : i32
    return %c0_i32, %c0_i32_0, %c0_i32_1 : i32, i32, i32
  }
  func.func @transform_5(%arg0: i32, %arg1: i32) -> (i32, i32, i32) {
    %c0_i32 = arith.constant 0 : i32
    %c0_i32_0 = arith.constant 0 : i32
    %c0_i32_1 = arith.constant 0 : i32
    %c0_i32_2 = arith.constant 0 : i32
    return %c0_i32, %c0_i32_0, %c0_i32_1 : i32, i32, i32
  }
  func.func @transform_6(%arg0: i32, %arg1: i32) -> (i32, i32, i32) {
    %c0_i32 = arith.constant 0 : i32
    %c0_i32_0 = arith.constant 0 : i32
    %c0_i32_1 = arith.constant 0 : i32
    %c0_i32_2 = arith.constant 0 : i32
    return %c0_i32, %c0_i32_0, %c0_i32_1 : i32, i32, i32
  }
  func.func @transform_7(%arg0: i32, %arg1: i32) -> (i32, i32) {
    %c0_i32 = arith.constant 0 : i32
    %c0_i32_0 = arith.constant 0 : i32
    %c0_i32_1 = arith.constant 0 : i32
    return %c0_i32, %c0_i32_0 : i32, i32
  }
  func.func @transform_8(%arg0: i32, %arg1: i32) -> (i32, i32, i32) {
    %c0_i32 = arith.constant 0 : i32
    %c0_i32_0 = arith.constant 0 : i32
    return %arg0, %arg1, %c0_i32 : i32, i32, i32
  }
  func.func @transform_9(%arg0: i32, %arg1: i32) -> (i32, i32, i32, i32) {
    %c0_i32 = arith.constant 0 : i32
    %c0_i32_0 = arith.constant 0 : i32
    %c0_i32_1 = arith.constant 0 : i32
    return %arg0, %c0_i32, %arg1, %c0_i32_0 : i32, i32, i32, i32
  }
}

module attributes {stable_mosaic.version = 11 : i64} {
  func.func @mha_kernel(%arg0: i32, %arg1: i32, %arg2: memref<1x8x32xf32, #tpu.memory_space<vmem>>, %arg3: memref<1x8x32xf32, #tpu.memory_space<vmem>>, %arg4: memref<1x8x32xf32, #tpu.memory_space<vmem>>, %arg5: memref<1x1x8x8xf32, #tpu.memory_space<vmem>>, %arg6: memref<4x32x8xf32, #tpu.memory_space<vmem>>, %arg7: memref<4x32x8xf32, #tpu.memory_space<vmem>>, %arg8: memref<4x32x8xf32, #tpu.memory_space<vmem>>, %arg9: memref<32x32xf32, #tpu.memory_space<vmem>>, %arg10: memref<1x8x32xf32, #tpu.memory_space<vmem>>, %arg11: memref<1x4x8x8xf32, #tpu.memory_space<vmem>>, %arg12: memref<4x8x8xf32, #tpu.memory_space<vmem>>, %arg13: memref<4x8x8xf32, #tpu.memory_space<vmem>>, %arg14: memref<8x32xf32, #tpu.memory_space<vmem>>) attributes {dimension_semantics = [#tpu.dimension_semantics<parallel>, #tpu.dimension_semantics<arbitrary>], iteration_bounds = array<i64: 2, 1>, scalar_prefetch = 0 : i64, scratch_operands = 3 : i64, tpu.core_type = #tpu.core_type<tc>, window_params = [{transform_indices = @transform_0, window_bounds = array<i64: 1, 8, 32>}, {transform_indices = @transform_1, window_bounds = array<i64: 1, 8, 32>}, {transform_indices = @transform_2, window_bounds = array<i64: 1, 8, 32>}, {transform_indices = @transform_3, window_bounds = array<i64: 1, 1, 8, 8>}, {pipeline_mode = #tpu.pipeline_mode<synchronous>, transform_indices = @transform_4, window_bounds = array<i64: 4, 32, 8>}, {pipeline_mode = #tpu.pipeline_mode<synchronous>, transform_indices = @transform_5, window_bounds = array<i64: 4, 32, 8>}, {pipeline_mode = #tpu.pipeline_mode<synchronous>, transform_indices = @transform_6, window_bounds = array<i64: 4, 32, 8>}, {pipeline_mode = #tpu.pipeline_mode<synchronous>, transform_indices = @transform_7, window_bounds = array<i64: 32, 32>}, {transform_indices = @transform_8, window_bounds = array<i64: 1, 8, 32>}, {transform_indices = @transform_9, window_bounds = array<i64: 1, 4, 8, 8>}]} {
    %c0_i32 = arith.constant 0 : i32
    %0 = arith.cmpi eq, %arg1, %c0_i32 : i32
    %1 = arith.extui %0 : i1 to i32
    %c0_i32_0 = arith.constant 0 : i32
    %2 = arith.cmpi ne, %1, %c0_i32_0 : i32
    scf.if %2 {
      %c0_108 = arith.constant 0 : index
      %c0_109 = arith.constant 0 : index
      %c0_110 = arith.constant 0 : index
      %127 = vector.load %arg3[%c0_108, %c0_109, %c0_110] : memref<1x8x32xf32, #tpu.memory_space<vmem>>, vector<1x8x32xf32>
      %128 = vector.shape_cast %127 : vector<1x8x32xf32> to vector<8x32xf32>
      %c0_111 = arith.constant 0 : index
      %c0_112 = arith.constant 0 : index
      %c0_113 = arith.constant 0 : index
      %129 = vector.load %arg4[%c0_111, %c0_112, %c0_113] : memref<1x8x32xf32, #tpu.memory_space<vmem>>, vector<1x8x32xf32>
      %130 = vector.shape_cast %129 : vector<1x8x32xf32> to vector<8x32xf32>
      %c0_114 = arith.constant 0 : index
      %c0_115 = arith.constant 0 : index
      %c0_116 = arith.constant 0 : index
      %131 = vector.load %arg7[%c0_114, %c0_115, %c0_116] : memref<4x32x8xf32, #tpu.memory_space<vmem>>, vector<1x32x8xf32>
      %132 = vector.shape_cast %131 : vector<1x32x8xf32> to vector<32x8xf32>
      %cst_117 = arith.constant dense<0.000000e+00> : vector<8x8xf32>
      %133 = tpu.matmul %128, %132, %cst_117 {dimension_numbers = #tpu.dot_dimension_numbers<[1], [0], [0], [1], [0, 0, 1, 1], [], []>} : vector<8x32xf32>, vector<32x8xf32>, vector<8x8xf32> -> vector<8x8xf32>
      %134 = tpu.transpose %133, [1, 0] : vector<8x8xf32> -> vector<8x8xf32>
      %c0_118 = arith.constant 0 : index
      %c0_119 = arith.constant 0 : index
      %c0_120 = arith.constant 0 : index
      %135 = vector.load %arg12[%c0_118, %c0_119, %c0_120] : memref<4x8x8xf32, #tpu.memory_space<vmem>>, vector<1x8x8xf32>
      %136 = vector.shape_cast %135 : vector<1x8x8xf32> to vector<8x8xf32>
      %137 = vector.shape_cast %134 : vector<8x8xf32> to vector<1x8x8xf32>
      tpu.vector_store %arg12[%c0_118, %c0_119, %c0_120], %137 {strides = array<i32>} : memref<4x8x8xf32, #tpu.memory_space<vmem>>, vector<1x8x8xf32>,
      %c0_121 = arith.constant 0 : index
      %c0_122 = arith.constant 0 : index
      %c0_123 = arith.constant 0 : index
      %138 = vector.load %arg8[%c0_121, %c0_122, %c0_123] : memref<4x32x8xf32, #tpu.memory_space<vmem>>, vector<1x32x8xf32>
      %139 = vector.shape_cast %138 : vector<1x32x8xf32> to vector<32x8xf32>
      %cst_124 = arith.constant dense<0.000000e+00> : vector<8x8xf32>
      %140 = tpu.matmul %130, %139, %cst_124 {dimension_numbers = #tpu.dot_dimension_numbers<[1], [0], [0], [1], [0, 0, 1, 1], [], []>} : vector<8x32xf32>, vector<32x8xf32>, vector<8x8xf32> -> vector<8x8xf32>
      %c0_125 = arith.constant 0 : index
      %c0_126 = arith.constant 0 : index
      %c0_127 = arith.constant 0 : index
      %141 = vector.load %arg13[%c0_125, %c0_126, %c0_127] : memref<4x8x8xf32, #tpu.memory_space<vmem>>, vector<1x8x8xf32>
      %142 = vector.shape_cast %141 : vector<1x8x8xf32> to vector<8x8xf32>
      %143 = vector.shape_cast %140 : vector<8x8xf32> to vector<1x8x8xf32>
      tpu.vector_store %arg13[%c0_125, %c0_126, %c0_127], %143 {strides = array<i32>} : memref<4x8x8xf32, #tpu.memory_space<vmem>>, vector<1x8x8xf32>,
      %c1_128 = arith.constant 1 : index
      %c0_129 = arith.constant 0 : index
      %c0_130 = arith.constant 0 : index
      %144 = vector.load %arg7[%c1_128, %c0_129, %c0_130] : memref<4x32x8xf32, #tpu.memory_space<vmem>>, vector<1x32x8xf32>
      %145 = vector.shape_cast %144 : vector<1x32x8xf32> to vector<32x8xf32>
      %cst_131 = arith.constant dense<0.000000e+00> : vector<8x8xf32>
      %146 = tpu.matmul %128, %145, %cst_131 {dimension_numbers = #tpu.dot_dimension_numbers<[1], [0], [0], [1], [0, 0, 1, 1], [], []>} : vector<8x32xf32>, vector<32x8xf32>, vector<8x8xf32> -> vector<8x8xf32>
      %147 = tpu.transpose %146, [1, 0] : vector<8x8xf32> -> vector<8x8xf32>
      %c1_132 = arith.constant 1 : index
      %c0_133 = arith.constant 0 : index
      %c0_134 = arith.constant 0 : index
      %148 = vector.load %arg12[%c1_132, %c0_133, %c0_134] : memref<4x8x8xf32, #tpu.memory_space<vmem>>, vector<1x8x8xf32>
      %149 = vector.shape_cast %148 : vector<1x8x8xf32> to vector<8x8xf32>
      %150 = vector.shape_cast %147 : vector<8x8xf32> to vector<1x8x8xf32>
      tpu.vector_store %arg12[%c1_132, %c0_133, %c0_134], %150 {strides = array<i32>} : memref<4x8x8xf32, #tpu.memory_space<vmem>>, vector<1x8x8xf32>,
      %c1_135 = arith.constant 1 : index
      %c0_136 = arith.constant 0 : index
      %c0_137 = arith.constant 0 : index
      %151 = vector.load %arg8[%c1_135, %c0_136, %c0_137] : memref<4x32x8xf32, #tpu.memory_space<vmem>>, vector<1x32x8xf32>
      %152 = vector.shape_cast %151 : vector<1x32x8xf32> to vector<32x8xf32>
      %cst_138 = arith.constant dense<0.000000e+00> : vector<8x8xf32>
      %153 = tpu.matmul %130, %152, %cst_138 {dimension_numbers = #tpu.dot_dimension_numbers<[1], [0], [0], [1], [0, 0, 1, 1], [], []>} : vector<8x32xf32>, vector<32x8xf32>, vector<8x8xf32> -> vector<8x8xf32>
      %c1_139 = arith.constant 1 : index
      %c0_140 = arith.constant 0 : index
      %c0_141 = arith.constant 0 : index
      %154 = vector.load %arg13[%c1_139, %c0_140, %c0_141] : memref<4x8x8xf32, #tpu.memory_space<vmem>>, vector<1x8x8xf32>
      %155 = vector.shape_cast %154 : vector<1x8x8xf32> to vector<8x8xf32>
      %156 = vector.shape_cast %153 : vector<8x8xf32> to vector<1x8x8xf32>
      tpu.vector_store %arg13[%c1_139, %c0_140, %c0_141], %156 {strides = array<i32>} : memref<4x8x8xf32, #tpu.memory_space<vmem>>, vector<1x8x8xf32>,
      %c2_142 = arith.constant 2 : index
      %c0_143 = arith.constant 0 : index
      %c0_144 = arith.constant 0 : index
      %157 = vector.load %arg7[%c2_142, %c0_143, %c0_144] : memref<4x32x8xf32, #tpu.memory_space<vmem>>, vector<1x32x8xf32>
      %158 = vector.shape_cast %157 : vector<1x32x8xf32> to vector<32x8xf32>
      %cst_145 = arith.constant dense<0.000000e+00> : vector<8x8xf32>
      %159 = tpu.matmul %128, %158, %cst_145 {dimension_numbers = #tpu.dot_dimension_numbers<[1], [0], [0], [1], [0, 0, 1, 1], [], []>} : vector<8x32xf32>, vector<32x8xf32>, vector<8x8xf32> -> vector<8x8xf32>
      %160 = tpu.transpose %159, [1, 0] : vector<8x8xf32> -> vector<8x8xf32>
      %c2_146 = arith.constant 2 : index
      %c0_147 = arith.constant 0 : index
      %c0_148 = arith.constant 0 : index
      %161 = vector.load %arg12[%c2_146, %c0_147, %c0_148] : memref<4x8x8xf32, #tpu.memory_space<vmem>>, vector<1x8x8xf32>
      %162 = vector.shape_cast %161 : vector<1x8x8xf32> to vector<8x8xf32>
      %163 = vector.shape_cast %160 : vector<8x8xf32> to vector<1x8x8xf32>
      tpu.vector_store %arg12[%c2_146, %c0_147, %c0_148], %163 {strides = array<i32>} : memref<4x8x8xf32, #tpu.memory_space<vmem>>, vector<1x8x8xf32>,
      %c2_149 = arith.constant 2 : index
      %c0_150 = arith.constant 0 : index
      %c0_151 = arith.constant 0 : index
      %164 = vector.load %arg8[%c2_149, %c0_150, %c0_151] : memref<4x32x8xf32, #tpu.memory_space<vmem>>, vector<1x32x8xf32>
      %165 = vector.shape_cast %164 : vector<1x32x8xf32> to vector<32x8xf32>
      %cst_152 = arith.constant dense<0.000000e+00> : vector<8x8xf32>
      %166 = tpu.matmul %130, %165, %cst_152 {dimension_numbers = #tpu.dot_dimension_numbers<[1], [0], [0], [1], [0, 0, 1, 1], [], []>} : vector<8x32xf32>, vector<32x8xf32>, vector<8x8xf32> -> vector<8x8xf32>
      %c2_153 = arith.constant 2 : index
      %c0_154 = arith.constant 0 : index
      %c0_155 = arith.constant 0 : index
      %167 = vector.load %arg13[%c2_153, %c0_154, %c0_155] : memref<4x8x8xf32, #tpu.memory_space<vmem>>, vector<1x8x8xf32>
      %168 = vector.shape_cast %167 : vector<1x8x8xf32> to vector<8x8xf32>
      %169 = vector.shape_cast %166 : vector<8x8xf32> to vector<1x8x8xf32>
      tpu.vector_store %arg13[%c2_153, %c0_154, %c0_155], %169 {strides = array<i32>} : memref<4x8x8xf32, #tpu.memory_space<vmem>>, vector<1x8x8xf32>,
      %c3_156 = arith.constant 3 : index
      %c0_157 = arith.constant 0 : index
      %c0_158 = arith.constant 0 : index
      %170 = vector.load %arg7[%c3_156, %c0_157, %c0_158] : memref<4x32x8xf32, #tpu.memory_space<vmem>>, vector<1x32x8xf32>
      %171 = vector.shape_cast %170 : vector<1x32x8xf32> to vector<32x8xf32>
      %cst_159 = arith.constant dense<0.000000e+00> : vector<8x8xf32>
      %172 = tpu.matmul %128, %171, %cst_159 {dimension_numbers = #tpu.dot_dimension_numbers<[1], [0], [0], [1], [0, 0, 1, 1], [], []>} : vector<8x32xf32>, vector<32x8xf32>, vector<8x8xf32> -> vector<8x8xf32>
      %173 = tpu.transpose %172, [1, 0] : vector<8x8xf32> -> vector<8x8xf32>
      %c3_160 = arith.constant 3 : index
      %c0_161 = arith.constant 0 : index
      %c0_162 = arith.constant 0 : index
      %174 = vector.load %arg12[%c3_160, %c0_161, %c0_162] : memref<4x8x8xf32, #tpu.memory_space<vmem>>, vector<1x8x8xf32>
      %175 = vector.shape_cast %174 : vector<1x8x8xf32> to vector<8x8xf32>
      %176 = vector.shape_cast %173 : vector<8x8xf32> to vector<1x8x8xf32>
      tpu.vector_store %arg12[%c3_160, %c0_161, %c0_162], %176 {strides = array<i32>} : memref<4x8x8xf32, #tpu.memory_space<vmem>>, vector<1x8x8xf32>,
      %c3_163 = arith.constant 3 : index
      %c0_164 = arith.constant 0 : index
      %c0_165 = arith.constant 0 : index
      %177 = vector.load %arg8[%c3_163, %c0_164, %c0_165] : memref<4x32x8xf32, #tpu.memory_space<vmem>>, vector<1x32x8xf32>
      %178 = vector.shape_cast %177 : vector<1x32x8xf32> to vector<32x8xf32>
      %cst_166 = arith.constant dense<0.000000e+00> : vector<8x8xf32>
      %179 = tpu.matmul %130, %178, %cst_166 {dimension_numbers = #tpu.dot_dimension_numbers<[1], [0], [0], [1], [0, 0, 1, 1], [], []>} : vector<8x32xf32>, vector<32x8xf32>, vector<8x8xf32> -> vector<8x8xf32>
      %c3_167 = arith.constant 3 : index
      %c0_168 = arith.constant 0 : index
      %c0_169 = arith.constant 0 : index
      %180 = vector.load %arg13[%c3_167, %c0_168, %c0_169] : memref<4x8x8xf32, #tpu.memory_space<vmem>>, vector<1x8x8xf32>
      %181 = vector.shape_cast %180 : vector<1x8x8xf32> to vector<8x8xf32>
      %182 = vector.shape_cast %179 : vector<8x8xf32> to vector<1x8x8xf32>
      tpu.vector_store %arg13[%c3_167, %c0_168, %c0_169], %182 {strides = array<i32>} : memref<4x8x8xf32, #tpu.memory_space<vmem>>, vector<1x8x8xf32>,
    } else {
    }
    %c0 = arith.constant 0 : index
    %c0_1 = arith.constant 0 : index
    %c0_2 = arith.constant 0 : index
    %3 = vector.load %arg2[%c0, %c0_1, %c0_2] : memref<1x8x32xf32, #tpu.memory_space<vmem>>, vector<1x8x32xf32>
    %4 = vector.shape_cast %3 : vector<1x8x32xf32> to vector<8x32xf32>
    %c0_3 = arith.constant 0 : index
    %c0_4 = arith.constant 0 : index
    %c0_5 = arith.constant 0 : index
    %5 = vector.load %arg6[%c0_3, %c0_4, %c0_5] : memref<4x32x8xf32, #tpu.memory_space<vmem>>, vector<1x32x8xf32>
    %6 = vector.shape_cast %5 : vector<1x32x8xf32> to vector<32x8xf32>
    %cst = arith.constant dense<0.000000e+00> : vector<8x8xf32>
    %7 = tpu.matmul %4, %6, %cst {dimension_numbers = #tpu.dot_dimension_numbers<[1], [0], [0], [1], [0, 0, 1, 1], [], []>} : vector<8x32xf32>, vector<32x8xf32>, vector<8x8xf32> -> vector<8x8xf32>
    %c0_6 = arith.constant 0 : index
    %c0_7 = arith.constant 0 : index
    %c0_8 = arith.constant 0 : index
    %8 = vector.load %arg12[%c0_6, %c0_7, %c0_8] : memref<4x8x8xf32, #tpu.memory_space<vmem>>, vector<1x8x8xf32>
    %9 = vector.shape_cast %8 : vector<1x8x8xf32> to vector<8x8xf32>
    %cst_9 = arith.constant dense<0.000000e+00> : vector<8x8xf32>
    %10 = tpu.matmul %7, %9, %cst_9 {dimension_numbers = #tpu.dot_dimension_numbers<[1], [0], [0], [1], [0, 0, 1, 1], [], []>} : vector<8x8xf32>, vector<8x8xf32>, vector<8x8xf32> -> vector<8x8xf32>
    %c0_10 = arith.constant 0 : index
    %c0_11 = arith.constant 0 : index
    %c0_12 = arith.constant 0 : index
    %c0_13 = arith.constant 0 : index
    %11 = vector.load %arg5[%c0_10, %c0_11, %c0_12, %c0_13] : memref<1x1x8x8xf32, #tpu.memory_space<vmem>>, vector<1x1x8x8xf32>
    %12 = vector.shape_cast %11 : vector<1x1x8x8xf32> to vector<8x8xf32>
    %cst_14 = arith.constant 0.000000e+00 : f32
    %13 = vector.broadcast %cst_14 : f32 to vector<8x8xf32>
    %14 = arith.cmpf oeq, %12, %13 : vector<8x8xf32>
    %cst_15 = arith.constant -1.000000e+09 : f32
    %15 = vector.broadcast %cst_15 : f32 to vector<8x8xf32>
    %16 = arith.select %14, %15, %10 : vector<8x8xi1>, vector<8x8xf32>
    %cst_16 = arith.constant dense<0xFF800000> : vector<8xf32>
    %17 = vector.multi_reduction <maximumf>, %16, %cst_16 [1] : vector<8x8xf32> to vector<8xf32>
    %18 = vector.shape_cast %17 : vector<8xf32> to vector<8x1xf32>
    %19 = vector.broadcast %18 : vector<8x1xf32> to vector<8x8xf32>
    %20 = arith.subf %16, %19 : vector<8x8xf32>
    %21 = math.exp %20 : vector<8x8xf32>
    %cst_17 = arith.constant dense<0.000000e+00> : vector<8xf32>
    %22 = vector.multi_reduction <add>, %21, %cst_17 [1] : vector<8x8xf32> to vector<8xf32>
    %23 = vector.shape_cast %22 : vector<8xf32> to vector<8x1xf32>
    %24 = tpu.reciprocal %23 : vector<8x1xf32> -> vector<8x1xf32>
    %25 = vector.broadcast %24 : vector<8x1xf32> to vector<8x8xf32>
    %26 = arith.mulf %21, %25 : vector<8x8xf32>
    %c0_18 = arith.constant 0 : index
    %c0_19 = arith.constant 0 : index
    %c0_20 = arith.constant 0 : index
    %c0_21 = arith.constant 0 : index
    %27 = vector.load %arg11[%c0_18, %c0_19, %c0_20, %c0_21] : memref<1x4x8x8xf32, #tpu.memory_space<vmem>>, vector<1x1x8x8xf32>
    %28 = vector.shape_cast %27 : vector<1x1x8x8xf32> to vector<8x8xf32>
    %29 = vector.shape_cast %26 : vector<8x8xf32> to vector<1x1x8x8xf32>
    tpu.vector_store %arg11[%c0_18, %c0_19, %c0_20, %c0_21], %29 {strides = array<i32>} : memref<1x4x8x8xf32, #tpu.memory_space<vmem>>, vector<1x1x8x8xf32>,
    %c0_22 = arith.constant 0 : index
    %c0_23 = arith.constant 0 : index
    %c0_24 = arith.constant 0 : index
    %30 = vector.load %arg13[%c0_22, %c0_23, %c0_24] : memref<4x8x8xf32, #tpu.memory_space<vmem>>, vector<1x8x8xf32>
    %31 = vector.shape_cast %30 : vector<1x8x8xf32> to vector<8x8xf32>
    %cst_25 = arith.constant dense<0.000000e+00> : vector<8x8xf32>
    %32 = tpu.matmul %26, %31, %cst_25 {dimension_numbers = #tpu.dot_dimension_numbers<[1], [0], [0], [1], [0, 0, 1, 1], [], []>} : vector<8x8xf32>, vector<8x8xf32>, vector<8x8xf32> -> vector<8x8xf32>
    %c0_26 = arith.constant 0 : index
    %c0_27 = arith.constant 0 : index
    %33 = vector.load %arg14[%c0_26, %c0_27] : memref<8x32xf32, #tpu.memory_space<vmem>>, vector<8x8xf32>
    tpu.vector_store %arg14[%c0_26, %c0_27], %32 {strides = array<i32>} : memref<8x32xf32, #tpu.memory_space<vmem>>, vector<8x8xf32>,
    %c1 = arith.constant 1 : index
    %c0_28 = arith.constant 0 : index
    %c0_29 = arith.constant 0 : index
    %34 = vector.load %arg6[%c1, %c0_28, %c0_29] : memref<4x32x8xf32, #tpu.memory_space<vmem>>, vector<1x32x8xf32>
    %35 = vector.shape_cast %34 : vector<1x32x8xf32> to vector<32x8xf32>
    %cst_30 = arith.constant dense<0.000000e+00> : vector<8x8xf32>
    %36 = tpu.matmul %4, %35, %cst_30 {dimension_numbers = #tpu.dot_dimension_numbers<[1], [0], [0], [1], [0, 0, 1, 1], [], []>} : vector<8x32xf32>, vector<32x8xf32>, vector<8x8xf32> -> vector<8x8xf32>
    %c1_31 = arith.constant 1 : index
    %c0_32 = arith.constant 0 : index
    %c0_33 = arith.constant 0 : index
    %37 = vector.load %arg12[%c1_31, %c0_32, %c0_33] : memref<4x8x8xf32, #tpu.memory_space<vmem>>, vector<1x8x8xf32>
    %38 = vector.shape_cast %37 : vector<1x8x8xf32> to vector<8x8xf32>
    %cst_34 = arith.constant dense<0.000000e+00> : vector<8x8xf32>
    %39 = tpu.matmul %36, %38, %cst_34 {dimension_numbers = #tpu.dot_dimension_numbers<[1], [0], [0], [1], [0, 0, 1, 1], [], []>} : vector<8x8xf32>, vector<8x8xf32>, vector<8x8xf32> -> vector<8x8xf32>
    %c0_35 = arith.constant 0 : index
    %c0_36 = arith.constant 0 : index
    %c0_37 = arith.constant 0 : index
    %c0_38 = arith.constant 0 : index
    %40 = vector.load %arg5[%c0_35, %c0_36, %c0_37, %c0_38] : memref<1x1x8x8xf32, #tpu.memory_space<vmem>>, vector<1x1x8x8xf32>
    %41 = vector.shape_cast %40 : vector<1x1x8x8xf32> to vector<8x8xf32>
    %cst_39 = arith.constant 0.000000e+00 : f32
    %42 = vector.broadcast %cst_39 : f32 to vector<8x8xf32>
    %43 = arith.cmpf oeq, %41, %42 : vector<8x8xf32>
    %cst_40 = arith.constant -1.000000e+09 : f32
    %44 = vector.broadcast %cst_40 : f32 to vector<8x8xf32>
    %45 = arith.select %43, %44, %39 : vector<8x8xi1>, vector<8x8xf32>
    %cst_41 = arith.constant dense<0xFF800000> : vector<8xf32>
    %46 = vector.multi_reduction <maximumf>, %45, %cst_41 [1] : vector<8x8xf32> to vector<8xf32>
    %47 = vector.shape_cast %46 : vector<8xf32> to vector<8x1xf32>
    %48 = vector.broadcast %47 : vector<8x1xf32> to vector<8x8xf32>
    %49 = arith.subf %45, %48 : vector<8x8xf32>
    %50 = math.exp %49 : vector<8x8xf32>
    %cst_42 = arith.constant dense<0.000000e+00> : vector<8xf32>
    %51 = vector.multi_reduction <add>, %50, %cst_42 [1] : vector<8x8xf32> to vector<8xf32>
    %52 = vector.shape_cast %51 : vector<8xf32> to vector<8x1xf32>
    %53 = tpu.reciprocal %52 : vector<8x1xf32> -> vector<8x1xf32>
    %54 = vector.broadcast %53 : vector<8x1xf32> to vector<8x8xf32>
    %55 = arith.mulf %50, %54 : vector<8x8xf32>
    %c0_43 = arith.constant 0 : index
    %c1_44 = arith.constant 1 : index
    %c0_45 = arith.constant 0 : index
    %c0_46 = arith.constant 0 : index
    %56 = vector.load %arg11[%c0_43, %c1_44, %c0_45, %c0_46] : memref<1x4x8x8xf32, #tpu.memory_space<vmem>>, vector<1x1x8x8xf32>
    %57 = vector.shape_cast %56 : vector<1x1x8x8xf32> to vector<8x8xf32>
    %58 = vector.shape_cast %55 : vector<8x8xf32> to vector<1x1x8x8xf32>
    tpu.vector_store %arg11[%c0_43, %c1_44, %c0_45, %c0_46], %58 {strides = array<i32>} : memref<1x4x8x8xf32, #tpu.memory_space<vmem>>, vector<1x1x8x8xf32>,
    %c1_47 = arith.constant 1 : index
    %c0_48 = arith.constant 0 : index
    %c0_49 = arith.constant 0 : index
    %59 = vector.load %arg13[%c1_47, %c0_48, %c0_49] : memref<4x8x8xf32, #tpu.memory_space<vmem>>, vector<1x8x8xf32>
    %60 = vector.shape_cast %59 : vector<1x8x8xf32> to vector<8x8xf32>
    %cst_50 = arith.constant dense<0.000000e+00> : vector<8x8xf32>
    %61 = tpu.matmul %55, %60, %cst_50 {dimension_numbers = #tpu.dot_dimension_numbers<[1], [0], [0], [1], [0, 0, 1, 1], [], []>} : vector<8x8xf32>, vector<8x8xf32>, vector<8x8xf32> -> vector<8x8xf32>
    %c0_51 = arith.constant 0 : index
    %c8 = arith.constant 8 : index
    %62 = vector.load %arg14[%c0_51, %c8] : memref<8x32xf32, #tpu.memory_space<vmem>>, vector<8x8xf32>
    tpu.vector_store %arg14[%c0_51, %c8], %61 {strides = array<i32>} : memref<8x32xf32, #tpu.memory_space<vmem>>, vector<8x8xf32>,
    %c2 = arith.constant 2 : index
    %c0_52 = arith.constant 0 : index
    %c0_53 = arith.constant 0 : index
    %63 = vector.load %arg6[%c2, %c0_52, %c0_53] : memref<4x32x8xf32, #tpu.memory_space<vmem>>, vector<1x32x8xf32>
    %64 = vector.shape_cast %63 : vector<1x32x8xf32> to vector<32x8xf32>
    %cst_54 = arith.constant dense<0.000000e+00> : vector<8x8xf32>
    %65 = tpu.matmul %4, %64, %cst_54 {dimension_numbers = #tpu.dot_dimension_numbers<[1], [0], [0], [1], [0, 0, 1, 1], [], []>} : vector<8x32xf32>, vector<32x8xf32>, vector<8x8xf32> -> vector<8x8xf32>
    %c2_55 = arith.constant 2 : index
    %c0_56 = arith.constant 0 : index
    %c0_57 = arith.constant 0 : index
    %66 = vector.load %arg12[%c2_55, %c0_56, %c0_57] : memref<4x8x8xf32, #tpu.memory_space<vmem>>, vector<1x8x8xf32>
    %67 = vector.shape_cast %66 : vector<1x8x8xf32> to vector<8x8xf32>
    %cst_58 = arith.constant dense<0.000000e+00> : vector<8x8xf32>
    %68 = tpu.matmul %65, %67, %cst_58 {dimension_numbers = #tpu.dot_dimension_numbers<[1], [0], [0], [1], [0, 0, 1, 1], [], []>} : vector<8x8xf32>, vector<8x8xf32>, vector<8x8xf32> -> vector<8x8xf32>
    %c0_59 = arith.constant 0 : index
    %c0_60 = arith.constant 0 : index
    %c0_61 = arith.constant 0 : index
    %c0_62 = arith.constant 0 : index
    %69 = vector.load %arg5[%c0_59, %c0_60, %c0_61, %c0_62] : memref<1x1x8x8xf32, #tpu.memory_space<vmem>>, vector<1x1x8x8xf32>
    %70 = vector.shape_cast %69 : vector<1x1x8x8xf32> to vector<8x8xf32>
    %cst_63 = arith.constant 0.000000e+00 : f32
    %71 = vector.broadcast %cst_63 : f32 to vector<8x8xf32>
    %72 = arith.cmpf oeq, %70, %71 : vector<8x8xf32>
    %cst_64 = arith.constant -1.000000e+09 : f32
    %73 = vector.broadcast %cst_64 : f32 to vector<8x8xf32>
    %74 = arith.select %72, %73, %68 : vector<8x8xi1>, vector<8x8xf32>
    %cst_65 = arith.constant dense<0xFF800000> : vector<8xf32>
    %75 = vector.multi_reduction <maximumf>, %74, %cst_65 [1] : vector<8x8xf32> to vector<8xf32>
    %76 = vector.shape_cast %75 : vector<8xf32> to vector<8x1xf32>
    %77 = vector.broadcast %76 : vector<8x1xf32> to vector<8x8xf32>
    %78 = arith.subf %74, %77 : vector<8x8xf32>
    %79 = math.exp %78 : vector<8x8xf32>
    %cst_66 = arith.constant dense<0.000000e+00> : vector<8xf32>
    %80 = vector.multi_reduction <add>, %79, %cst_66 [1] : vector<8x8xf32> to vector<8xf32>
    %81 = vector.shape_cast %80 : vector<8xf32> to vector<8x1xf32>
    %82 = tpu.reciprocal %81 : vector<8x1xf32> -> vector<8x1xf32>
    %83 = vector.broadcast %82 : vector<8x1xf32> to vector<8x8xf32>
    %84 = arith.mulf %79, %83 : vector<8x8xf32>
    %c0_67 = arith.constant 0 : index
    %c2_68 = arith.constant 2 : index
    %c0_69 = arith.constant 0 : index
    %c0_70 = arith.constant 0 : index
    %85 = vector.load %arg11[%c0_67, %c2_68, %c0_69, %c0_70] : memref<1x4x8x8xf32, #tpu.memory_space<vmem>>, vector<1x1x8x8xf32>
    %86 = vector.shape_cast %85 : vector<1x1x8x8xf32> to vector<8x8xf32>
    %87 = vector.shape_cast %84 : vector<8x8xf32> to vector<1x1x8x8xf32>
    tpu.vector_store %arg11[%c0_67, %c2_68, %c0_69, %c0_70], %87 {strides = array<i32>} : memref<1x4x8x8xf32, #tpu.memory_space<vmem>>, vector<1x1x8x8xf32>,
    %c2_71 = arith.constant 2 : index
    %c0_72 = arith.constant 0 : index
    %c0_73 = arith.constant 0 : index
    %88 = vector.load %arg13[%c2_71, %c0_72, %c0_73] : memref<4x8x8xf32, #tpu.memory_space<vmem>>, vector<1x8x8xf32>
    %89 = vector.shape_cast %88 : vector<1x8x8xf32> to vector<8x8xf32>
    %cst_74 = arith.constant dense<0.000000e+00> : vector<8x8xf32>
    %90 = tpu.matmul %84, %89, %cst_74 {dimension_numbers = #tpu.dot_dimension_numbers<[1], [0], [0], [1], [0, 0, 1, 1], [], []>} : vector<8x8xf32>, vector<8x8xf32>, vector<8x8xf32> -> vector<8x8xf32>
    %c0_75 = arith.constant 0 : index
    %c16 = arith.constant 16 : index
    %91 = vector.load %arg14[%c0_75, %c16] : memref<8x32xf32, #tpu.memory_space<vmem>>, vector<8x8xf32>
    tpu.vector_store %arg14[%c0_75, %c16], %90 {strides = array<i32>} : memref<8x32xf32, #tpu.memory_space<vmem>>, vector<8x8xf32>,
    %c3 = arith.constant 3 : index
    %c0_76 = arith.constant 0 : index
    %c0_77 = arith.constant 0 : index
    %92 = vector.load %arg6[%c3, %c0_76, %c0_77] : memref<4x32x8xf32, #tpu.memory_space<vmem>>, vector<1x32x8xf32>
    %93 = vector.shape_cast %92 : vector<1x32x8xf32> to vector<32x8xf32>
    %cst_78 = arith.constant dense<0.000000e+00> : vector<8x8xf32>
    %94 = tpu.matmul %4, %93, %cst_78 {dimension_numbers = #tpu.dot_dimension_numbers<[1], [0], [0], [1], [0, 0, 1, 1], [], []>} : vector<8x32xf32>, vector<32x8xf32>, vector<8x8xf32> -> vector<8x8xf32>
    %c3_79 = arith.constant 3 : index
    %c0_80 = arith.constant 0 : index
    %c0_81 = arith.constant 0 : index
    %95 = vector.load %arg12[%c3_79, %c0_80, %c0_81] : memref<4x8x8xf32, #tpu.memory_space<vmem>>, vector<1x8x8xf32>
    %96 = vector.shape_cast %95 : vector<1x8x8xf32> to vector<8x8xf32>
    %cst_82 = arith.constant dense<0.000000e+00> : vector<8x8xf32>
    %97 = tpu.matmul %94, %96, %cst_82 {dimension_numbers = #tpu.dot_dimension_numbers<[1], [0], [0], [1], [0, 0, 1, 1], [], []>} : vector<8x8xf32>, vector<8x8xf32>, vector<8x8xf32> -> vector<8x8xf32>
    %c0_83 = arith.constant 0 : index
    %c0_84 = arith.constant 0 : index
    %c0_85 = arith.constant 0 : index
    %c0_86 = arith.constant 0 : index
    %98 = vector.load %arg5[%c0_83, %c0_84, %c0_85, %c0_86] : memref<1x1x8x8xf32, #tpu.memory_space<vmem>>, vector<1x1x8x8xf32>
    %99 = vector.shape_cast %98 : vector<1x1x8x8xf32> to vector<8x8xf32>
    %cst_87 = arith.constant 0.000000e+00 : f32
    %100 = vector.broadcast %cst_87 : f32 to vector<8x8xf32>
    %101 = arith.cmpf oeq, %99, %100 : vector<8x8xf32>
    %cst_88 = arith.constant -1.000000e+09 : f32
    %102 = vector.broadcast %cst_88 : f32 to vector<8x8xf32>
    %103 = arith.select %101, %102, %97 : vector<8x8xi1>, vector<8x8xf32>
    %cst_89 = arith.constant dense<0xFF800000> : vector<8xf32>
    %104 = vector.multi_reduction <maximumf>, %103, %cst_89 [1] : vector<8x8xf32> to vector<8xf32>
    %105 = vector.shape_cast %104 : vector<8xf32> to vector<8x1xf32>
    %106 = vector.broadcast %105 : vector<8x1xf32> to vector<8x8xf32>
    %107 = arith.subf %103, %106 : vector<8x8xf32>
    %108 = math.exp %107 : vector<8x8xf32>
    %cst_90 = arith.constant dense<0.000000e+00> : vector<8xf32>
    %109 = vector.multi_reduction <add>, %108, %cst_90 [1] : vector<8x8xf32> to vector<8xf32>
    %110 = vector.shape_cast %109 : vector<8xf32> to vector<8x1xf32>
    %111 = tpu.reciprocal %110 : vector<8x1xf32> -> vector<8x1xf32>
    %112 = vector.broadcast %111 : vector<8x1xf32> to vector<8x8xf32>
    %113 = arith.mulf %108, %112 : vector<8x8xf32>
    %c0_91 = arith.constant 0 : index
    %c3_92 = arith.constant 3 : index
    %c0_93 = arith.constant 0 : index
    %c0_94 = arith.constant 0 : index
    %114 = vector.load %arg11[%c0_91, %c3_92, %c0_93, %c0_94] : memref<1x4x8x8xf32, #tpu.memory_space<vmem>>, vector<1x1x8x8xf32>
    %115 = vector.shape_cast %114 : vector<1x1x8x8xf32> to vector<8x8xf32>
    %116 = vector.shape_cast %113 : vector<8x8xf32> to vector<1x1x8x8xf32>
    tpu.vector_store %arg11[%c0_91, %c3_92, %c0_93, %c0_94], %116 {strides = array<i32>} : memref<1x4x8x8xf32, #tpu.memory_space<vmem>>, vector<1x1x8x8xf32>,
    %c3_95 = arith.constant 3 : index
    %c0_96 = arith.constant 0 : index
    %c0_97 = arith.constant 0 : index
    %117 = vector.load %arg13[%c3_95, %c0_96, %c0_97] : memref<4x8x8xf32, #tpu.memory_space<vmem>>, vector<1x8x8xf32>
    %118 = vector.shape_cast %117 : vector<1x8x8xf32> to vector<8x8xf32>
    %cst_98 = arith.constant dense<0.000000e+00> : vector<8x8xf32>
    %119 = tpu.matmul %113, %118, %cst_98 {dimension_numbers = #tpu.dot_dimension_numbers<[1], [0], [0], [1], [0, 0, 1, 1], [], []>} : vector<8x8xf32>, vector<8x8xf32>, vector<8x8xf32> -> vector<8x8xf32>
    %c0_99 = arith.constant 0 : index
    %c24 = arith.constant 24 : index
    %120 = vector.load %arg14[%c0_99, %c24] : memref<8x32xf32, #tpu.memory_space<vmem>>, vector<8x8xf32>
    tpu.vector_store %arg14[%c0_99, %c24], %119 {strides = array<i32>} : memref<8x32xf32, #tpu.memory_space<vmem>>, vector<8x8xf32>,
    %c0_100 = arith.constant 0 : index
    %c0_101 = arith.constant 0 : index
    %121 = vector.load %arg14[%c0_100, %c0_101] : memref<8x32xf32, #tpu.memory_space<vmem>>, vector<8x32xf32>
    %c0_102 = arith.constant 0 : index
    %c0_103 = arith.constant 0 : index
    %122 = vector.load %arg9[%c0_102, %c0_103] : memref<32x32xf32, #tpu.memory_space<vmem>>, vector<32x32xf32>
    %cst_104 = arith.constant dense<0.000000e+00> : vector<8x32xf32>
    %123 = tpu.matmul %121, %122, %cst_104 {dimension_numbers = #tpu.dot_dimension_numbers<[1], [0], [0], [1], [0, 0, 1, 1], [], []>} : vector<8x32xf32>, vector<32x32xf32>, vector<8x32xf32> -> vector<8x32xf32>
    %c0_105 = arith.constant 0 : index
    %c0_106 = arith.constant 0 : index
    %c0_107 = arith.constant 0 : index
    %124 = vector.load %arg10[%c0_105, %c0_106, %c0_107] : memref<1x8x32xf32, #tpu.memory_space<vmem>>, vector<1x8x32xf32>
    %125 = vector.shape_cast %124 : vector<1x8x32xf32> to vector<8x32xf32>
    %126 = vector.shape_cast %123 : vector<8x32xf32> to vector<1x8x32xf32>
    tpu.vector_store %arg10[%c0_105, %c0_106, %c0_107], %126 {strides = array<i32>} : memref<1x8x32xf32, #tpu.memory_space<vmem>>, vector<1x8x32xf32>,
    return
  }
  func.func @transform_0(%arg0: i32, %arg1: i32) -> (i32, i32, i32) {
    %c0_i32 = arith.constant 0 : i32
    %c0_i32_0 = arith.constant 0 : i32
    return %arg0, %arg1, %c0_i32 : i32, i32, i32
  }
  func.func @transform_1(%arg0: i32, %arg1: i32) -> (i32, i32, i32) {
    %c0_i32 = arith.constant 0 : i32
    %c0_i32_0 = arith.constant 0 : i32
    %c0_i32_1 = arith.constant 0 : i32
    return %arg0, %c0_i32, %c0_i32_0 : i32, i32, i32
  }
  func.func @transform_2(%arg0: i32, %arg1: i32) -> (i32, i32, i32) {
    %c0_i32 = arith.constant 0 : i32
    %c0_i32_0 = arith.constant 0 : i32
    %c0_i32_1 = arith.constant 0 : i32
    return %arg0, %c0_i32, %c0_i32_0 : i32, i32, i32
  }
  func.func @transform_3(%arg0: i32, %arg1: i32) -> (i32, i32, i32, i32) {
    %c0_i32 = arith.constant 0 : i32
    %c0_i32_0 = arith.constant 0 : i32
    %c0_i32_1 = arith.constant 0 : i32
    return %arg0, %c0_i32, %arg1, %c0_i32_0 : i32, i32, i32, i32
  }
  func.func @transform_4(%arg0: i32, %arg1: i32) -> (i32, i32, i32) {
    %c0_i32 = arith.constant 0 : i32
    %c0_i32_0 = arith.constant 0 : i32
    %c0_i32_1 = arith.constant 0 : i32
    %c0_i32_2 = arith.constant 0 : i32
    return %c0_i32, %c0_i32_0, %c0_i32_1 : i32, i32, i32
  }
  func.func @transform_5(%arg0: i32, %arg1: i32) -> (i32, i32, i32) {
    %c0_i32 = arith.constant 0 : i32
    %c0_i32_0 = arith.constant 0 : i32
    %c0_i32_1 = arith.constant 0 : i32
    %c0_i32_2 = arith.constant 0 : i32
    return %c0_i32, %c0_i32_0, %c0_i32_1 : i32, i32, i32
  }
  func.func @transform_6(%arg0: i32, %arg1: i32) -> (i32, i32, i32) {
    %c0_i32 = arith.constant 0 : i32
    %c0_i32_0 = arith.constant 0 : i32
    %c0_i32_1 = arith.constant 0 : i32
    %c0_i32_2 = arith.constant 0 : i32
    return %c0_i32, %c0_i32_0, %c0_i32_1 : i32, i32, i32
  }
  func.func @transform_7(%arg0: i32, %arg1: i32) -> (i32, i32) {
    %c0_i32 = arith.constant 0 : i32
    %c0_i32_0 = arith.constant 0 : i32
    %c0_i32_1 = arith.constant 0 : i32
    return %c0_i32, %c0_i32_0 : i32, i32
  }
  func.func @transform_8(%arg0: i32, %arg1: i32) -> (i32, i32, i32) {
    %c0_i32 = arith.constant 0 : i32
    %c0_i32_0 = arith.constant 0 : i32
    return %arg0, %arg1, %c0_i32 : i32, i32, i32
  }
  func.func @transform_9(%arg0: i32, %arg1: i32) -> (i32, i32, i32, i32) {
    %c0_i32 = arith.constant 0 : i32
    %c0_i32_0 = arith.constant 0 : i32
    %c0_i32_1 = arith.constant 0 : i32
    return %arg0, %c0_i32, %arg1, %c0_i32_0 : i32, i32, i32, i32
  }
}

</mosaic_0001>

<llo_original>
// kernel: tpu_custom_call.1
$region0: #{tpu_custom_call.1}
  #allocation0 [shape = 'u32[]', space=smem, size = 0x4, offset = 0x4, fixed_abs, tag = 'smem constant byte address 0x4 - core index']
  #allocation1 [shape = 'u32[144,128]{1,0:T(1,128)}', space=vmem, size = 0x12000, scoped, tag = 'internal scratch']
  #allocation2 [shape = 'f32[4,8,8]{2,1,0:T(8,128)}', space=vmem, size = 0x4000, scoped, tag = 'scratch operand']
  #allocation3 [shape = 'f32[4,8,8]{2,1,0:T(8,128)}', space=vmem, size = 0x4000, scoped, tag = 'scratch operand']
  #allocation4 [shape = 'f32[8,32]{1,0:T(8,128)}', space=vmem, size = 0x1000, scoped, tag = 'scratch operand']
  %s0 = inlined_call_operand.vmem [shape: f32[2,8,32], index: 0, kind: input, shape index: {}]
  %s1 = inlined_call_operand.vmem [shape: f32[2,8,32], index: 1, kind: input, shape index: {}]
  %s2 = inlined_call_operand.vmem [shape: f32[2,8,32], index: 2, kind: input, shape index: {}]
  %s3 = inlined_call_operand.vmem [shape: f32[2,1,8,8], index: 3, kind: input, shape index: {}]
  %s4 = inlined_call_operand.vmem [shape: f32[4,32,8], index: 4, kind: input, shape index: {}]
  %s5 = inlined_call_operand.vmem [shape: f32[4,32,8], index: 5, kind: input, shape index: {}]
  %s6 = inlined_call_operand.vmem [shape: f32[4,32,8], index: 6, kind: input, shape index: {}]
  %s7 = inlined_call_operand.vmem [shape: f32[32,32], index: 7, kind: input, shape index: {}]
  %s8 = inlined_call_operand.hbm [shape: f32[2,8,32], index: 8, kind: output, shape index: {0}]
  %s9 = inlined_call_operand.hbm [shape: f32[2,4,8,8], index: 9, kind: output, shape index: {1}]
  %10 = xla_tuple %s8, %s9
  %s11 = sld [smem:[#allocation0]]
  $region77: #{tpu_custom_call.1} parent=0
    _
  %s13 = ssub.s32 1, %s11
  %s14 = scalar_select 0, %s13, %s11
  $region1: #{tpu_custom_call.1} parent=0
    #allocation5 [shape = 'u8[8192]{0}', space=vmem, size = 0x2000, scoped, tag = 'output window, operand 0']
    #allocation6 [shape = 's32[2]{0}', space=sflag, size = 0x8, scoped, tag = 'scoped memory for tpu_custom_call.1']
    #allocation7 [shape = 'u8[32768]{0}', space=vmem, size = 0x8000, scoped, tag = 'output window, operand 1']
    #allocation8 [shape = 's32[2]{0}', space=sflag, size = 0x8, scoped, tag = 'scoped memory for tpu_custom_call.1']
    %15 = vsyncpa [#allocation6], 0
    %s16 = scalar_lea.sflag [#allocation6], 1
    %17 = vsyncpa %s16, 0
    %18 = vsyncpa [#allocation8], 0
    %s19 = scalar_lea.sflag [#allocation8], 1
    %20 = vsyncpa %s19, 0
    loop: start=0, step=1, limit=4
    $region2: #{tpu_custom_call.1} parent=1 // loop_pre_header
      _
    $region3: #{tpu_custom_call.1} parent=1 // loop_header
      %s22 = sphi 0, %s26
      %p23 = scmp.ge.s32.totalorder %s22, 4
      %s29 = sphi 0, %s41
      %s30 = sphi 0, %s37
      %s31 = sphi 0, %s29
      %s32 = sphi 0, %s30
      %s33 = sphi 0, %s31
      %s34 = sphi 0, %s32
      %s46 = sphi 0, %s48
      %s49 = sphi 0, %s46
      %s50 = sphi 0, %s49
      %s66 = sphi 0, %s50
      %s72 = sphi 0, %s74
      %s75 = sphi 0, %s72
      %s76 = sphi 0, %s75
      %s92 = sphi 0, %s76
      %s98 = sphi 0, %s100
      %s101 = sphi 0, %s98
      %s102 = sphi 0, %s101
      %s118 = sphi 0, %s102
      %s126 = sphi 0, %s128
      %s129 = sphi 0, %s126
      %s130 = sphi 0, %s129
      %s146 = sphi 0, %s130
      %s150 = sphi 0, %s150
      %s152 = sphi 0, %s150
      %s153 = sphi 0, %s152
      %s167 = sphi 0, %s153
      %s171 = sphi 0, %s171
      %s173 = sphi 0, %s171
      %s174 = sphi 0, %s173
      %s188 = sphi 0, %s174
      %s192 = sphi 0, %s192
      %s194 = sphi 0, %s192
      %s195 = sphi 0, %s194
      %s209 = sphi 0, %s195
      %s213 = sphi 0, %s213
      %s215 = sphi 0, %s213
      %s216 = sphi 0, %s215
      %s230 = sphi 0, %s216
      %s238 = sphi 0, %s240
      %s241 = sphi 0, %s238
      %s242 = sphi 0, %s241
      %s258 = sphi 0, %s242
      %s266 = sphi 0, %s268
      %s269 = sphi 0, %s266
      %s270 = sphi 0, %s269
      %s286 = sphi 0, %s270
    $region4: #{tpu_custom_call.1} parent=1 // loop_header_branch
      %25 = sbr.rel (%p23) target = $region8
    $region5: #{tpu_custom_call.1} parent=1 // loop_body
      %s27 = ssub.s32 %s22, 1
      %s28 = ssub.s32 %s22, 2
      %s35 = sadd.s32 1, %s30
      %p36 = scmp.ge.s32.totalorder %s35, 1
      %s37 = scalar_select %p36, 0, %s35
      %s38 = sadd.s32 1, %s29
      %s39 = scalar_select %p36, %s38, %s29
      %p40 = scmp.ge.s32.totalorder %s39, 2
      %s41 = scalar_select %p40, 0, %s39
      %s42 = ssub.s32 %s29, %s41
      %s43 = ssub.s32 %s30, %s37
      %s44 = sor.u32 %s42, %s43
      %p45 = scmp.eq.s32.totalorder %s44, 0
      %s47 = sadd.s32 %s46, 1
      %s48 = scalar_select %p45, %s46, %s47
      %p51 = pneg %p45
      %p52 = scmp.eq.s32.totalorder %s22, 1
      %p53 = por %p51, %p52
      %p54 = scmp.ne.s32.totalorder %s46, %s49
      %p55 = scmp.eq.s32.totalorder %s22, 0
      %p56 = por %p54, %p55
      %p57 = scmp.ne.s32.totalorder %s46, %s49
      %p58 = scmp.eq.s32.totalorder %s27, 1
      %p59 = por %p57, %p58
      %p60 = scmp.ne.s32.totalorder %s49, %s50
      %p61 = scmp.eq.s32.totalorder %s27, 0
      %p62 = por %p60, %p61
      %p63 = scmp.ne.s32.totalorder %s49, %s50
      %p64 = scmp.eq.s32.totalorder %s28, 1
      %p65 = por %p63, %p64
      %p67 = scmp.ne.s32.totalorder %s50, %s66
      %p68 = scmp.eq.s32.totalorder %s28, 0
      %p69 = por %p67, %p68
      %s70 = ssub.s32 %s29, %s41
      %p71 = scmp.eq.s32.totalorder %s70, 0
      %s73 = sadd.s32 %s72, 1
      %s74 = scalar_select %p71, %s72, %s73
      %p77 = pneg %p71
      %p78 = scmp.eq.s32.totalorder %s22, 1
      %p79 = por %p77, %p78
      %p80 = scmp.ne.s32.totalorder %s72, %s75
      %p81 = scmp.eq.s32.totalorder %s22, 0
      %p82 = por %p80, %p81
      %p83 = scmp.ne.s32.totalorder %s72, %s75
      %p84 = scmp.eq.s32.totalorder %s27, 1
      %p85 = por %p83, %p84
      %p86 = scmp.ne.s32.totalorder %s75, %s76
      %p87 = scmp.eq.s32.totalorder %s27, 0
      %p88 = por %p86, %p87
      %p89 = scmp.ne.s32.totalorder %s75, %s76
      %p90 = scmp.eq.s32.totalorder %s28, 1
      %p91 = por %p89, %p90
      %p93 = scmp.ne.s32.totalorder %s76, %s92
      %p94 = scmp.eq.s32.totalorder %s28, 0
      %p95 = por %p93, %p94
      %s96 = ssub.s32 %s29, %s41
      %p97 = scmp.eq.s32.totalorder %s96, 0
      %s99 = sadd.s32 %s98, 1
      %s100 = scalar_select %p97, %s98, %s99
      %p103 = pneg %p97
      %p104 = scmp.eq.s32.totalorder %s22, 1
      %p105 = por %p103, %p104
      %p106 = scmp.ne.s32.totalorder %s98, %s101
      %p107 = scmp.eq.s32.totalorder %s22, 0
      %p108 = por %p106, %p107
      %p109 = scmp.ne.s32.totalorder %s98, %s101
      %p110 = scmp.eq.s32.totalorder %s27, 1
      %p111 = por %p109, %p110
      %p112 = scmp.ne.s32.totalorder %s101, %s102
      %p113 = scmp.eq.s32.totalorder %s27, 0
      %p114 = por %p112, %p113
      %p115 = scmp.ne.s32.totalorder %s101, %s102
      %p116 = scmp.eq.s32.totalorder %s28, 1
      %p117 = por %p115, %p116
      %p119 = scmp.ne.s32.totalorder %s102, %s118
      %p120 = scmp.eq.s32.totalorder %s28, 0
      %p121 = por %p119, %p120
      %s122 = ssub.s32 %s29, %s41
      %s123 = ssub.s32 %s30, %s37
      %s124 = sor.u32 %s122, %s123
      %p125 = scmp.eq.s32.totalorder %s124, 0
      %s127 = sadd.s32 %s126, 1
      %s128 = scalar_select %p125, %s126, %s127
      %p131 = pneg %p125
      %p132 = scmp.eq.s32.totalorder %s22, 1
      %p133 = por %p131, %p132
      %p134 = scmp.ne.s32.totalorder %s126, %s129
      %p135 = scmp.eq.s32.totalorder %s22, 0
      %p136 = por %p134, %p135
      %p137 = scmp.ne.s32.totalorder %s126, %s129
      %p138 = scmp.eq.s32.totalorder %s27, 1
      %p139 = por %p137, %p138
      %p140 = scmp.ne.s32.totalorder %s129, %s130
      %p141 = scmp.eq.s32.totalorder %s27, 0
      %p142 = por %p140, %p141
      %p143 = scmp.ne.s32.totalorder %s129, %s130
      %p144 = scmp.eq.s32.totalorder %s28, 1
      %p145 = por %p143, %p144
      %p147 = scmp.ne.s32.totalorder %s130, %s146
      %p148 = scmp.eq.s32.totalorder %s28, 0
      %p149 = por %p147, %p148
      %s151 = sadd.s32 %s150, 1
      %p154 = scmp.eq.s32.totalorder %s22, 1
      %p155 = scmp.ne.s32.totalorder %s150, %s152
      %p156 = scmp.eq.s32.totalorder %s22, 0
      %p157 = por %p155, %p156
      %p158 = scmp.ne.s32.totalorder %s150, %s152
      %p159 = scmp.eq.s32.totalorder %s27, 1
      %p160 = por %p158, %p159
      %p161 = scmp.ne.s32.totalorder %s152, %s153
      %p162 = scmp.eq.s32.totalorder %s27, 0
      %p163 = por %p161, %p162
      %p164 = scmp.ne.s32.totalorder %s152, %s153
      %p165 = scmp.eq.s32.totalorder %s28, 1
      %p166 = por %p164, %p165
      %p168 = scmp.ne.s32.totalorder %s153, %s167
      %p169 = scmp.eq.s32.totalorder %s28, 0
      %p170 = por %p168, %p169
      %s172 = sadd.s32 %s171, 1
      %p175 = scmp.eq.s32.totalorder %s22, 1
      %p176 = scmp.ne.s32.totalorder %s171, %s173
      %p177 = scmp.eq.s32.totalorder %s22, 0
      %p178 = por %p176, %p177
      %p179 = scmp.ne.s32.totalorder %s171, %s173
      %p180 = scmp.eq.s32.totalorder %s27, 1
      %p181 = por %p179, %p180
      %p182 = scmp.ne.s32.totalorder %s173, %s174
      %p183 = scmp.eq.s32.totalorder %s27, 0
      %p184 = por %p182, %p183
      %p185 = scmp.ne.s32.totalorder %s173, %s174
      %p186 = scmp.eq.s32.totalorder %s28, 1
      %p187 = por %p185, %p186
      %p189 = scmp.ne.s32.totalorder %s174, %s188
      %p190 = scmp.eq.s32.totalorder %s28, 0
      %p191 = por %p189, %p190
      %s193 = sadd.s32 %s192, 1
      %p196 = scmp.eq.s32.totalorder %s22, 1
      %p197 = scmp.ne.s32.totalorder %s192, %s194
      %p198 = scmp.eq.s32.totalorder %s22, 0
      %p199 = por %p197, %p198
      %p200 = scmp.ne.s32.totalorder %s192, %s194
      %p201 = scmp.eq.s32.totalorder %s27, 1
      %p202 = por %p200, %p201
      %p203 = scmp.ne.s32.totalorder %s194, %s195
      %p204 = scmp.eq.s32.totalorder %s27, 0
      %p205 = por %p203, %p204
      %p206 = scmp.ne.s32.totalorder %s194, %s195
      %p207 = scmp.eq.s32.totalorder %s28, 1
      %p208 = por %p206, %p207
      %p210 = scmp.ne.s32.totalorder %s195, %s209
      %p211 = scmp.eq.s32.totalorder %s28, 0
      %p212 = por %p210, %p211
      %s214 = sadd.s32 %s213, 1
      %p217 = scmp.eq.s32.totalorder %s22, 1
      %p218 = scmp.ne.s32.totalorder %s213, %s215
      %p219 = scmp.eq.s32.totalorder %s22, 0
      %p220 = por %p218, %p219
      %p221 = scmp.ne.s32.totalorder %s213, %s215
      %p222 = scmp.eq.s32.totalorder %s27, 1
      %p223 = por %p221, %p222
      %p224 = scmp.ne.s32.totalorder %s215, %s216
      %p225 = scmp.eq.s32.totalorder %s27, 0
      %p226 = por %p224, %p225
      %p227 = scmp.ne.s32.totalorder %s215, %s216
      %p228 = scmp.eq.s32.totalorder %s28, 1
      %p229 = por %p227, %p228
      %p231 = scmp.ne.s32.totalorder %s216, %s230
      %p232 = scmp.eq.s32.totalorder %s28, 0
      %p233 = por %p231, %p232
      %s234 = ssub.s32 %s29, %s41
      %s235 = ssub.s32 %s30, %s37
      %s236 = sor.u32 %s234, %s235
      %p237 = scmp.eq.s32.totalorder %s236, 0
      %s239 = sadd.s32 %s238, 1
      %s240 = scalar_select %p237, %s238, %s239
      %p243 = pneg %p237
      %p244 = scmp.eq.s32.totalorder %s22, 1
      %p245 = por %p243, %p244
      %p246 = scmp.ne.s32.totalorder %s238, %s241
      %p247 = scmp.eq.s32.totalorder %s22, 0
      %p248 = por %p246, %p247
      %p249 = scmp.ne.s32.totalorder %s238, %s241
      %p250 = scmp.eq.s32.totalorder %s27, 1
      %p251 = por %p249, %p250
      %p252 = scmp.ne.s32.totalorder %s241, %s242
      %p253 = scmp.eq.s32.totalorder %s27, 0
      %p254 = por %p252, %p253
      %p255 = scmp.ne.s32.totalorder %s241, %s242
      %p256 = scmp.eq.s32.totalorder %s28, 1
      %p257 = por %p255, %p256
      %p259 = scmp.ne.s32.totalorder %s242, %s258
      %p260 = scmp.eq.s32.totalorder %s28, 0
      %p261 = por %p259, %p260
      %s262 = ssub.s32 %s29, %s41
      %s263 = ssub.s32 %s30, %s37
      %s264 = sor.u32 %s262, %s263
      %p265 = scmp.eq.s32.totalorder %s264, 0
      %s267 = sadd.s32 %s266, 1
      %s268 = scalar_select %p265, %s266, %s267
      %p271 = pneg %p265
      %p272 = scmp.eq.s32.totalorder %s22, 1
      %p273 = por %p271, %p272
      %p274 = scmp.ne.s32.totalorder %s266, %s269
      %p275 = scmp.eq.s32.totalorder %s22, 0
      %p276 = por %p274, %p275
      %p277 = scmp.ne.s32.totalorder %s266, %s269
      %p278 = scmp.eq.s32.totalorder %s27, 1
      %p279 = por %p277, %p278
      %p280 = scmp.ne.s32.totalorder %s269, %s270
      %p281 = scmp.eq.s32.totalorder %s27, 0
      %p282 = por %p280, %p281
      %p283 = scmp.ne.s32.totalorder %s269, %s270
      %p284 = scmp.eq.s32.totalorder %s28, 1
      %p285 = por %p283, %p284
      %p287 = scmp.ne.s32.totalorder %s270, %s286
      %p288 = scmp.eq.s32.totalorder %s28, 0
      %p289 = por %p287, %p288
      %p290 = scmp.le.s32.totalorder 1, %s22
      %p291 = scmp.lt.s32.totalorder %s22, 3
      %p292 = pnand %p290, %p291
      %p293 = pneg %p292
      // Predicated region
      $region9: #{tpu_custom_call.1} parent=5 // pred_check
        _
      $region10: #{tpu_custom_call.1} parent=5 // pred_check_branch
        %295 = sbr.rel (%p292) target = $region12
      $region11: #{tpu_custom_call.1} parent=5 // pred_region
        %s296 = ssub.s32 %s22, 1
        // Predicated region
        $region13: #{tpu_custom_call.1} parent=11 // pred_check
          %p297 = pneg %p163
        $region14: #{tpu_custom_call.1} parent=11 // pred_check_branch
          %299 = sbr.rel (%p297) target = $region16
        $region15: #{tpu_custom_call.1} parent=11 // pred_region
          _
        $region16: #{tpu_custom_call.1} parent=11 // pred_fallthru
          _
        // Predicated region
        $region17: #{tpu_custom_call.1} parent=11 // pred_check
          %p300 = pneg %p184
        $region18: #{tpu_custom_call.1} parent=11 // pred_check_branch
          %302 = sbr.rel (%p300) target = $region20
        $region19: #{tpu_custom_call.1} parent=11 // pred_region
          _
        $region20: #{tpu_custom_call.1} parent=11 // pred_fallthru
          _
        // Predicated region
        $region21: #{tpu_custom_call.1} parent=11 // pred_check
          %p303 = pneg %p205
        $region22: #{tpu_custom_call.1} parent=11 // pred_check_branch
          %305 = sbr.rel (%p303) target = $region24
        $region23: #{tpu_custom_call.1} parent=11 // pred_region
          _
        $region24: #{tpu_custom_call.1} parent=11 // pred_fallthru
          _
        // Predicated region
        $region25: #{tpu_custom_call.1} parent=11 // pred_check
          %p306 = pneg %p226
        $region26: #{tpu_custom_call.1} parent=11 // pred_check_branch
          %308 = sbr.rel (%p306) target = $region28
        $region27: #{tpu_custom_call.1} parent=11 // pred_region
          _
        $region28: #{tpu_custom_call.1} parent=11 // pred_fallthru
          _
      $region12: #{tpu_custom_call.1} parent=5 // pred_fallthru
        _
      %p309 = scmp.lt.s32.totalorder %s22, 2
      // Predicated region
      $region29: #{tpu_custom_call.1} parent=5 // pred_check
        %p310 = pneg %p309
      $region30: #{tpu_custom_call.1} parent=5 // pred_check_branch
        %312 = sbr.rel (%p310) target = $region32
      $region31: #{tpu_custom_call.1} parent=5 // pred_region
        // Predicated region
        $region33: #{tpu_custom_call.1} parent=31 // pred_check
          %p313 = pneg %p56
        $region34: #{tpu_custom_call.1} parent=31 // pred_check_branch
          %315 = sbr.rel (%p313) target = $region36
        $region35: #{tpu_custom_call.1} parent=31 // pred_region
          %p316 = scmp.lt.s32.totalorder %s29, 1
          %s317 = scalar_select %p316, %s29, 1
          %p318 = scmp.lt.s32.totalorder %s30, 0
          %s319 = scalar_select %p318, %s30, 0
          %s320 = sadd.s32 %s319, %s317
          %s321 = smul.addr %s320, 8
          %s322 = scalar_lea.vmem %s0, %s321
        $region36: #{tpu_custom_call.1} parent=31 // pred_fallthru
          _
        // Predicated region
        $region37: #{tpu_custom_call.1} parent=31 // pred_check
          %p323 = pneg %p82
        $region38: #{tpu_custom_call.1} parent=31 // pred_check_branch
          %325 = sbr.rel (%p323) target = $region40
        $region39: #{tpu_custom_call.1} parent=31 // pred_region
          %p326 = scmp.lt.s32.totalorder %s29, 1
          %s327 = scalar_select %p326, %s29, 1
          %s328 = smul.addr %s327, 8
          %s329 = scalar_lea.vmem %s1, %s328
        $region40: #{tpu_custom_call.1} parent=31 // pred_fallthru
          _
        // Predicated region
        $region41: #{tpu_custom_call.1} parent=31 // pred_check
          %p330 = pneg %p108
        $region42: #{tpu_custom_call.1} parent=31 // pred_check_branch
          %332 = sbr.rel (%p330) target = $region44
        $region43: #{tpu_custom_call.1} parent=31 // pred_region
          %p333 = scmp.lt.s32.totalorder %s29, 1
          %s334 = scalar_select %p333, %s29, 1
          %s335 = smul.addr %s334, 8
          %s336 = scalar_lea.vmem %s2, %s335
        $region44: #{tpu_custom_call.1} parent=31 // pred_fallthru
          _
        // Predicated region
        $region45: #{tpu_custom_call.1} parent=31 // pred_check
          %p337 = pneg %p136
        $region46: #{tpu_custom_call.1} parent=31 // pred_check_branch
          %339 = sbr.rel (%p337) target = $region48
        $region47: #{tpu_custom_call.1} parent=31 // pred_region
          %p340 = scmp.lt.s32.totalorder %s29, 1
          %s341 = scalar_select %p340, %s29, 1
          %p342 = scmp.lt.s32.totalorder %s30, 0
          %s343 = scalar_select %p342, %s30, 0
          %s344 = sadd.s32 %s343, %s341
          %s345 = smul.addr %s344, 8
          %s346 = scalar_lea.vmem %s3, %s345
        $region48: #{tpu_custom_call.1} parent=31 // pred_fallthru
          _
      $region32: #{tpu_custom_call.1} parent=5 // pred_fallthru
        _
      %p347 = scmp.le.s32.totalorder 1, %s22
      %p348 = scmp.lt.s32.totalorder %s22, 3
      %p349 = pnand %p347, %p348
      %p350 = pneg %p349
      // Predicated region
      $region49: #{tpu_custom_call.1} parent=5 // pred_check
        _
      $region50: #{tpu_custom_call.1} parent=5 // pred_check_branch
        %352 = sbr.rel (%p349) target = $region52
      $region51: #{tpu_custom_call.1} parent=5 // pred_region
        %s353 = ssub.s32 %s22, 1
        %p354 = scmp.lt.s32.totalorder %s31, 1
        %s355 = scalar_select %p354, %s31, 1
        %p356 = scmp.lt.s32.totalorder %s32, 0
        %s357 = scalar_select %p356, %s32, 0
        %s358 = sadd.s32 %s357, %s355
        %s359 = smul.addr %s358, 8
        %s360 = scalar_lea.vmem %s0, %s359
        %p361 = pneg %p62
        %p362 = pneg %p59
        %p363 = scmp.lt.s32.totalorder %s31, 1
        %s364 = scalar_select %p363, %s31, 1
        %s365 = smul.addr %s364, 8
        %s366 = scalar_lea.vmem %s1, %s365
        %p367 = pneg %p88
        %p368 = pneg %p85
        %p369 = scmp.lt.s32.totalorder %s31, 1
        %s370 = scalar_select %p369, %s31, 1
        %s371 = smul.addr %s370, 8
        %s372 = scalar_lea.vmem %s2, %s371
        %p373 = pneg %p114
        %p374 = pneg %p111
        %p375 = scmp.lt.s32.totalorder %s31, 1
        %s376 = scalar_select %p375, %s31, 1
        %p377 = scmp.lt.s32.totalorder %s32, 0
        %s378 = scalar_select %p377, %s32, 0
        %s379 = sadd.s32 %s378, %s376
        %s380 = smul.addr %s379, 8
        %s381 = scalar_lea.vmem %s3, %s380
        %p382 = pneg %p142
        %p383 = pneg %p139
        %p384 = pneg %p163
        %p385 = pneg %p160
        %p386 = pneg %p184
        %p387 = pneg %p181
        %p388 = pneg %p205
        %p389 = pneg %p202
        %p390 = pneg %p226
        %p391 = pneg %p223
        %p392 = pneg %p254
        %p393 = pneg %p251
        %s394 = sand.u32 %s241, 1
        %s395 = scalar_lea.sflag [#allocation6], %s394
        %s396 = sand.u32 %s241, 1
        %s397 = smul.addr %s396, 8
        %s398 = scalar_lea.vmem [#allocation5], %s397
        %p399 = pneg %p282
        %p400 = pneg %p279
        %s401 = sand.u32 %s269, 1
        %s402 = scalar_lea.sflag [#allocation8], %s401
        %s403 = sand.u32 %s269, 1
        %s404 = smul.addr %s403, 32
        %s405 = scalar_lea.vmem [#allocation7], %s404
        %p406 = scmp.lt.s32.totalorder %s31, 1
        %s407 = scalar_select %p406, %s31, 1
        %p408 = scmp.lt.s32.totalorder %s32, 0
        %s409 = scalar_select %p408, %s32, 0
        %s410 = sadd.s32 %s409, %s407
        %s411 = smul.addr %s410, 8
        %s412 = scalar_lea.vmem %s0, %s411
        %p413 = scmp.lt.s32.totalorder %s31, 1
        %s414 = scalar_select %p413, %s31, 1
        %s415 = smul.addr %s414, 8
        %s416 = scalar_lea.vmem %s1, %s415
        %p417 = scmp.lt.s32.totalorder %s31, 1
        %s418 = scalar_select %p417, %s31, 1
        %s419 = smul.addr %s418, 8
        %s420 = scalar_lea.vmem %s2, %s419
        %p421 = scmp.lt.s32.totalorder %s31, 1
        %s422 = scalar_select %p421, %s31, 1
        %p423 = scmp.lt.s32.totalorder %s32, 0
        %s424 = scalar_select %p423, %s32, 0
        %s425 = sadd.s32 %s424, %s422
        %s426 = smul.addr %s425, 8
        %s427 = scalar_lea.vmem %s3, %s426
        %p428 = scmp.eq.s32.totalorder %s32, 0
        // Predicated region
        $region53: #{tpu_custom_call.1} parent=51 // pred_check
          %p429 = pneg %p428
        $region54: #{tpu_custom_call.1} parent=51 // pred_check_branch
          %431 = sbr.rel (%p429) target = $region56
        $region55: #{tpu_custom_call.1} parent=51 // pred_region
          %v432 = vld [vmem:[%s416] sm:$0xff]
          %v433 = vld [vmem:[%s420] sm:$0xff]
          %v434 = vld [vmem:[%s5] sm:$0xff]
          %v435 = vld [vmem:[%s5 + $0x8] sm:$0xff]
          %v436 = vld [vmem:[%s5 + $0x10] sm:$0xff]
          %v437 = vld [vmem:[%s5 + $0x18] sm:$0xff]
          %vm438 = vcmask 261120
          %v440 = vsel %vm438, %v432, 0
          %442 = vmatprep.subr.mxu0 0.0
          %443 = vmatpush1.msra.mxu0 %v434
          %444 = vmatprep.subr.mxu0 0.0
          %445 = vmatpush1.msra.mxu0 %v435
          %446 = vmatprep.subr.mxu0 0.0
          %447 = vmatpush1.msra.mxu0 %v436
          %448 = vmatprep.subr.mxu0 0.0
          %449 = vmatpush1.msra.mxu0 %v437
          %450 = vmatprep.subr.mxu0 0.0
          %451 = vmatpush1.msra.mxu0 0.0
          %452 = vmatprep.subr.mxu0 0.0
          %453 = vmatpush1.msra.mxu0 0.0
          %454 = vmatprep.subr.mxu0 0.0
          %455 = vmatpush1.msra.mxu0 0.0
          %456 = vmatprep.subr.mxu0 0.0
          %457 = vmatpush1.msra.mxu0 0.0
          %458 = vmatprep.subr.mxu0 0.0
          %459 = vmatpush1.msra.mxu0 0.0
          %460 = vmatprep.subr.mxu0 0.0
          %461 = vmatpush1.msra.mxu0 0.0
          %462 = vmatprep.subr.mxu0 0.0
          %463 = vmatpush1.msra.mxu0 0.0
          %464 = vmatprep.subr.mxu0 0.0
          %465 = vmatpush1.msra.mxu0 0.0
          %466 = vmatprep.subr.mxu0 0.0
          %467 = vmatpush1.msra.mxu0 0.0
          %468 = vmatprep.subr.mxu0 0.0
          %469 = vmatpush1.msra.mxu0 0.0
          %470 = vmatprep.subr.mxu0 0.0
          %471 = vmatpush1.msra.mxu0 0.0
          %472 = vmatprep.subr.mxu0 0.0
          %473 = vmatpush1.msra.mxu0 0.0
          %474 = vmatprep.subr.mxu0 0.0
          %475 = vmatpush1.msra.mxu0 0.0
          %476 = vmatprep.subr.mxu0 0.0
          %477 = vmatpush1.msra.mxu0 0.0
          %478 = vmatprep.subr.mxu0 0.0
          %479 = vmatpush1.msra.mxu0 0.0
          %480 = vmatprep.subr.mxu0 0.0
          %481 = vmatpush1.msra.mxu0 0.0
          %482 = vmatprep.subr.mxu0 0.0
          %483 = vmatpush1.msra.mxu0 0.0
          %484 = vmatprep.subr.mxu0 0.0
          %485 = vmatpush1.msra.mxu0 0.0
          %486 = vmatprep.subr.mxu0 0.0
          %487 = vmatpush1.msra.mxu0 0.0
          %488 = vmatprep.subr.mxu0 0.0
          %489 = vmatpush1.msra.mxu0 0.0
          %490 = vmatprep.subr.mxu0 0.0
          %491 = vmatpush1.msra.mxu0 0.0
          %492 = vmatprep.subr.mxu0 0.0
          %493 = vmatpush1.msra.mxu0 0.0
          %494 = vmatprep.subr.mxu0 0.0
          %495 = vmatpush1.msra.mxu0 0.0
          %496 = vmatprep.subr.mxu0 0.0
          %497 = vmatpush1.msra.mxu0 0.0
          %498 = vmatprep.subr.mxu0 0.0
          %499 = vmatpush1.msra.mxu0 0.0
          %500 = vmatprep.subr.mxu0 0.0
          %501 = vmatpush1.msra.mxu0 0.0
          %502 = vmatprep.subr.mxu0 0.0
          %503 = vmatpush1.msra.mxu0 0.0
          %504 = vmatprep.subr.mxu0 0.0
          %505 = vmatpush1.msra.mxu0 0.0
          %506 = vmatprep.mubr.f32.mxu0 0.0
          %507 = vmatmul.mubr.f32.gmra.mrb[0].mxu0 %v440
          %v508 = vpop.f32.mrb[0].mxu0
          %v509 = vadd.f32 0.0, %v508
          %v510 = vpop.f32.mrb[0].mxu0
          %511 = vdwg.mxu0
          %512 = vxpose.xlu0.b32.start [1/16] %v509, 128
          %513 = vxpose.xlu0.b32.cont [2/16] 0.0, 128
          %514 = vxpose.xlu0.b32.cont [3/16] 0.0, 128
          %515 = vxpose.xlu0.b32.cont [4/16] 0.0, 128
          %516 = vxpose.xlu0.b32.cont [5/16] 0.0, 128
          %517 = vxpose.xlu0.b32.cont [6/16] 0.0, 128
          %518 = vxpose.xlu0.b32.cont [7/16] 0.0, 128
          %519 = vxpose.xlu0.b32.cont [8/16] 0.0, 128
          %520 = vxpose.xlu0.b32.cont [9/16] 0.0, 128
          %521 = vxpose.xlu0.b32.cont [10/16] 0.0, 128
          %522 = vxpose.xlu0.b32.cont [11/16] 0.0, 128
          %523 = vxpose.xlu0.b32.cont [12/16] 0.0, 128
          %524 = vxpose.xlu0.b32.cont [13/16] 0.0, 128
          %525 = vxpose.xlu0.b32.cont [14/16] 0.0, 128
          %526 = vxpose.xlu0.b32.cont [15/16] 0.0, 128
          %527 = vxpose.xlu0.b32.end [16/16] 0.0, 128
          %v528 = vpop.trf.xlu0
          %v529 = vpop.trf.xlu0
          %v530 = vpop.trf.xlu0
          %v531 = vpop.trf.xlu0
          %v532 = vpop.trf.xlu0
          %v533 = vpop.trf.xlu0
          %v534 = vpop.trf.xlu0
          %v535 = vpop.trf.xlu0
          %v536 = vpop.trf.xlu0
          %v537 = vpop.trf.xlu0
          %v538 = vpop.trf.xlu0
          %v539 = vpop.trf.xlu0
          %v540 = vpop.trf.xlu0
          %v541 = vpop.trf.xlu0
          %v542 = vpop.trf.xlu0
          %v543 = vpop.trf.xlu0
          %vm544 = vcmask 64512
          %545 = vst.msk [vmem:[#allocation2] sm:$0xff] %vm544, %v528
          %v546 = vld [vmem:[%s6] sm:$0xff]
          %v547 = vld [vmem:[%s6 + $0x8] sm:$0xff]
          %v548 = vld [vmem:[%s6 + $0x10] sm:$0xff]
          %v549 = vld [vmem:[%s6 + $0x18] sm:$0xff]
          %v551 = vsel %vm438, %v433, 0
          %553 = vmatprep.subr.mxu0 0.0
          %554 = vmatpush1.msra.mxu0 %v546
          %555 = vmatprep.subr.mxu0 0.0
          %556 = vmatpush1.msra.mxu0 %v547
          %557 = vmatprep.subr.mxu0 0.0
          %558 = vmatpush1.msra.mxu0 %v548
          %559 = vmatprep.subr.mxu0 0.0
          %560 = vmatpush1.msra.mxu0 %v549
          %561 = vmatprep.subr.mxu0 0.0
          %562 = vmatpush1.msra.mxu0 0.0
          %563 = vmatprep.subr.mxu0 0.0
          %564 = vmatpush1.msra.mxu0 0.0
          %565 = vmatprep.subr.mxu0 0.0
          %566 = vmatpush1.msra.mxu0 0.0
          %567 = vmatprep.subr.mxu0 0.0
          %568 = vmatpush1.msra.mxu0 0.0
          %569 = vmatprep.subr.mxu0 0.0
          %570 = vmatpush1.msra.mxu0 0.0
          %571 = vmatprep.subr.mxu0 0.0
          %572 = vmatpush1.msra.mxu0 0.0
          %573 = vmatprep.subr.mxu0 0.0
          %574 = vmatpush1.msra.mxu0 0.0
          %575 = vmatprep.subr.mxu0 0.0
          %576 = vmatpush1.msra.mxu0 0.0
          %577 = vmatprep.subr.mxu0 0.0
          %578 = vmatpush1.msra.mxu0 0.0
          %579 = vmatprep.subr.mxu0 0.0
          %580 = vmatpush1.msra.mxu0 0.0
          %581 = vmatprep.subr.mxu0 0.0
          %582 = vmatpush1.msra.mxu0 0.0
          %583 = vmatprep.subr.mxu0 0.0
          %584 = vmatpush1.msra.mxu0 0.0
          %585 = vmatprep.subr.mxu0 0.0
          %586 = vmatpush1.msra.mxu0 0.0
          %587 = vmatprep.subr.mxu0 0.0
          %588 = vmatpush1.msra.mxu0 0.0
          %589 = vmatprep.subr.mxu0 0.0
          %590 = vmatpush1.msra.mxu0 0.0
          %591 = vmatprep.subr.mxu0 0.0
          %592 = vmatpush1.msra.mxu0 0.0
          %593 = vmatprep.subr.mxu0 0.0
          %594 = vmatpush1.msra.mxu0 0.0
          %595 = vmatprep.subr.mxu0 0.0
          %596 = vmatpush1.msra.mxu0 0.0
          %597 = vmatprep.subr.mxu0 0.0
          %598 = vmatpush1.msra.mxu0 0.0
          %599 = vmatprep.subr.mxu0 0.0
          %600 = vmatpush1.msra.mxu0 0.0
          %601 = vmatprep.subr.mxu0 0.0
          %602 = vmatpush1.msra.mxu0 0.0
          %603 = vmatprep.subr.mxu0 0.0
          %604 = vmatpush1.msra.mxu0 0.0
          %605 = vmatprep.subr.mxu0 0.0
          %606 = vmatpush1.msra.mxu0 0.0
          %607 = vmatprep.subr.mxu0 0.0
          %608 = vmatpush1.msra.mxu0 0.0
          %609 = vmatprep.subr.mxu0 0.0
          %610 = vmatpush1.msra.mxu0 0.0
          %611 = vmatprep.subr.mxu0 0.0
          %612 = vmatpush1.msra.mxu0 0.0
          %613 = vmatprep.subr.mxu0 0.0
          %614 = vmatpush1.msra.mxu0 0.0
          %615 = vmatprep.subr.mxu0 0.0
          %616 = vmatpush1.msra.mxu0 0.0
          %617 = vmatprep.mubr.f32.mxu0 0.0
          %618 = vmatmul.mubr.f32.gmra.mrb[0].mxu0 %v551
          %v619 = vpop.f32.mrb[0].mxu0
          %v620 = vadd.f32 0.0, %v619
          %v621 = vpop.f32.mrb[0].mxu0
          %622 = vdwg.mxu0
          %623 = vst.msk [vmem:[#allocation3] sm:$0xff] %vm544, %v620
          %s624 = scalar_lea.vmem %s5, 32
          %v625 = vld [vmem:[%s624] sm:$0xff]
          %v626 = vld [vmem:[%s624 + $0x8] sm:$0xff]
          %v627 = vld [vmem:[%s624 + $0x10] sm:$0xff]
          %v628 = vld [vmem:[%s624 + $0x18] sm:$0xff]
          %629 = vmatprep.subr.mxu0 0.0
          %630 = vmatpush1.msra.mxu0 %v625
          %631 = vmatprep.subr.mxu0 0.0
          %632 = vmatpush1.msra.mxu0 %v626
          %633 = vmatprep.subr.mxu0 0.0
          %634 = vmatpush1.msra.mxu0 %v627
          %635 = vmatprep.subr.mxu0 0.0
          %636 = vmatpush1.msra.mxu0 %v628
          %637 = vmatprep.subr.mxu0 0.0
          %638 = vmatpush1.msra.mxu0 0.0
          %639 = vmatprep.subr.mxu0 0.0
          %640 = vmatpush1.msra.mxu0 0.0
          %641 = vmatprep.subr.mxu0 0.0
          %642 = vmatpush1.msra.mxu0 0.0
          %643 = vmatprep.subr.mxu0 0.0
          %644 = vmatpush1.msra.mxu0 0.0
          %645 = vmatprep.subr.mxu0 0.0
          %646 = vmatpush1.msra.mxu0 0.0
          %647 = vmatprep.subr.mxu0 0.0
          %648 = vmatpush1.msra.mxu0 0.0
          %649 = vmatprep.subr.mxu0 0.0
          %650 = vmatpush1.msra.mxu0 0.0
          %651 = vmatprep.subr.mxu0 0.0
          %652 = vmatpush1.msra.mxu0 0.0
          %653 = vmatprep.subr.mxu0 0.0
          %654 = vmatpush1.msra.mxu0 0.0
          %655 = vmatprep.subr.mxu0 0.0
          %656 = vmatpush1.msra.mxu0 0.0
          %657 = vmatprep.subr.mxu0 0.0
          %658 = vmatpush1.msra.mxu0 0.0
          %659 = vmatprep.subr.mxu0 0.0
          %660 = vmatpush1.msra.mxu0 0.0
          %661 = vmatprep.subr.mxu0 0.0
          %662 = vmatpush1.msra.mxu0 0.0
          %663 = vmatprep.subr.mxu0 0.0
          %664 = vmatpush1.msra.mxu0 0.0
          %665 = vmatprep.subr.mxu0 0.0
          %666 = vmatpush1.msra.mxu0 0.0
          %667 = vmatprep.subr.mxu0 0.0
          %668 = vmatpush1.msra.mxu0 0.0
          %669 = vmatprep.subr.mxu0 0.0
          %670 = vmatpush1.msra.mxu0 0.0
          %671 = vmatprep.subr.mxu0 0.0
          %672 = vmatpush1.msra.mxu0 0.0
          %673 = vmatprep.subr.mxu0 0.0
          %674 = vmatpush1.msra.mxu0 0.0
          %675 = vmatprep.subr.mxu0 0.0
          %676 = vmatpush1.msra.mxu0 0.0
          %677 = vmatprep.subr.mxu0 0.0
          %678 = vmatpush1.msra.mxu0 0.0
          %679 = vmatprep.subr.mxu0 0.0
          %680 = vmatpush1.msra.mxu0 0.0
          %681 = vmatprep.subr.mxu0 0.0
          %682 = vmatpush1.msra.mxu0 0.0
          %683 = vmatprep.subr.mxu0 0.0
          %684 = vmatpush1.msra.mxu0 0.0
          %685 = vmatprep.subr.mxu0 0.0
          %686 = vmatpush1.msra.mxu0 0.0
          %687 = vmatprep.subr.mxu0 0.0
          %688 = vmatpush1.msra.mxu0 0.0
          %689 = vmatprep.subr.mxu0 0.0
          %690 = vmatpush1.msra.mxu0 0.0
          %691 = vmatprep.subr.mxu0 0.0
          %692 = vmatpush1.msra.mxu0 0.0
          %693 = vmatprep.mubr.f32.mxu0 0.0
          %694 = vmatmul.mubr.f32.gmra.mrb[0].mxu0 %v440
          %v695 = vpop.f32.mrb[0].mxu0
          %v696 = vadd.f32 0.0, %v695
          %v697 = vpop.f32.mrb[0].mxu0
          %698 = vdwg.mxu0
          %699 = vxpose.xlu0.b32.start [1/16] %v696, 128
          %700 = vxpose.xlu0.b32.cont [2/16] 0.0, 128
          %701 = vxpose.xlu0.b32.cont [3/16] 0.0, 128
          %702 = vxpose.xlu0.b32.cont [4/16] 0.0, 128
          %703 = vxpose.xlu0.b32.cont [5/16] 0.0, 128
          %704 = vxpose.xlu0.b32.cont [6/16] 0.0, 128
          %705 = vxpose.xlu0.b32.cont [7/16] 0.0, 128
          %706 = vxpose.xlu0.b32.cont [8/16] 0.0, 128
          %707 = vxpose.xlu0.b32.cont [9/16] 0.0, 128
          %708 = vxpose.xlu0.b32.cont [10/16] 0.0, 128
          %709 = vxpose.xlu0.b32.cont [11/16] 0.0, 128
          %710 = vxpose.xlu0.b32.cont [12/16] 0.0, 128
          %711 = vxpose.xlu0.b32.cont [13/16] 0.0, 128
          %712 = vxpose.xlu0.b32.cont [14/16] 0.0, 128
          %713 = vxpose.xlu0.b32.cont [15/16] 0.0, 128
          %714 = vxpose.xlu0.b32.end [16/16] 0.0, 128
          %v715 = vpop.trf.xlu0
          %v716 = vpop.trf.xlu0
          %v717 = vpop.trf.xlu0
          %v718 = vpop.trf.xlu0
          %v719 = vpop.trf.xlu0
          %v720 = vpop.trf.xlu0
          %v721 = vpop.trf.xlu0
          %v722 = vpop.trf.xlu0
          %v723 = vpop.trf.xlu0
          %v724 = vpop.trf.xlu0
          %v725 = vpop.trf.xlu0
          %v726 = vpop.trf.xlu0
          %v727 = vpop.trf.xlu0
          %v728 = vpop.trf.xlu0
          %v729 = vpop.trf.xlu0
          %v730 = vpop.trf.xlu0
          %s731 = scalar_lea.vmem [#allocation2], 8
          %732 = vst.msk [vmem:[%s731] sm:$0xff] %vm544, %v715
          %s733 = scalar_lea.vmem %s6, 32
          %v734 = vld [vmem:[%s733] sm:$0xff]
          %v735 = vld [vmem:[%s733 + $0x8] sm:$0xff]
          %v736 = vld [vmem:[%s733 + $0x10] sm:$0xff]
          %v737 = vld [vmem:[%s733 + $0x18] sm:$0xff]
          %738 = vmatprep.subr.mxu0 0.0
          %739 = vmatpush1.msra.mxu0 %v734
          %740 = vmatprep.subr.mxu0 0.0
          %741 = vmatpush1.msra.mxu0 %v735
          %742 = vmatprep.subr.mxu0 0.0
          %743 = vmatpush1.msra.mxu0 %v736
          %744 = vmatprep.subr.mxu0 0.0
          %745 = vmatpush1.msra.mxu0 %v737
          %746 = vmatprep.subr.mxu0 0.0
          %747 = vmatpush1.msra.mxu0 0.0
          %748 = vmatprep.subr.mxu0 0.0
          %749 = vmatpush1.msra.mxu0 0.0
          %750 = vmatprep.subr.mxu0 0.0
          %751 = vmatpush1.msra.mxu0 0.0
          %752 = vmatprep.subr.mxu0 0.0
          %753 = vmatpush1.msra.mxu0 0.0
          %754 = vmatprep.subr.mxu0 0.0
          %755 = vmatpush1.msra.mxu0 0.0
          %756 = vmatprep.subr.mxu0 0.0
          %757 = vmatpush1.msra.mxu0 0.0
          %758 = vmatprep.subr.mxu0 0.0
          %759 = vmatpush1.msra.mxu0 0.0
          %760 = vmatprep.subr.mxu0 0.0
          %761 = vmatpush1.msra.mxu0 0.0
          %762 = vmatprep.subr.mxu0 0.0
          %763 = vmatpush1.msra.mxu0 0.0
          %764 = vmatprep.subr.mxu0 0.0
          %765 = vmatpush1.msra.mxu0 0.0
          %766 = vmatprep.subr.mxu0 0.0
          %767 = vmatpush1.msra.mxu0 0.0
          %768 = vmatprep.subr.mxu0 0.0
          %769 = vmatpush1.msra.mxu0 0.0
          %770 = vmatprep.subr.mxu0 0.0
          %771 = vmatpush1.msra.mxu0 0.0
          %772 = vmatprep.subr.mxu0 0.0
          %773 = vmatpush1.msra.mxu0 0.0
          %774 = vmatprep.subr.mxu0 0.0
          %775 = vmatpush1.msra.mxu0 0.0
          %776 = vmatprep.subr.mxu0 0.0
          %777 = vmatpush1.msra.mxu0 0.0
          %778 = vmatprep.subr.mxu0 0.0
          %779 = vmatpush1.msra.mxu0 0.0
          %780 = vmatprep.subr.mxu0 0.0
          %781 = vmatpush1.msra.mxu0 0.0
          %782 = vmatprep.subr.mxu0 0.0
          %783 = vmatpush1.msra.mxu0 0.0
          %784 = vmatprep.subr.mxu0 0.0
          %785 = vmatpush1.msra.mxu0 0.0
          %786 = vmatprep.subr.mxu0 0.0
          %787 = vmatpush1.msra.mxu0 0.0
          %788 = vmatprep.subr.mxu0 0.0
          %789 = vmatpush1.msra.mxu0 0.0
          %790 = vmatprep.subr.mxu0 0.0
          %791 = vmatpush1.msra.mxu0 0.0
          %792 = vmatprep.subr.mxu0 0.0
          %793 = vmatpush1.msra.mxu0 0.0
          %794 = vmatprep.subr.mxu0 0.0
          %795 = vmatpush1.msra.mxu0 0.0
          %796 = vmatprep.subr.mxu0 0.0
          %797 = vmatpush1.msra.mxu0 0.0
          %798 = vmatprep.subr.mxu0 0.0
          %799 = vmatpush1.msra.mxu0 0.0
          %800 = vmatprep.subr.mxu0 0.0
          %801 = vmatpush1.msra.mxu0 0.0
          %802 = vmatprep.mubr.f32.mxu0 0.0
          %803 = vmatmul.mubr.f32.gmra.mrb[0].mxu0 %v551
          %v804 = vpop.f32.mrb[0].mxu0
          %v805 = vadd.f32 0.0, %v804
          %v806 = vpop.f32.mrb[0].mxu0
          %807 = vdwg.mxu0
          %s808 = scalar_lea.vmem [#allocation3], 8
          %809 = vst.msk [vmem:[%s808] sm:$0xff] %vm544, %v805
          %s810 = scalar_lea.vmem %s5, 64
          %v811 = vld [vmem:[%s810] sm:$0xff]
          %v812 = vld [vmem:[%s810 + $0x8] sm:$0xff]
          %v813 = vld [vmem:[%s810 + $0x10] sm:$0xff]
          %v814 = vld [vmem:[%s810 + $0x18] sm:$0xff]
          %815 = vmatprep.subr.mxu0 0.0
          %816 = vmatpush1.msra.mxu0 %v811
          %817 = vmatprep.subr.mxu0 0.0
          %818 = vmatpush1.msra.mxu0 %v812
          %819 = vmatprep.subr.mxu0 0.0
          %820 = vmatpush1.msra.mxu0 %v813
          %821 = vmatprep.subr.mxu0 0.0
          %822 = vmatpush1.msra.mxu0 %v814
          %823 = vmatprep.subr.mxu0 0.0
          %824 = vmatpush1.msra.mxu0 0.0
          %825 = vmatprep.subr.mxu0 0.0
          %826 = vmatpush1.msra.mxu0 0.0
          %827 = vmatprep.subr.mxu0 0.0
          %828 = vmatpush1.msra.mxu0 0.0
          %829 = vmatprep.subr.mxu0 0.0
          %830 = vmatpush1.msra.mxu0 0.0
          %831 = vmatprep.subr.mxu0 0.0
          %832 = vmatpush1.msra.mxu0 0.0
          %833 = vmatprep.subr.mxu0 0.0
          %834 = vmatpush1.msra.mxu0 0.0
          %835 = vmatprep.subr.mxu0 0.0
          %836 = vmatpush1.msra.mxu0 0.0
          %837 = vmatprep.subr.mxu0 0.0
          %838 = vmatpush1.msra.mxu0 0.0
          %839 = vmatprep.subr.mxu0 0.0
          %840 = vmatpush1.msra.mxu0 0.0
          %841 = vmatprep.subr.mxu0 0.0
          %842 = vmatpush1.msra.mxu0 0.0
          %843 = vmatprep.subr.mxu0 0.0
          %844 = vmatpush1.msra.mxu0 0.0
          %845 = vmatprep.subr.mxu0 0.0
          %846 = vmatpush1.msra.mxu0 0.0
          %847 = vmatprep.subr.mxu0 0.0
          %848 = vmatpush1.msra.mxu0 0.0
          %849 = vmatprep.subr.mxu0 0.0
          %850 = vmatpush1.msra.mxu0 0.0
          %851 = vmatprep.subr.mxu0 0.0
          %852 = vmatpush1.msra.mxu0 0.0
          %853 = vmatprep.subr.mxu0 0.0
          %854 = vmatpush1.msra.mxu0 0.0
          %855 = vmatprep.subr.mxu0 0.0
          %856 = vmatpush1.msra.mxu0 0.0
          %857 = vmatprep.subr.mxu0 0.0
          %858 = vmatpush1.msra.mxu0 0.0
          %859 = vmatprep.subr.mxu0 0.0
          %860 = vmatpush1.msra.mxu0 0.0
          %861 = vmatprep.subr.mxu0 0.0
          %862 = vmatpush1.msra.mxu0 0.0
          %863 = vmatprep.subr.mxu0 0.0
          %864 = vmatpush1.msra.mxu0 0.0
          %865 = vmatprep.subr.mxu0 0.0
          %866 = vmatpush1.msra.mxu0 0.0
          %867 = vmatprep.subr.mxu0 0.0
          %868 = vmatpush1.msra.mxu0 0.0
          %869 = vmatprep.subr.mxu0 0.0
          %870 = vmatpush1.msra.mxu0 0.0
          %871 = vmatprep.subr.mxu0 0.0
          %872 = vmatpush1.msra.mxu0 0.0
          %873 = vmatprep.subr.mxu0 0.0
          %874 = vmatpush1.msra.mxu0 0.0
          %875 = vmatprep.subr.mxu0 0.0
          %876 = vmatpush1.msra.mxu0 0.0
          %877 = vmatprep.subr.mxu0 0.0
          %878 = vmatpush1.msra.mxu0 0.0
          %879 = vmatprep.mubr.f32.mxu0 0.0
          %880 = vmatmul.mubr.f32.gmra.mrb[0].mxu0 %v440
          %v881 = vpop.f32.mrb[0].mxu0
          %v882 = vadd.f32 0.0, %v881
          %v883 = vpop.f32.mrb[0].mxu0
          %884 = vdwg.mxu0
          %885 = vxpose.xlu0.b32.start [1/16] %v882, 128
          %886 = vxpose.xlu0.b32.cont [2/16] 0.0, 128
          %887 = vxpose.xlu0.b32.cont [3/16] 0.0, 128
          %888 = vxpose.xlu0.b32.cont [4/16] 0.0, 128
          %889 = vxpose.xlu0.b32.cont [5/16] 0.0, 128
          %890 = vxpose.xlu0.b32.cont [6/16] 0.0, 128
          %891 = vxpose.xlu0.b32.cont [7/16] 0.0, 128
          %892 = vxpose.xlu0.b32.cont [8/16] 0.0, 128
          %893 = vxpose.xlu0.b32.cont [9/16] 0.0, 128
          %894 = vxpose.xlu0.b32.cont [10/16] 0.0, 128
          %895 = vxpose.xlu0.b32.cont [11/16] 0.0, 128
          %896 = vxpose.xlu0.b32.cont [12/16] 0.0, 128
          %897 = vxpose.xlu0.b32.cont [13/16] 0.0, 128
          %898 = vxpose.xlu0.b32.cont [14/16] 0.0, 128
          %899 = vxpose.xlu0.b32.cont [15/16] 0.0, 128
          %900 = vxpose.xlu0.b32.end [16/16] 0.0, 128
          %v901 = vpop.trf.xlu0
          %v902 = vpop.trf.xlu0
          %v903 = vpop.trf.xlu0
          %v904 = vpop.trf.xlu0
          %v905 = vpop.trf.xlu0
          %v906 = vpop.trf.xlu0
          %v907 = vpop.trf.xlu0
          %v908 = vpop.trf.xlu0
          %v909 = vpop.trf.xlu0
          %v910 = vpop.trf.xlu0
          %v911 = vpop.trf.xlu0
          %v912 = vpop.trf.xlu0
          %v913 = vpop.trf.xlu0
          %v914 = vpop.trf.xlu0
          %v915 = vpop.trf.xlu0
          %v916 = vpop.trf.xlu0
          %s917 = scalar_lea.vmem [#allocation2], 16
          %918 = vst.msk [vmem:[%s917] sm:$0xff] %vm544, %v901
          %s919 = scalar_lea.vmem %s6, 64
          %v920 = vld [vmem:[%s919] sm:$0xff]
          %v921 = vld [vmem:[%s919 + $0x8] sm:$0xff]
          %v922 = vld [vmem:[%s919 + $0x10] sm:$0xff]
          %v923 = vld [vmem:[%s919 + $0x18] sm:$0xff]
          %924 = vmatprep.subr.mxu0 0.0
          %925 = vmatpush1.msra.mxu0 %v920
          %926 = vmatprep.subr.mxu0 0.0
          %927 = vmatpush1.msra.mxu0 %v921
          %928 = vmatprep.subr.mxu0 0.0
          %929 = vmatpush1.msra.mxu0 %v922
          %930 = vmatprep.subr.mxu0 0.0
          %931 = vmatpush1.msra.mxu0 %v923
          %932 = vmatprep.subr.mxu0 0.0
          %933 = vmatpush1.msra.mxu0 0.0
          %934 = vmatprep.subr.mxu0 0.0
          %935 = vmatpush1.msra.mxu0 0.0
          %936 = vmatprep.subr.mxu0 0.0
          %937 = vmatpush1.msra.mxu0 0.0
          %938 = vmatprep.subr.mxu0 0.0
          %939 = vmatpush1.msra.mxu0 0.0
          %940 = vmatprep.subr.mxu0 0.0
          %941 = vmatpush1.msra.mxu0 0.0
          %942 = vmatprep.subr.mxu0 0.0
          %943 = vmatpush1.msra.mxu0 0.0
          %944 = vmatprep.subr.mxu0 0.0
          %945 = vmatpush1.msra.mxu0 0.0
          %946 = vmatprep.subr.mxu0 0.0
          %947 = vmatpush1.msra.mxu0 0.0
          %948 = vmatprep.subr.mxu0 0.0
          %949 = vmatpush1.msra.mxu0 0.0
          %950 = vmatprep.subr.mxu0 0.0
          %951 = vmatpush1.msra.mxu0 0.0
          %952 = vmatprep.subr.mxu0 0.0
          %953 = vmatpush1.msra.mxu0 0.0
          %954 = vmatprep.subr.mxu0 0.0
          %955 = vmatpush1.msra.mxu0 0.0
          %956 = vmatprep.subr.mxu0 0.0
          %957 = vmatpush1.msra.mxu0 0.0
          %958 = vmatprep.subr.mxu0 0.0
          %959 = vmatpush1.msra.mxu0 0.0
          %960 = vmatprep.subr.mxu0 0.0
          %961 = vmatpush1.msra.mxu0 0.0
          %962 = vmatprep.subr.mxu0 0.0
          %963 = vmatpush1.msra.mxu0 0.0
          %964 = vmatprep.subr.mxu0 0.0
          %965 = vmatpush1.msra.mxu0 0.0
          %966 = vmatprep.subr.mxu0 0.0
          %967 = vmatpush1.msra.mxu0 0.0
          %968 = vmatprep.subr.mxu0 0.0
          %969 = vmatpush1.msra.mxu0 0.0
          %970 = vmatprep.subr.mxu0 0.0
          %971 = vmatpush1.msra.mxu0 0.0
          %972 = vmatprep.subr.mxu0 0.0
          %973 = vmatpush1.msra.mxu0 0.0
          %974 = vmatprep.subr.mxu0 0.0
          %975 = vmatpush1.msra.mxu0 0.0
          %976 = vmatprep.subr.mxu0 0.0
          %977 = vmatpush1.msra.mxu0 0.0
          %978 = vmatprep.subr.mxu0 0.0
          %979 = vmatpush1.msra.mxu0 0.0
          %980 = vmatprep.subr.mxu0 0.0
          %981 = vmatpush1.msra.mxu0 0.0
          %982 = vmatprep.subr.mxu0 0.0
          %983 = vmatpush1.msra.mxu0 0.0
          %984 = vmatprep.subr.mxu0 0.0
          %985 = vmatpush1.msra.mxu0 0.0
          %986 = vmatprep.subr.mxu0 0.0
          %987 = vmatpush1.msra.mxu0 0.0
          %988 = vmatprep.mubr.f32.mxu0 0.0
          %989 = vmatmul.mubr.f32.gmra.mrb[0].mxu0 %v551
          %v990 = vpop.f32.mrb[0].mxu0
          %v991 = vadd.f32 0.0, %v990
          %v992 = vpop.f32.mrb[0].mxu0
          %993 = vdwg.mxu0
          %s994 = scalar_lea.vmem [#allocation3], 16
          %995 = vst.msk [vmem:[%s994] sm:$0xff] %vm544, %v991
          %s996 = scalar_lea.vmem %s5, 96
          %v997 = vld [vmem:[%s996] sm:$0xff]
          %v998 = vld [vmem:[%s996 + $0x8] sm:$0xff]
          %v999 = vld [vmem:[%s996 + $0x10] sm:$0xff]
          %v1000 = vld [vmem:[%s996 + $0x18] sm:$0xff]
          %1001 = vmatprep.subr.mxu0 0.0
          %1002 = vmatpush1.msra.mxu0 %v997
          %1003 = vmatprep.subr.mxu0 0.0
          %1004 = vmatpush1.msra.mxu0 %v998
          %1005 = vmatprep.subr.mxu0 0.0
          %1006 = vmatpush1.msra.mxu0 %v999
          %1007 = vmatprep.subr.mxu0 0.0
          %1008 = vmatpush1.msra.mxu0 %v1000
          %1009 = vmatprep.subr.mxu0 0.0
          %1010 = vmatpush1.msra.mxu0 0.0
          %1011 = vmatprep.subr.mxu0 0.0
          %1012 = vmatpush1.msra.mxu0 0.0
          %1013 = vmatprep.subr.mxu0 0.0
          %1014 = vmatpush1.msra.mxu0 0.0
          %1015 = vmatprep.subr.mxu0 0.0
          %1016 = vmatpush1.msra.mxu0 0.0
          %1017 = vmatprep.subr.mxu0 0.0
          %1018 = vmatpush1.msra.mxu0 0.0
          %1019 = vmatprep.subr.mxu0 0.0
          %1020 = vmatpush1.msra.mxu0 0.0
          %1021 = vmatprep.subr.mxu0 0.0
          %1022 = vmatpush1.msra.mxu0 0.0
          %1023 = vmatprep.subr.mxu0 0.0
          %1024 = vmatpush1.msra.mxu0 0.0
          %1025 = vmatprep.subr.mxu0 0.0
          %1026 = vmatpush1.msra.mxu0 0.0
          %1027 = vmatprep.subr.mxu0 0.0
          %1028 = vmatpush1.msra.mxu0 0.0
          %1029 = vmatprep.subr.mxu0 0.0
          %1030 = vmatpush1.msra.mxu0 0.0
          %1031 = vmatprep.subr.mxu0 0.0
          %1032 = vmatpush1.msra.mxu0 0.0
          %1033 = vmatprep.subr.mxu0 0.0
          %1034 = vmatpush1.msra.mxu0 0.0
          %1035 = vmatprep.subr.mxu0 0.0
          %1036 = vmatpush1.msra.mxu0 0.0
          %1037 = vmatprep.subr.mxu0 0.0
          %1038 = vmatpush1.msra.mxu0 0.0
          %1039 = vmatprep.subr.mxu0 0.0
          %1040 = vmatpush1.msra.mxu0 0.0
          %1041 = vmatprep.subr.mxu0 0.0
          %1042 = vmatpush1.msra.mxu0 0.0
          %1043 = vmatprep.subr.mxu0 0.0
          %1044 = vmatpush1.msra.mxu0 0.0
          %1045 = vmatprep.subr.mxu0 0.0
          %1046 = vmatpush1.msra.mxu0 0.0
          %1047 = vmatprep.subr.mxu0 0.0
          %1048 = vmatpush1.msra.mxu0 0.0
          %1049 = vmatprep.subr.mxu0 0.0
          %1050 = vmatpush1.msra.mxu0 0.0
          %1051 = vmatprep.subr.mxu0 0.0
          %1052 = vmatpush1.msra.mxu0 0.0
          %1053 = vmatprep.subr.mxu0 0.0
          %1054 = vmatpush1.msra.mxu0 0.0
          %1055 = vmatprep.subr.mxu0 0.0
          %1056 = vmatpush1.msra.mxu0 0.0
          %1057 = vmatprep.subr.mxu0 0.0
          %1058 = vmatpush1.msra.mxu0 0.0
          %1059 = vmatprep.subr.mxu0 0.0
          %1060 = vmatpush1.msra.mxu0 0.0
          %1061 = vmatprep.subr.mxu0 0.0
          %1062 = vmatpush1.msra.mxu0 0.0
          %1063 = vmatprep.subr.mxu0 0.0
          %1064 = vmatpush1.msra.mxu0 0.0
          %1065 = vmatprep.mubr.f32.mxu0 0.0
          %1066 = vmatmul.mubr.f32.gmra.mrb[0].mxu0 %v440
          %v1067 = vpop.f32.mrb[0].mxu0
          %v1068 = vadd.f32 0.0, %v1067
          %v1069 = vpop.f32.mrb[0].mxu0
          %1070 = vdwg.mxu0
          %1071 = vxpose.xlu0.b32.start [1/16] %v1068, 128
          %1072 = vxpose.xlu0.b32.cont [2/16] 0.0, 128
          %1073 = vxpose.xlu0.b32.cont [3/16] 0.0, 128
          %1074 = vxpose.xlu0.b32.cont [4/16] 0.0, 128
          %1075 = vxpose.xlu0.b32.cont [5/16] 0.0, 128
          %1076 = vxpose.xlu0.b32.cont [6/16] 0.0, 128
          %1077 = vxpose.xlu0.b32.cont [7/16] 0.0, 128
          %1078 = vxpose.xlu0.b32.cont [8/16] 0.0, 128
          %1079 = vxpose.xlu0.b32.cont [9/16] 0.0, 128
          %1080 = vxpose.xlu0.b32.cont [10/16] 0.0, 128
          %1081 = vxpose.xlu0.b32.cont [11/16] 0.0, 128
          %1082 = vxpose.xlu0.b32.cont [12/16] 0.0, 128
          %1083 = vxpose.xlu0.b32.cont [13/16] 0.0, 128
          %1084 = vxpose.xlu0.b32.cont [14/16] 0.0, 128
          %1085 = vxpose.xlu0.b32.cont [15/16] 0.0, 128
          %1086 = vxpose.xlu0.b32.end [16/16] 0.0, 128
          %v1087 = vpop.trf.xlu0
          %v1088 = vpop.trf.xlu0
          %v1089 = vpop.trf.xlu0
          %v1090 = vpop.trf.xlu0
          %v1091 = vpop.trf.xlu0
          %v1092 = vpop.trf.xlu0
          %v1093 = vpop.trf.xlu0
          %v1094 = vpop.trf.xlu0
          %v1095 = vpop.trf.xlu0
          %v1096 = vpop.trf.xlu0
          %v1097 = vpop.trf.xlu0
          %v1098 = vpop.trf.xlu0
          %v1099 = vpop.trf.xlu0
          %v1100 = vpop.trf.xlu0
          %v1101 = vpop.trf.xlu0
          %v1102 = vpop.trf.xlu0
          %s1103 = scalar_lea.vmem [#allocation2], 24
          %1104 = vst.msk [vmem:[%s1103] sm:$0xff] %vm544, %v1087
          %s1105 = scalar_lea.vmem %s6, 96
          %v1106 = vld [vmem:[%s1105] sm:$0xff]
          %v1107 = vld [vmem:[%s1105 + $0x8] sm:$0xff]
          %v1108 = vld [vmem:[%s1105 + $0x10] sm:$0xff]
          %v1109 = vld [vmem:[%s1105 + $0x18] sm:$0xff]
          %1110 = vmatprep.subr.mxu0 0.0
          %1111 = vmatpush1.msra.mxu0 %v1106
          %1112 = vmatprep.subr.mxu0 0.0
          %1113 = vmatpush1.msra.mxu0 %v1107
          %1114 = vmatprep.subr.mxu0 0.0
          %1115 = vmatpush1.msra.mxu0 %v1108
          %1116 = vmatprep.subr.mxu0 0.0
          %1117 = vmatpush1.msra.mxu0 %v1109
          %1118 = vmatprep.subr.mxu0 0.0
          %1119 = vmatpush1.msra.mxu0 0.0
          %1120 = vmatprep.subr.mxu0 0.0
          %1121 = vmatpush1.msra.mxu0 0.0
          %1122 = vmatprep.subr.mxu0 0.0
          %1123 = vmatpush1.msra.mxu0 0.0
          %1124 = vmatprep.subr.mxu0 0.0
          %1125 = vmatpush1.msra.mxu0 0.0
          %1126 = vmatprep.subr.mxu0 0.0
          %1127 = vmatpush1.msra.mxu0 0.0
          %1128 = vmatprep.subr.mxu0 0.0
          %1129 = vmatpush1.msra.mxu0 0.0
          %1130 = vmatprep.subr.mxu0 0.0
          %1131 = vmatpush1.msra.mxu0 0.0
          %1132 = vmatprep.subr.mxu0 0.0
          %1133 = vmatpush1.msra.mxu0 0.0
          %1134 = vmatprep.subr.mxu0 0.0
          %1135 = vmatpush1.msra.mxu0 0.0
          %1136 = vmatprep.subr.mxu0 0.0
          %1137 = vmatpush1.msra.mxu0 0.0
          %1138 = vmatprep.subr.mxu0 0.0
          %1139 = vmatpush1.msra.mxu0 0.0
          %1140 = vmatprep.subr.mxu0 0.0
          %1141 = vmatpush1.msra.mxu0 0.0
          %1142 = vmatprep.subr.mxu0 0.0
          %1143 = vmatpush1.msra.mxu0 0.0
          %1144 = vmatprep.subr.mxu0 0.0
          %1145 = vmatpush1.msra.mxu0 0.0
          %1146 = vmatprep.subr.mxu0 0.0
          %1147 = vmatpush1.msra.mxu0 0.0
          %1148 = vmatprep.subr.mxu0 0.0
          %1149 = vmatpush1.msra.mxu0 0.0
          %1150 = vmatprep.subr.mxu0 0.0
          %1151 = vmatpush1.msra.mxu0 0.0
          %1152 = vmatprep.subr.mxu0 0.0
          %1153 = vmatpush1.msra.mxu0 0.0
          %1154 = vmatprep.subr.mxu0 0.0
          %1155 = vmatpush1.msra.mxu0 0.0
          %1156 = vmatprep.subr.mxu0 0.0
          %1157 = vmatpush1.msra.mxu0 0.0
          %1158 = vmatprep.subr.mxu0 0.0
          %1159 = vmatpush1.msra.mxu0 0.0
          %1160 = vmatprep.subr.mxu0 0.0
          %1161 = vmatpush1.msra.mxu0 0.0
          %1162 = vmatprep.subr.mxu0 0.0
          %1163 = vmatpush1.msra.mxu0 0.0
          %1164 = vmatprep.subr.mxu0 0.0
          %1165 = vmatpush1.msra.mxu0 0.0
          %1166 = vmatprep.subr.mxu0 0.0
          %1167 = vmatpush1.msra.mxu0 0.0
          %1168 = vmatprep.subr.mxu0 0.0
          %1169 = vmatpush1.msra.mxu0 0.0
          %1170 = vmatprep.subr.mxu0 0.0
          %1171 = vmatpush1.msra.mxu0 0.0
          %1172 = vmatprep.subr.mxu0 0.0
          %1173 = vmatpush1.msra.mxu0 0.0
          %1174 = vmatprep.mubr.f32.mxu0 0.0
          %1175 = vmatmul.mubr.f32.gmra.mrb[0].mxu0 %v551
          %v1176 = vpop.f32.mrb[0].mxu0
          %v1177 = vadd.f32 0.0, %v1176
          %v1178 = vpop.f32.mrb[0].mxu0
          %1179 = vdwg.mxu0
          %s1180 = scalar_lea.vmem [#allocation3], 24
          %1181 = vst.msk [vmem:[%s1180] sm:$0xff] %vm544, %v1177
        $region56: #{tpu_custom_call.1} parent=51 // pred_fallthru
          _
        %v1182 = vld [vmem:[%s412] sm:$0xff]
        %v1183 = vld [vmem:[%s4] sm:$0xff]
        %v1184 = vld [vmem:[%s4 + $0x8] sm:$0xff]
        %v1185 = vld [vmem:[%s4 + $0x10] sm:$0xff]
        %v1186 = vld [vmem:[%s4 + $0x18] sm:$0xff]
        %vm1187 = vcmask 261120
        %v1189 = vsel %vm1187, %v1182, 0
        %1191 = vmatprep.subr.mxu0 0.0
        %1192 = vmatpush1.msra.mxu0 %v1183
        %1193 = vmatprep.subr.mxu0 0.0
        %1194 = vmatpush1.msra.mxu0 %v1184
        %1195 = vmatprep.subr.mxu0 0.0
        %1196 = vmatpush1.msra.mxu0 %v1185
        %1197 = vmatprep.subr.mxu0 0.0
        %1198 = vmatpush1.msra.mxu0 %v1186
        %1199 = vmatprep.subr.mxu0 0.0
        %1200 = vmatpush1.msra.mxu0 0.0
        %1201 = vmatprep.subr.mxu0 0.0
        %1202 = vmatpush1.msra.mxu0 0.0
        %1203 = vmatprep.subr.mxu0 0.0
        %1204 = vmatpush1.msra.mxu0 0.0
        %1205 = vmatprep.subr.mxu0 0.0
        %1206 = vmatpush1.msra.mxu0 0.0
        %1207 = vmatprep.subr.mxu0 0.0
        %1208 = vmatpush1.msra.mxu0 0.0
        %1209 = vmatprep.subr.mxu0 0.0
        %1210 = vmatpush1.msra.mxu0 0.0
        %1211 = vmatprep.subr.mxu0 0.0
        %1212 = vmatpush1.msra.mxu0 0.0
        %1213 = vmatprep.subr.mxu0 0.0
        %1214 = vmatpush1.msra.mxu0 0.0
        %1215 = vmatprep.subr.mxu0 0.0
        %1216 = vmatpush1.msra.mxu0 0.0
        %1217 = vmatprep.subr.mxu0 0.0
        %1218 = vmatpush1.msra.mxu0 0.0
        %1219 = vmatprep.subr.mxu0 0.0
        %1220 = vmatpush1.msra.mxu0 0.0
        %1221 = vmatprep.subr.mxu0 0.0
        %1222 = vmatpush1.msra.mxu0 0.0
        %1223 = vmatprep.subr.mxu0 0.0
        %1224 = vmatpush1.msra.mxu0 0.0
        %1225 = vmatprep.subr.mxu0 0.0
        %1226 = vmatpush1.msra.mxu0 0.0
        %1227 = vmatprep.subr.mxu0 0.0
        %1228 = vmatpush1.msra.mxu0 0.0
        %1229 = vmatprep.subr.mxu0 0.0
        %1230 = vmatpush1.msra.mxu0 0.0
        %1231 = vmatprep.subr.mxu0 0.0
        %1232 = vmatpush1.msra.mxu0 0.0
        %1233 = vmatprep.subr.mxu0 0.0
        %1234 = vmatpush1.msra.mxu0 0.0
        %1235 = vmatprep.subr.mxu0 0.0
        %1236 = vmatpush1.msra.mxu0 0.0
        %1237 = vmatprep.subr.mxu0 0.0
        %1238 = vmatpush1.msra.mxu0 0.0
        %1239 = vmatprep.subr.mxu0 0.0
        %1240 = vmatpush1.msra.mxu0 0.0
        %1241 = vmatprep.subr.mxu0 0.0
        %1242 = vmatpush1.msra.mxu0 0.0
        %1243 = vmatprep.subr.mxu0 0.0
        %1244 = vmatpush1.msra.mxu0 0.0
        %1245 = vmatprep.subr.mxu0 0.0
        %1246 = vmatpush1.msra.mxu0 0.0
        %1247 = vmatprep.subr.mxu0 0.0
        %1248 = vmatpush1.msra.mxu0 0.0
        %1249 = vmatprep.subr.mxu0 0.0
        %1250 = vmatpush1.msra.mxu0 0.0
        %1251 = vmatprep.subr.mxu0 0.0
        %1252 = vmatpush1.msra.mxu0 0.0
        %1253 = vmatprep.subr.mxu0 0.0
        %1254 = vmatpush1.msra.mxu0 0.0
        %1255 = vmatprep.mubr.f32.mxu0 0.0
        %1256 = vmatmul.mubr.f32.gmra.mrb[0].mxu0 %v1189
        %v1257 = vpop.f32.mrb[0].mxu0
        %v1258 = vadd.f32 0.0, %v1257
        %v1259 = vpop.f32.mrb[0].mxu0
        %1260 = vdwg.mxu0
        %v1261 = vld [vmem:[#allocation2] sm:$0xff]
        %vm1262 = vcmask 64512
        %v1264 = vsel %vm1262, %v1258, 0
        %1266 = vmatprep.subr.mxu0 0.0
        %1267 = vmatpush1.msra.mxu0 %v1261
        %1268 = vmatprep.subr.mxu0 0.0
        %1269 = vmatpush1.msra.mxu0 0.0
        %1270 = vmatprep.subr.mxu0 0.0
        %1271 = vmatpush1.msra.mxu0 0.0
        %1272 = vmatprep.subr.mxu0 0.0
        %1273 = vmatpush1.msra.mxu0 0.0
        %1274 = vmatprep.subr.mxu0 0.0
        %1275 = vmatpush1.msra.mxu0 0.0
        %1276 = vmatprep.subr.mxu0 0.0
        %1277 = vmatpush1.msra.mxu0 0.0
        %1278 = vmatprep.subr.mxu0 0.0
        %1279 = vmatpush1.msra.mxu0 0.0
        %1280 = vmatprep.subr.mxu0 0.0
        %1281 = vmatpush1.msra.mxu0 0.0
        %1282 = vmatprep.subr.mxu0 0.0
        %1283 = vmatpush1.msra.mxu0 0.0
        %1284 = vmatprep.subr.mxu0 0.0
        %1285 = vmatpush1.msra.mxu0 0.0
        %1286 = vmatprep.subr.mxu0 0.0
        %1287 = vmatpush1.msra.mxu0 0.0
        %1288 = vmatprep.subr.mxu0 0.0
        %1289 = vmatpush1.msra.mxu0 0.0
        %1290 = vmatprep.subr.mxu0 0.0
        %1291 = vmatpush1.msra.mxu0 0.0
        %1292 = vmatprep.subr.mxu0 0.0
        %1293 = vmatpush1.msra.mxu0 0.0
        %1294 = vmatprep.subr.mxu0 0.0
        %1295 = vmatpush1.msra.mxu0 0.0
        %1296 = vmatprep.subr.mxu0 0.0
        %1297 = vmatpush1.msra.mxu0 0.0
        %1298 = vmatprep.subr.mxu0 0.0
        %1299 = vmatpush1.msra.mxu0 0.0
        %1300 = vmatprep.subr.mxu0 0.0
        %1301 = vmatpush1.msra.mxu0 0.0
        %1302 = vmatprep.subr.mxu0 0.0
        %1303 = vmatpush1.msra.mxu0 0.0
        %1304 = vmatprep.subr.mxu0 0.0
        %1305 = vmatpush1.msra.mxu0 0.0
        %1306 = vmatprep.subr.mxu0 0.0
        %1307 = vmatpush1.msra.mxu0 0.0
        %1308 = vmatprep.subr.mxu0 0.0
        %1309 = vmatpush1.msra.mxu0 0.0
        %1310 = vmatprep.subr.mxu0 0.0
        %1311 = vmatpush1.msra.mxu0 0.0
        %1312 = vmatprep.subr.mxu0 0.0
        %1313 = vmatpush1.msra.mxu0 0.0
        %1314 = vmatprep.subr.mxu0 0.0
        %1315 = vmatpush1.msra.mxu0 0.0
        %1316 = vmatprep.subr.mxu0 0.0
        %1317 = vmatpush1.msra.mxu0 0.0
        %1318 = vmatprep.subr.mxu0 0.0
        %1319 = vmatpush1.msra.mxu0 0.0
        %1320 = vmatprep.subr.mxu0 0.0
        %1321 = vmatpush1.msra.mxu0 0.0
        %1322 = vmatprep.subr.mxu0 0.0
        %1323 = vmatpush1.msra.mxu0 0.0
        %1324 = vmatprep.subr.mxu0 0.0
        %1325 = vmatpush1.msra.mxu0 0.0
        %1326 = vmatprep.subr.mxu0 0.0
        %1327 = vmatpush1.msra.mxu0 0.0
        %1328 = vmatprep.subr.mxu0 0.0
        %1329 = vmatpush1.msra.mxu0 0.0
        %1330 = vmatprep.mubr.f32.mxu0 0.0
        %1331 = vmatmul.mubr.f32.gmra.mrb[0].mxu0 %v1264
        %v1332 = vpop.f32.mrb[0].mxu0
        %v1333 = vadd.f32 0.0, %v1332
        %v1334 = vpop.f32.mrb[0].mxu0
        %1335 = vdwg.mxu0
        %v1336 = vld [vmem:[%s427] sm:$0xff]
        %vm1337 = vcmp.eq.f32.partialorder %v1336, 0.0
        %v1338 = vsel %vm1337, -1e+09, %v1333
        %v1339 = vsel %vm1262, %v1338, -inf
        %1340 = vmax.xlane.f32.xlu0 %v1339
        %v1341 = vpop.xlane.xlu0 %1340
        %v1342 = vsub.f32 %v1338, %v1341
        %v1343 = vmul.f32 %v1342, 1.442695
        %v1344 = vpow.pop %v1343
        %v1345 = vsel %vm1262, %v1344, 0.0
        %1346 = vadd.xlane.f32.xlu0 %v1345
        %v1347 = vpop.xlane.xlu0 %1346
        %v1348 = vrcp.pop %v1347
        %v1349 = vmul.f32 %v1344, %v1348
        %1350 = vst.msk [vmem:[%s405] sm:$0xff] %vm1262, %v1349
        %v1351 = vld [vmem:[#allocation3] sm:$0xff]
        %v1353 = vsel %vm1262, %v1349, 0
        %1355 = vmatprep.subr.mxu0 0.0
        %1356 = vmatpush1.msra.mxu0 %v1351
        %1357 = vmatprep.subr.mxu0 0.0
        %1358 = vmatpush1.msra.mxu0 0.0
        %1359 = vmatprep.subr.mxu0 0.0
        %1360 = vmatpush1.msra.mxu0 0.0
        %1361 = vmatprep.subr.mxu0 0.0
        %1362 = vmatpush1.msra.mxu0 0.0
        %1363 = vmatprep.subr.mxu0 0.0
        %1364 = vmatpush1.msra.mxu0 0.0
        %1365 = vmatprep.subr.mxu0 0.0
        %1366 = vmatpush1.msra.mxu0 0.0
        %1367 = vmatprep.subr.mxu0 0.0
        %1368 = vmatpush1.msra.mxu0 0.0
        %1369 = vmatprep.subr.mxu0 0.0
        %1370 = vmatpush1.msra.mxu0 0.0
        %1371 = vmatprep.subr.mxu0 0.0
        %1372 = vmatpush1.msra.mxu0 0.0
        %1373 = vmatprep.subr.mxu0 0.0
        %1374 = vmatpush1.msra.mxu0 0.0
        %1375 = vmatprep.subr.mxu0 0.0
        %1376 = vmatpush1.msra.mxu0 0.0
        %1377 = vmatprep.subr.mxu0 0.0
        %1378 = vmatpush1.msra.mxu0 0.0
        %1379 = vmatprep.subr.mxu0 0.0
        %1380 = vmatpush1.msra.mxu0 0.0
        %1381 = vmatprep.subr.mxu0 0.0
        %1382 = vmatpush1.msra.mxu0 0.0
        %1383 = vmatprep.subr.mxu0 0.0
        %1384 = vmatpush1.msra.mxu0 0.0
        %1385 = vmatprep.subr.mxu0 0.0
        %1386 = vmatpush1.msra.mxu0 0.0
        %1387 = vmatprep.subr.mxu0 0.0
        %1388 = vmatpush1.msra.mxu0 0.0
        %1389 = vmatprep.subr.mxu0 0.0
        %1390 = vmatpush1.msra.mxu0 0.0
        %1391 = vmatprep.subr.mxu0 0.0
        %1392 = vmatpush1.msra.mxu0 0.0
        %1393 = vmatprep.subr.mxu0 0.0
        %1394 = vmatpush1.msra.mxu0 0.0
        %1395 = vmatprep.subr.mxu0 0.0
        %1396 = vmatpush1.msra.mxu0 0.0
        %1397 = vmatprep.subr.mxu0 0.0
        %1398 = vmatpush1.msra.mxu0 0.0
        %1399 = vmatprep.subr.mxu0 0.0
        %1400 = vmatpush1.msra.mxu0 0.0
        %1401 = vmatprep.subr.mxu0 0.0
        %1402 = vmatpush1.msra.mxu0 0.0
        %1403 = vmatprep.subr.mxu0 0.0
        %1404 = vmatpush1.msra.mxu0 0.0
        %1405 = vmatprep.subr.mxu0 0.0
        %1406 = vmatpush1.msra.mxu0 0.0
        %1407 = vmatprep.subr.mxu0 0.0
        %1408 = vmatpush1.msra.mxu0 0.0
        %1409 = vmatprep.subr.mxu0 0.0
        %1410 = vmatpush1.msra.mxu0 0.0
        %1411 = vmatprep.subr.mxu0 0.0
        %1412 = vmatpush1.msra.mxu0 0.0
        %1413 = vmatprep.subr.mxu0 0.0
        %1414 = vmatpush1.msra.mxu0 0.0
        %1415 = vmatprep.subr.mxu0 0.0
        %1416 = vmatpush1.msra.mxu0 0.0
        %1417 = vmatprep.subr.mxu0 0.0
        %1418 = vmatpush1.msra.mxu0 0.0
        %1419 = vmatprep.mubr.f32.mxu0 0.0
        %1420 = vmatmul.mubr.f32.gmra.mrb[0].mxu0 %v1353
        %v1421 = vpop.f32.mrb[0].mxu0
        %v1422 = vadd.f32 0.0, %v1421
        %v1423 = vpop.f32.mrb[0].mxu0
        %1424 = vdwg.mxu0
        %1425 = vst.msk [vmem:[#allocation4] sm:$0xff] %vm1262, %v1422
        %s1426 = scalar_lea.vmem %s4, 32
        %v1427 = vld [vmem:[%s1426] sm:$0xff]
        %v1428 = vld [vmem:[%s1426 + $0x8] sm:$0xff]
        %v1429 = vld [vmem:[%s1426 + $0x10] sm:$0xff]
        %v1430 = vld [vmem:[%s1426 + $0x18] sm:$0xff]
        %1431 = vmatprep.subr.mxu0 0.0
        %1432 = vmatpush1.msra.mxu0 %v1427
        %1433 = vmatprep.subr.mxu0 0.0
        %1434 = vmatpush1.msra.mxu0 %v1428
        %1435 = vmatprep.subr.mxu0 0.0
        %1436 = vmatpush1.msra.mxu0 %v1429
        %1437 = vmatprep.subr.mxu0 0.0
        %1438 = vmatpush1.msra.mxu0 %v1430
        %1439 = vmatprep.subr.mxu0 0.0
        %1440 = vmatpush1.msra.mxu0 0.0
        %1441 = vmatprep.subr.mxu0 0.0
        %1442 = vmatpush1.msra.mxu0 0.0
        %1443 = vmatprep.subr.mxu0 0.0
        %1444 = vmatpush1.msra.mxu0 0.0
        %1445 = vmatprep.subr.mxu0 0.0
        %1446 = vmatpush1.msra.mxu0 0.0
        %1447 = vmatprep.subr.mxu0 0.0
        %1448 = vmatpush1.msra.mxu0 0.0
        %1449 = vmatprep.subr.mxu0 0.0
        %1450 = vmatpush1.msra.mxu0 0.0
        %1451 = vmatprep.subr.mxu0 0.0
        %1452 = vmatpush1.msra.mxu0 0.0
        %1453 = vmatprep.subr.mxu0 0.0
        %1454 = vmatpush1.msra.mxu0 0.0
        %1455 = vmatprep.subr.mxu0 0.0
        %1456 = vmatpush1.msra.mxu0 0.0
        %1457 = vmatprep.subr.mxu0 0.0
        %1458 = vmatpush1.msra.mxu0 0.0
        %1459 = vmatprep.subr.mxu0 0.0
        %1460 = vmatpush1.msra.mxu0 0.0
        %1461 = vmatprep.subr.mxu0 0.0
        %1462 = vmatpush1.msra.mxu0 0.0
        %1463 = vmatprep.subr.mxu0 0.0
        %1464 = vmatpush1.msra.mxu0 0.0
        %1465 = vmatprep.subr.mxu0 0.0
        %1466 = vmatpush1.msra.mxu0 0.0
        %1467 = vmatprep.subr.mxu0 0.0
        %1468 = vmatpush1.msra.mxu0 0.0
        %1469 = vmatprep.subr.mxu0 0.0
        %1470 = vmatpush1.msra.mxu0 0.0
        %1471 = vmatprep.subr.mxu0 0.0
        %1472 = vmatpush1.msra.mxu0 0.0
        %1473 = vmatprep.subr.mxu0 0.0
        %1474 = vmatpush1.msra.mxu0 0.0
        %1475 = vmatprep.subr.mxu0 0.0
        %1476 = vmatpush1.msra.mxu0 0.0
        %1477 = vmatprep.subr.mxu0 0.0
        %1478 = vmatpush1.msra.mxu0 0.0
        %1479 = vmatprep.subr.mxu0 0.0
        %1480 = vmatpush1.msra.mxu0 0.0
        %1481 = vmatprep.subr.mxu0 0.0
        %1482 = vmatpush1.msra.mxu0 0.0
        %1483 = vmatprep.subr.mxu0 0.0
        %1484 = vmatpush1.msra.mxu0 0.0
        %1485 = vmatprep.subr.mxu0 0.0
        %1486 = vmatpush1.msra.mxu0 0.0
        %1487 = vmatprep.subr.mxu0 0.0
        %1488 = vmatpush1.msra.mxu0 0.0
        %1489 = vmatprep.subr.mxu0 0.0
        %1490 = vmatpush1.msra.mxu0 0.0
        %1491 = vmatprep.subr.mxu0 0.0
        %1492 = vmatpush1.msra.mxu0 0.0
        %1493 = vmatprep.subr.mxu0 0.0
        %1494 = vmatpush1.msra.mxu0 0.0
        %1495 = vmatprep.mubr.f32.mxu0 0.0
        %1496 = vmatmul.mubr.f32.gmra.mrb[0].mxu0 %v1189
        %v1497 = vpop.f32.mrb[0].mxu0
        %v1498 = vadd.f32 0.0, %v1497
        %v1499 = vpop.f32.mrb[0].mxu0
        %1500 = vdwg.mxu0
        %s1501 = scalar_lea.vmem [#allocation2], 8
        %v1502 = vld [vmem:[%s1501] sm:$0xff]
        %v1504 = vsel %vm1262, %v1498, 0
        %1506 = vmatprep.subr.mxu0 0.0
        %1507 = vmatpush1.msra.mxu0 %v1502
        %1508 = vmatprep.subr.mxu0 0.0
        %1509 = vmatpush1.msra.mxu0 0.0
        %1510 = vmatprep.subr.mxu0 0.0
        %1511 = vmatpush1.msra.mxu0 0.0
        %1512 = vmatprep.subr.mxu0 0.0
        %1513 = vmatpush1.msra.mxu0 0.0
        %1514 = vmatprep.subr.mxu0 0.0
        %1515 = vmatpush1.msra.mxu0 0.0
        %1516 = vmatprep.subr.mxu0 0.0
        %1517 = vmatpush1.msra.mxu0 0.0
        %1518 = vmatprep.subr.mxu0 0.0
        %1519 = vmatpush1.msra.mxu0 0.0
        %1520 = vmatprep.subr.mxu0 0.0
        %1521 = vmatpush1.msra.mxu0 0.0
        %1522 = vmatprep.subr.mxu0 0.0
        %1523 = vmatpush1.msra.mxu0 0.0
        %1524 = vmatprep.subr.mxu0 0.0
        %1525 = vmatpush1.msra.mxu0 0.0
        %1526 = vmatprep.subr.mxu0 0.0
        %1527 = vmatpush1.msra.mxu0 0.0
        %1528 = vmatprep.subr.mxu0 0.0
        %1529 = vmatpush1.msra.mxu0 0.0
        %1530 = vmatprep.subr.mxu0 0.0
        %1531 = vmatpush1.msra.mxu0 0.0
        %1532 = vmatprep.subr.mxu0 0.0
        %1533 = vmatpush1.msra.mxu0 0.0
        %1534 = vmatprep.subr.mxu0 0.0
        %1535 = vmatpush1.msra.mxu0 0.0
        %1536 = vmatprep.subr.mxu0 0.0
        %1537 = vmatpush1.msra.mxu0 0.0
        %1538 = vmatprep.subr.mxu0 0.0
        %1539 = vmatpush1.msra.mxu0 0.0
        %1540 = vmatprep.subr.mxu0 0.0
        %1541 = vmatpush1.msra.mxu0 0.0
        %1542 = vmatprep.subr.mxu0 0.0
        %1543 = vmatpush1.msra.mxu0 0.0
        %1544 = vmatprep.subr.mxu0 0.0
        %1545 = vmatpush1.msra.mxu0 0.0
        %1546 = vmatprep.subr.mxu0 0.0
        %1547 = vmatpush1.msra.mxu0 0.0
        %1548 = vmatprep.subr.mxu0 0.0
        %1549 = vmatpush1.msra.mxu0 0.0
        %1550 = vmatprep.subr.mxu0 0.0
        %1551 = vmatpush1.msra.mxu0 0.0
        %1552 = vmatprep.subr.mxu0 0.0
        %1553 = vmatpush1.msra.mxu0 0.0
        %1554 = vmatprep.subr.mxu0 0.0
        %1555 = vmatpush1.msra.mxu0 0.0
        %1556 = vmatprep.subr.mxu0 0.0
        %1557 = vmatpush1.msra.mxu0 0.0
        %1558 = vmatprep.subr.mxu0 0.0
        %1559 = vmatpush1.msra.mxu0 0.0
        %1560 = vmatprep.subr.mxu0 0.0
        %1561 = vmatpush1.msra.mxu0 0.0
        %1562 = vmatprep.subr.mxu0 0.0
        %1563 = vmatpush1.msra.mxu0 0.0
        %1564 = vmatprep.subr.mxu0 0.0
        %1565 = vmatpush1.msra.mxu0 0.0
        %1566 = vmatprep.subr.mxu0 0.0
        %1567 = vmatpush1.msra.mxu0 0.0
        %1568 = vmatprep.subr.mxu0 0.0
        %1569 = vmatpush1.msra.mxu0 0.0
        %1570 = vmatprep.mubr.f32.mxu0 0.0
        %1571 = vmatmul.mubr.f32.gmra.mrb[0].mxu0 %v1504
        %v1572 = vpop.f32.mrb[0].mxu0
        %v1573 = vadd.f32 0.0, %v1572
        %v1574 = vpop.f32.mrb[0].mxu0
        %1575 = vdwg.mxu0
        %v1576 = vld [vmem:[%s427] sm:$0xff]
        %vm1577 = vcmp.eq.f32.partialorder %v1576, 0.0
        %v1578 = vsel %vm1577, -1e+09, %v1573
        %v1579 = vsel %vm1262, %v1578, -inf
        %1580 = vmax.xlane.f32.xlu0 %v1579
        %v1581 = vpop.xlane.xlu0 %1580
        %v1582 = vsub.f32 %v1578, %v1581
        %v1583 = vmul.f32 %v1582, 1.442695
        %v1584 = vpow.pop %v1583
        %v1585 = vsel %vm1262, %v1584, 0.0
        %1586 = vadd.xlane.f32.xlu0 %v1585
        %v1587 = vpop.xlane.xlu0 %1586
        %v1588 = vrcp.pop %v1587
        %v1589 = vmul.f32 %v1584, %v1588
        %s1590 = scalar_lea.vmem %s405, 8 [#allocation7]
        %1591 = vst.msk [vmem:[%s1590] sm:$0xff] %vm1262, %v1589
        %s1592 = scalar_lea.vmem [#allocation3], 8
        %v1593 = vld [vmem:[%s1592] sm:$0xff]
        %v1595 = vsel %vm1262, %v1589, 0
        %1597 = vmatprep.subr.mxu0 0.0
        %1598 = vmatpush1.msra.mxu0 %v1593
        %1599 = vmatprep.subr.mxu0 0.0
        %1600 = vmatpush1.msra.mxu0 0.0
        %1601 = vmatprep.subr.mxu0 0.0
        %1602 = vmatpush1.msra.mxu0 0.0
        %1603 = vmatprep.subr.mxu0 0.0
        %1604 = vmatpush1.msra.mxu0 0.0
        %1605 = vmatprep.subr.mxu0 0.0
        %1606 = vmatpush1.msra.mxu0 0.0
        %1607 = vmatprep.subr.mxu0 0.0
        %1608 = vmatpush1.msra.mxu0 0.0
        %1609 = vmatprep.subr.mxu0 0.0
        %1610 = vmatpush1.msra.mxu0 0.0
        %1611 = vmatprep.subr.mxu0 0.0
        %1612 = vmatpush1.msra.mxu0 0.0
        %1613 = vmatprep.subr.mxu0 0.0
        %1614 = vmatpush1.msra.mxu0 0.0
        %1615 = vmatprep.subr.mxu0 0.0
        %1616 = vmatpush1.msra.mxu0 0.0
        %1617 = vmatprep.subr.mxu0 0.0
        %1618 = vmatpush1.msra.mxu0 0.0
        %1619 = vmatprep.subr.mxu0 0.0
        %1620 = vmatpush1.msra.mxu0 0.0
        %1621 = vmatprep.subr.mxu0 0.0
        %1622 = vmatpush1.msra.mxu0 0.0
        %1623 = vmatprep.subr.mxu0 0.0
        %1624 = vmatpush1.msra.mxu0 0.0
        %1625 = vmatprep.subr.mxu0 0.0
        %1626 = vmatpush1.msra.mxu0 0.0
        %1627 = vmatprep.subr.mxu0 0.0
        %1628 = vmatpush1.msra.mxu0 0.0
        %1629 = vmatprep.subr.mxu0 0.0
        %1630 = vmatpush1.msra.mxu0 0.0
        %1631 = vmatprep.subr.mxu0 0.0
        %1632 = vmatpush1.msra.mxu0 0.0
        %1633 = vmatprep.subr.mxu0 0.0
        %1634 = vmatpush1.msra.mxu0 0.0
        %1635 = vmatprep.subr.mxu0 0.0
        %1636 = vmatpush1.msra.mxu0 0.0
        %1637 = vmatprep.subr.mxu0 0.0
        %1638 = vmatpush1.msra.mxu0 0.0
        %1639 = vmatprep.subr.mxu0 0.0
        %1640 = vmatpush1.msra.mxu0 0.0
        %1641 = vmatprep.subr.mxu0 0.0
        %1642 = vmatpush1.msra.mxu0 0.0
        %1643 = vmatprep.subr.mxu0 0.0
        %1644 = vmatpush1.msra.mxu0 0.0
        %1645 = vmatprep.subr.mxu0 0.0
        %1646 = vmatpush1.msra.mxu0 0.0
        %1647 = vmatprep.subr.mxu0 0.0
        %1648 = vmatpush1.msra.mxu0 0.0
        %1649 = vmatprep.subr.mxu0 0.0
        %1650 = vmatpush1.msra.mxu0 0.0
        %1651 = vmatprep.subr.mxu0 0.0
        %1652 = vmatpush1.msra.mxu0 0.0
        %1653 = vmatprep.subr.mxu0 0.0
        %1654 = vmatpush1.msra.mxu0 0.0
        %1655 = vmatprep.subr.mxu0 0.0
        %1656 = vmatpush1.msra.mxu0 0.0
        %1657 = vmatprep.subr.mxu0 0.0
        %1658 = vmatpush1.msra.mxu0 0.0
        %1659 = vmatprep.subr.mxu0 0.0
        %1660 = vmatpush1.msra.mxu0 0.0
        %1661 = vmatprep.mubr.f32.mxu0 0.0
        %1662 = vmatmul.mubr.f32.gmra.mrb[0].mxu0 %v1595
        %v1663 = vpop.f32.mrb[0].mxu0
        %v1664 = vadd.f32 0.0, %v1663
        %v1665 = vpop.f32.mrb[0].mxu0
        %1666 = vdwg.mxu0
        %1668 = vrot.lane.b32.xlu0 %v1664, 8
        %v1669 = vpop.permute.xlu0 %1668
        %vm1671 = vcmask 130112
        %1672 = vst.msk [vmem:[#allocation4] sm:$0xff] %vm1671, %v1669
        %s1673 = scalar_lea.vmem %s4, 64
        %v1674 = vld [vmem:[%s1673] sm:$0xff]
        %v1675 = vld [vmem:[%s1673 + $0x8] sm:$0xff]
        %v1676 = vld [vmem:[%s1673 + $0x10] sm:$0xff]
        %v1677 = vld [vmem:[%s1673 + $0x18] sm:$0xff]
        %1678 = vmatprep.subr.mxu0 0.0
        %1679 = vmatpush1.msra.mxu0 %v1674
        %1680 = vmatprep.subr.mxu0 0.0
        %1681 = vmatpush1.msra.mxu0 %v1675
        %1682 = vmatprep.subr.mxu0 0.0
        %1683 = vmatpush1.msra.mxu0 %v1676
        %1684 = vmatprep.subr.mxu0 0.0
        %1685 = vmatpush1.msra.mxu0 %v1677
        %1686 = vmatprep.subr.mxu0 0.0
        %1687 = vmatpush1.msra.mxu0 0.0
        %1688 = vmatprep.subr.mxu0 0.0
        %1689 = vmatpush1.msra.mxu0 0.0
        %1690 = vmatprep.subr.mxu0 0.0
        %1691 = vmatpush1.msra.mxu0 0.0
        %1692 = vmatprep.subr.mxu0 0.0
        %1693 = vmatpush1.msra.mxu0 0.0
        %1694 = vmatprep.subr.mxu0 0.0
        %1695 = vmatpush1.msra.mxu0 0.0
        %1696 = vmatprep.subr.mxu0 0.0
        %1697 = vmatpush1.msra.mxu0 0.0
        %1698 = vmatprep.subr.mxu0 0.0
        %1699 = vmatpush1.msra.mxu0 0.0
        %1700 = vmatprep.subr.mxu0 0.0
        %1701 = vmatpush1.msra.mxu0 0.0
        %1702 = vmatprep.subr.mxu0 0.0
        %1703 = vmatpush1.msra.mxu0 0.0
        %1704 = vmatprep.subr.mxu0 0.0
        %1705 = vmatpush1.msra.mxu0 0.0
        %1706 = vmatprep.subr.mxu0 0.0
        %1707 = vmatpush1.msra.mxu0 0.0
        %1708 = vmatprep.subr.mxu0 0.0
        %1709 = vmatpush1.msra.mxu0 0.0
        %1710 = vmatprep.subr.mxu0 0.0
        %1711 = vmatpush1.msra.mxu0 0.0
        %1712 = vmatprep.subr.mxu0 0.0
        %1713 = vmatpush1.msra.mxu0 0.0
        %1714 = vmatprep.subr.mxu0 0.0
        %1715 = vmatpush1.msra.mxu0 0.0
        %1716 = vmatprep.subr.mxu0 0.0
        %1717 = vmatpush1.msra.mxu0 0.0
        %1718 = vmatprep.subr.mxu0 0.0
        %1719 = vmatpush1.msra.mxu0 0.0
        %1720 = vmatprep.subr.mxu0 0.0
        %1721 = vmatpush1.msra.mxu0 0.0
        %1722 = vmatprep.subr.mxu0 0.0
        %1723 = vmatpush1.msra.mxu0 0.0
        %1724 = vmatprep.subr.mxu0 0.0
        %1725 = vmatpush1.msra.mxu0 0.0
        %1726 = vmatprep.subr.mxu0 0.0
        %1727 = vmatpush1.msra.mxu0 0.0
        %1728 = vmatprep.subr.mxu0 0.0
        %1729 = vmatpush1.msra.mxu0 0.0
        %1730 = vmatprep.subr.mxu0 0.0
        %1731 = vmatpush1.msra.mxu0 0.0
        %1732 = vmatprep.subr.mxu0 0.0
        %1733 = vmatpush1.msra.mxu0 0.0
        %1734 = vmatprep.subr.mxu0 0.0
        %1735 = vmatpush1.msra.mxu0 0.0
        %1736 = vmatprep.subr.mxu0 0.0
        %1737 = vmatpush1.msra.mxu0 0.0
        %1738 = vmatprep.subr.mxu0 0.0
        %1739 = vmatpush1.msra.mxu0 0.0
        %1740 = vmatprep.subr.mxu0 0.0
        %1741 = vmatpush1.msra.mxu0 0.0
        %1742 = vmatprep.mubr.f32.mxu0 0.0
        %1743 = vmatmul.mubr.f32.gmra.mrb[0].mxu0 %v1189
        %v1744 = vpop.f32.mrb[0].mxu0
        %v1745 = vadd.f32 0.0, %v1744
        %v1746 = vpop.f32.mrb[0].mxu0
        %1747 = vdwg.mxu0
        %s1748 = scalar_lea.vmem [#allocation2], 16
        %v1749 = vld [vmem:[%s1748] sm:$0xff]
        %v1751 = vsel %vm1262, %v1745, 0
        %1753 = vmatprep.subr.mxu0 0.0
        %1754 = vmatpush1.msra.mxu0 %v1749
        %1755 = vmatprep.subr.mxu0 0.0
        %1756 = vmatpush1.msra.mxu0 0.0
        %1757 = vmatprep.subr.mxu0 0.0
        %1758 = vmatpush1.msra.mxu0 0.0
        %1759 = vmatprep.subr.mxu0 0.0
        %1760 = vmatpush1.msra.mxu0 0.0
        %1761 = vmatprep.subr.mxu0 0.0
        %1762 = vmatpush1.msra.mxu0 0.0
        %1763 = vmatprep.subr.mxu0 0.0
        %1764 = vmatpush1.msra.mxu0 0.0
        %1765 = vmatprep.subr.mxu0 0.0
        %1766 = vmatpush1.msra.mxu0 0.0
        %1767 = vmatprep.subr.mxu0 0.0
        %1768 = vmatpush1.msra.mxu0 0.0
        %1769 = vmatprep.subr.mxu0 0.0
        %1770 = vmatpush1.msra.mxu0 0.0
        %1771 = vmatprep.subr.mxu0 0.0
        %1772 = vmatpush1.msra.mxu0 0.0
        %1773 = vmatprep.subr.mxu0 0.0
        %1774 = vmatpush1.msra.mxu0 0.0
        %1775 = vmatprep.subr.mxu0 0.0
        %1776 = vmatpush1.msra.mxu0 0.0
        %1777 = vmatprep.subr.mxu0 0.0
        %1778 = vmatpush1.msra.mxu0 0.0
        %1779 = vmatprep.subr.mxu0 0.0
        %1780 = vmatpush1.msra.mxu0 0.0
        %1781 = vmatprep.subr.mxu0 0.0
        %1782 = vmatpush1.msra.mxu0 0.0
        %1783 = vmatprep.subr.mxu0 0.0
        %1784 = vmatpush1.msra.mxu0 0.0
        %1785 = vmatprep.subr.mxu0 0.0
        %1786 = vmatpush1.msra.mxu0 0.0
        %1787 = vmatprep.subr.mxu0 0.0
        %1788 = vmatpush1.msra.mxu0 0.0
        %1789 = vmatprep.subr.mxu0 0.0
        %1790 = vmatpush1.msra.mxu0 0.0
        %1791 = vmatprep.subr.mxu0 0.0
        %1792 = vmatpush1.msra.mxu0 0.0
        %1793 = vmatprep.subr.mxu0 0.0
        %1794 = vmatpush1.msra.mxu0 0.0
        %1795 = vmatprep.subr.mxu0 0.0
        %1796 = vmatpush1.msra.mxu0 0.0
        %1797 = vmatprep.subr.mxu0 0.0
        %1798 = vmatpush1.msra.mxu0 0.0
        %1799 = vmatprep.subr.mxu0 0.0
        %1800 = vmatpush1.msra.mxu0 0.0
        %1801 = vmatprep.subr.mxu0 0.0
        %1802 = vmatpush1.msra.mxu0 0.0
        %1803 = vmatprep.subr.mxu0 0.0
        %1804 = vmatpush1.msra.mxu0 0.0
        %1805 = vmatprep.subr.mxu0 0.0
        %1806 = vmatpush1.msra.mxu0 0.0
        %1807 = vmatprep.subr.mxu0 0.0
        %1808 = vmatpush1.msra.mxu0 0.0
        %1809 = vmatprep.subr.mxu0 0.0
        %1810 = vmatpush1.msra.mxu0 0.0
        %1811 = vmatprep.subr.mxu0 0.0
        %1812 = vmatpush1.msra.mxu0 0.0
        %1813 = vmatprep.subr.mxu0 0.0
        %1814 = vmatpush1.msra.mxu0 0.0
        %1815 = vmatprep.subr.mxu0 0.0
        %1816 = vmatpush1.msra.mxu0 0.0
        %1817 = vmatprep.mubr.f32.mxu0 0.0
        %1818 = vmatmul.mubr.f32.gmra.mrb[0].mxu0 %v1751
        %v1819 = vpop.f32.mrb[0].mxu0
        %v1820 = vadd.f32 0.0, %v1819
        %v1821 = vpop.f32.mrb[0].mxu0
        %1822 = vdwg.mxu0
        %v1823 = vld [vmem:[%s427] sm:$0xff]
        %vm1824 = vcmp.eq.f32.partialorder %v1823, 0.0
        %v1825 = vsel %vm1824, -1e+09, %v1820
        %v1826 = vsel %vm1262, %v1825, -inf
        %1827 = vmax.xlane.f32.xlu0 %v1826
        %v1828 = vpop.xlane.xlu0 %1827
        %v1829 = vsub.f32 %v1825, %v1828
        %v1830 = vmul.f32 %v1829, 1.442695
        %v1831 = vpow.pop %v1830
        %v1832 = vsel %vm1262, %v1831, 0.0
        %1833 = vadd.xlane.f32.xlu0 %v1832
        %v1834 = vpop.xlane.xlu0 %1833
        %v1835 = vrcp.pop %v1834
        %v1836 = vmul.f32 %v1831, %v1835
        %s1837 = scalar_lea.vmem %s405, 16 [#allocation7]
        %1838 = vst.msk [vmem:[%s1837] sm:$0xff] %vm1262, %v1836
        %s1839 = scalar_lea.vmem [#allocation3], 16
        %v1840 = vld [vmem:[%s1839] sm:$0xff]
        %v1842 = vsel %vm1262, %v1836, 0
        %1844 = vmatprep.subr.mxu0 0.0
        %1845 = vmatpush1.msra.mxu0 %v1840
        %1846 = vmatprep.subr.mxu0 0.0
        %1847 = vmatpush1.msra.mxu0 0.0
        %1848 = vmatprep.subr.mxu0 0.0
        %1849 = vmatpush1.msra.mxu0 0.0
        %1850 = vmatprep.subr.mxu0 0.0
        %1851 = vmatpush1.msra.mxu0 0.0
        %1852 = vmatprep.subr.mxu0 0.0
        %1853 = vmatpush1.msra.mxu0 0.0
        %1854 = vmatprep.subr.mxu0 0.0
        %1855 = vmatpush1.msra.mxu0 0.0
        %1856 = vmatprep.subr.mxu0 0.0
        %1857 = vmatpush1.msra.mxu0 0.0
        %1858 = vmatprep.subr.mxu0 0.0
        %1859 = vmatpush1.msra.mxu0 0.0
        %1860 = vmatprep.subr.mxu0 0.0
        %1861 = vmatpush1.msra.mxu0 0.0
        %1862 = vmatprep.subr.mxu0 0.0
        %1863 = vmatpush1.msra.mxu0 0.0
        %1864 = vmatprep.subr.mxu0 0.0
        %1865 = vmatpush1.msra.mxu0 0.0
        %1866 = vmatprep.subr.mxu0 0.0
        %1867 = vmatpush1.msra.mxu0 0.0
        %1868 = vmatprep.subr.mxu0 0.0
        %1869 = vmatpush1.msra.mxu0 0.0
        %1870 = vmatprep.subr.mxu0 0.0
        %1871 = vmatpush1.msra.mxu0 0.0
        %1872 = vmatprep.subr.mxu0 0.0
        %1873 = vmatpush1.msra.mxu0 0.0
        %1874 = vmatprep.subr.mxu0 0.0
        %1875 = vmatpush1.msra.mxu0 0.0
        %1876 = vmatprep.subr.mxu0 0.0
        %1877 = vmatpush1.msra.mxu0 0.0
        %1878 = vmatprep.subr.mxu0 0.0
        %1879 = vmatpush1.msra.mxu0 0.0
        %1880 = vmatprep.subr.mxu0 0.0
        %1881 = vmatpush1.msra.mxu0 0.0
        %1882 = vmatprep.subr.mxu0 0.0
        %1883 = vmatpush1.msra.mxu0 0.0
        %1884 = vmatprep.subr.mxu0 0.0
        %1885 = vmatpush1.msra.mxu0 0.0
        %1886 = vmatprep.subr.mxu0 0.0
        %1887 = vmatpush1.msra.mxu0 0.0
        %1888 = vmatprep.subr.mxu0 0.0
        %1889 = vmatpush1.msra.mxu0 0.0
        %1890 = vmatprep.subr.mxu0 0.0
        %1891 = vmatpush1.msra.mxu0 0.0
        %1892 = vmatprep.subr.mxu0 0.0
        %1893 = vmatpush1.msra.mxu0 0.0
        %1894 = vmatprep.subr.mxu0 0.0
        %1895 = vmatpush1.msra.mxu0 0.0
        %1896 = vmatprep.subr.mxu0 0.0
        %1897 = vmatpush1.msra.mxu0 0.0
        %1898 = vmatprep.subr.mxu0 0.0
        %1899 = vmatpush1.msra.mxu0 0.0
        %1900 = vmatprep.subr.mxu0 0.0
        %1901 = vmatpush1.msra.mxu0 0.0
        %1902 = vmatprep.subr.mxu0 0.0
        %1903 = vmatpush1.msra.mxu0 0.0
        %1904 = vmatprep.subr.mxu0 0.0
        %1905 = vmatpush1.msra.mxu0 0.0
        %1906 = vmatprep.subr.mxu0 0.0
        %1907 = vmatpush1.msra.mxu0 0.0
        %1908 = vmatprep.mubr.f32.mxu0 0.0
        %1909 = vmatmul.mubr.f32.gmra.mrb[0].mxu0 %v1842
        %v1910 = vpop.f32.mrb[0].mxu0
        %v1911 = vadd.f32 0.0, %v1910
        %v1912 = vpop.f32.mrb[0].mxu0
        %1913 = vdwg.mxu0
        %1915 = vrot.lane.b32.xlu0 %v1911, 16
        %v1916 = vpop.permute.xlu0 %1915
        %vm1918 = vcmask 195712
        %1919 = vst.msk [vmem:[#allocation4] sm:$0xff] %vm1918, %v1916
        %s1920 = scalar_lea.vmem %s4, 96
        %v1921 = vld [vmem:[%s1920] sm:$0xff]
        %v1922 = vld [vmem:[%s1920 + $0x8] sm:$0xff]
        %v1923 = vld [vmem:[%s1920 + $0x10] sm:$0xff]
        %v1924 = vld [vmem:[%s1920 + $0x18] sm:$0xff]
        %1925 = vmatprep.subr.mxu0 0.0
        %1926 = vmatpush1.msra.mxu0 %v1921
        %1927 = vmatprep.subr.mxu0 0.0
        %1928 = vmatpush1.msra.mxu0 %v1922
        %1929 = vmatprep.subr.mxu0 0.0
        %1930 = vmatpush1.msra.mxu0 %v1923
        %1931 = vmatprep.subr.mxu0 0.0
        %1932 = vmatpush1.msra.mxu0 %v1924
        %1933 = vmatprep.subr.mxu0 0.0
        %1934 = vmatpush1.msra.mxu0 0.0
        %1935 = vmatprep.subr.mxu0 0.0
        %1936 = vmatpush1.msra.mxu0 0.0
        %1937 = vmatprep.subr.mxu0 0.0
        %1938 = vmatpush1.msra.mxu0 0.0
        %1939 = vmatprep.subr.mxu0 0.0
        %1940 = vmatpush1.msra.mxu0 0.0
        %1941 = vmatprep.subr.mxu0 0.0
        %1942 = vmatpush1.msra.mxu0 0.0
        %1943 = vmatprep.subr.mxu0 0.0
        %1944 = vmatpush1.msra.mxu0 0.0
        %1945 = vmatprep.subr.mxu0 0.0
        %1946 = vmatpush1.msra.mxu0 0.0
        %1947 = vmatprep.subr.mxu0 0.0
        %1948 = vmatpush1.msra.mxu0 0.0
        %1949 = vmatprep.subr.mxu0 0.0
        %1950 = vmatpush1.msra.mxu0 0.0
        %1951 = vmatprep.subr.mxu0 0.0
        %1952 = vmatpush1.msra.mxu0 0.0
        %1953 = vmatprep.subr.mxu0 0.0
        %1954 = vmatpush1.msra.mxu0 0.0
        %1955 = vmatprep.subr.mxu0 0.0
        %1956 = vmatpush1.msra.mxu0 0.0
        %1957 = vmatprep.subr.mxu0 0.0
        %1958 = vmatpush1.msra.mxu0 0.0
        %1959 = vmatprep.subr.mxu0 0.0
        %1960 = vmatpush1.msra.mxu0 0.0
        %1961 = vmatprep.subr.mxu0 0.0
        %1962 = vmatpush1.msra.mxu0 0.0
        %1963 = vmatprep.subr.mxu0 0.0
        %1964 = vmatpush1.msra.mxu0 0.0
        %1965 = vmatprep.subr.mxu0 0.0
        %1966 = vmatpush1.msra.mxu0 0.0
        %1967 = vmatprep.subr.mxu0 0.0
        %1968 = vmatpush1.msra.mxu0 0.0
        %1969 = vmatprep.subr.mxu0 0.0
        %1970 = vmatpush1.msra.mxu0 0.0
        %1971 = vmatprep.subr.mxu0 0.0
        %1972 = vmatpush1.msra.mxu0 0.0
        %1973 = vmatprep.subr.mxu0 0.0
        %1974 = vmatpush1.msra.mxu0 0.0
        %1975 = vmatprep.subr.mxu0 0.0
        %1976 = vmatpush1.msra.mxu0 0.0
        %1977 = vmatprep.subr.mxu0 0.0
        %1978 = vmatpush1.msra.mxu0 0.0
        %1979 = vmatprep.subr.mxu0 0.0
        %1980 = vmatpush1.msra.mxu0 0.0
        %1981 = vmatprep.subr.mxu0 0.0
        %1982 = vmatpush1.msra.mxu0 0.0
        %1983 = vmatprep.subr.mxu0 0.0
        %1984 = vmatpush1.msra.mxu0 0.0
        %1985 = vmatprep.subr.mxu0 0.0
        %1986 = vmatpush1.msra.mxu0 0.0
        %1987 = vmatprep.subr.mxu0 0.0
        %1988 = vmatpush1.msra.mxu0 0.0
        %1989 = vmatprep.mubr.f32.mxu0 0.0
        %1990 = vmatmul.mubr.f32.gmra.mrb[0].mxu0 %v1189
        %v1991 = vpop.f32.mrb[0].mxu0
        %v1992 = vadd.f32 0.0, %v1991
        %v1993 = vpop.f32.mrb[0].mxu0
        %1994 = vdwg.mxu0
        %s1995 = scalar_lea.vmem [#allocation2], 24
        %v1996 = vld [vmem:[%s1995] sm:$0xff]
        %v1998 = vsel %vm1262, %v1992, 0
        %2000 = vmatprep.subr.mxu0 0.0
        %2001 = vmatpush1.msra.mxu0 %v1996
        %2002 = vmatprep.subr.mxu0 0.0
        %2003 = vmatpush1.msra.mxu0 0.0
        %2004 = vmatprep.subr.mxu0 0.0
        %2005 = vmatpush1.msra.mxu0 0.0
        %2006 = vmatprep.subr.mxu0 0.0
        %2007 = vmatpush1.msra.mxu0 0.0
        %2008 = vmatprep.subr.mxu0 0.0
        %2009 = vmatpush1.msra.mxu0 0.0
        %2010 = vmatprep.subr.mxu0 0.0
        %2011 = vmatpush1.msra.mxu0 0.0
        %2012 = vmatprep.subr.mxu0 0.0
        %2013 = vmatpush1.msra.mxu0 0.0
        %2014 = vmatprep.subr.mxu0 0.0
        %2015 = vmatpush1.msra.mxu0 0.0
        %2016 = vmatprep.subr.mxu0 0.0
        %2017 = vmatpush1.msra.mxu0 0.0
        %2018 = vmatprep.subr.mxu0 0.0
        %2019 = vmatpush1.msra.mxu0 0.0
        %2020 = vmatprep.subr.mxu0 0.0
        %2021 = vmatpush1.msra.mxu0 0.0
        %2022 = vmatprep.subr.mxu0 0.0
        %2023 = vmatpush1.msra.mxu0 0.0
        %2024 = vmatprep.subr.mxu0 0.0
        %2025 = vmatpush1.msra.mxu0 0.0
        %2026 = vmatprep.subr.mxu0 0.0
        %2027 = vmatpush1.msra.mxu0 0.0
        %2028 = vmatprep.subr.mxu0 0.0
        %2029 = vmatpush1.msra.mxu0 0.0
        %2030 = vmatprep.subr.mxu0 0.0
        %2031 = vmatpush1.msra.mxu0 0.0
        %2032 = vmatprep.subr.mxu0 0.0
        %2033 = vmatpush1.msra.mxu0 0.0
        %2034 = vmatprep.subr.mxu0 0.0
        %2035 = vmatpush1.msra.mxu0 0.0
        %2036 = vmatprep.subr.mxu0 0.0
        %2037 = vmatpush1.msra.mxu0 0.0
        %2038 = vmatprep.subr.mxu0 0.0
        %2039 = vmatpush1.msra.mxu0 0.0
        %2040 = vmatprep.subr.mxu0 0.0
        %2041 = vmatpush1.msra.mxu0 0.0
        %2042 = vmatprep.subr.mxu0 0.0
        %2043 = vmatpush1.msra.mxu0 0.0
        %2044 = vmatprep.subr.mxu0 0.0
        %2045 = vmatpush1.msra.mxu0 0.0
        %2046 = vmatprep.subr.mxu0 0.0
        %2047 = vmatpush1.msra.mxu0 0.0
        %2048 = vmatprep.subr.mxu0 0.0
        %2049 = vmatpush1.msra.mxu0 0.0
        %2050 = vmatprep.subr.mxu0 0.0
        %2051 = vmatpush1.msra.mxu0 0.0
        %2052 = vmatprep.subr.mxu0 0.0
        %2053 = vmatpush1.msra.mxu0 0.0
        %2054 = vmatprep.subr.mxu0 0.0
        %2055 = vmatpush1.msra.mxu0 0.0
        %2056 = vmatprep.subr.mxu0 0.0
        %2057 = vmatpush1.msra.mxu0 0.0
        %2058 = vmatprep.subr.mxu0 0.0
        %2059 = vmatpush1.msra.mxu0 0.0
        %2060 = vmatprep.subr.mxu0 0.0
        %2061 = vmatpush1.msra.mxu0 0.0
        %2062 = vmatprep.subr.mxu0 0.0
        %2063 = vmatpush1.msra.mxu0 0.0
        %2064 = vmatprep.mubr.f32.mxu0 0.0
        %2065 = vmatmul.mubr.f32.gmra.mrb[0].mxu0 %v1998
        %v2066 = vpop.f32.mrb[0].mxu0
        %v2067 = vadd.f32 0.0, %v2066
        %v2068 = vpop.f32.mrb[0].mxu0
        %2069 = vdwg.mxu0
        %v2070 = vld [vmem:[%s427] sm:$0xff]
        %vm2071 = vcmp.eq.f32.partialorder %v2070, 0.0
        %v2072 = vsel %vm2071, -1e+09, %v2067
        %v2073 = vsel %vm1262, %v2072, -inf
        %2074 = vmax.xlane.f32.xlu0 %v2073
        %v2075 = vpop.xlane.xlu0 %2074
        %v2076 = vsub.f32 %v2072, %v2075
        %v2077 = vmul.f32 %v2076, 1.442695
        %v2078 = vpow.pop %v2077
        %v2079 = vsel %vm1262, %v2078, 0.0
        %2080 = vadd.xlane.f32.xlu0 %v2079
        %v2081 = vpop.xlane.xlu0 %2080
        %v2082 = vrcp.pop %v2081
        %v2083 = vmul.f32 %v2078, %v2082
        %s2084 = scalar_lea.vmem %s405, 24 [#allocation7]
        %2085 = vst.msk [vmem:[%s2084] sm:$0xff] %vm1262, %v2083
        %s2086 = scalar_lea.vmem [#allocation3], 24
        %v2087 = vld [vmem:[%s2086] sm:$0xff]
        %v2089 = vsel %vm1262, %v2083, 0
        %2091 = vmatprep.subr.mxu0 0.0
        %2092 = vmatpush1.msra.mxu0 %v2087
        %2093 = vmatprep.subr.mxu0 0.0
        %2094 = vmatpush1.msra.mxu0 0.0
        %2095 = vmatprep.subr.mxu0 0.0
        %2096 = vmatpush1.msra.mxu0 0.0
        %2097 = vmatprep.subr.mxu0 0.0
        %2098 = vmatpush1.msra.mxu0 0.0
        %2099 = vmatprep.subr.mxu0 0.0
        %2100 = vmatpush1.msra.mxu0 0.0
        %2101 = vmatprep.subr.mxu0 0.0
        %2102 = vmatpush1.msra.mxu0 0.0
        %2103 = vmatprep.subr.mxu0 0.0
        %2104 = vmatpush1.msra.mxu0 0.0
        %2105 = vmatprep.subr.mxu0 0.0
        %2106 = vmatpush1.msra.mxu0 0.0
        %2107 = vmatprep.subr.mxu0 0.0
        %2108 = vmatpush1.msra.mxu0 0.0
        %2109 = vmatprep.subr.mxu0 0.0
        %2110 = vmatpush1.msra.mxu0 0.0
        %2111 = vmatprep.subr.mxu0 0.0
        %2112 = vmatpush1.msra.mxu0 0.0
        %2113 = vmatprep.subr.mxu0 0.0
        %2114 = vmatpush1.msra.mxu0 0.0
        %2115 = vmatprep.subr.mxu0 0.0
        %2116 = vmatpush1.msra.mxu0 0.0
        %2117 = vmatprep.subr.mxu0 0.0
        %2118 = vmatpush1.msra.mxu0 0.0
        %2119 = vmatprep.subr.mxu0 0.0
        %2120 = vmatpush1.msra.mxu0 0.0
        %2121 = vmatprep.subr.mxu0 0.0
        %2122 = vmatpush1.msra.mxu0 0.0
        %2123 = vmatprep.subr.mxu0 0.0
        %2124 = vmatpush1.msra.mxu0 0.0
        %2125 = vmatprep.subr.mxu0 0.0
        %2126 = vmatpush1.msra.mxu0 0.0
        %2127 = vmatprep.subr.mxu0 0.0
        %2128 = vmatpush1.msra.mxu0 0.0
        %2129 = vmatprep.subr.mxu0 0.0
        %2130 = vmatpush1.msra.mxu0 0.0
        %2131 = vmatprep.subr.mxu0 0.0
        %2132 = vmatpush1.msra.mxu0 0.0
        %2133 = vmatprep.subr.mxu0 0.0
        %2134 = vmatpush1.msra.mxu0 0.0
        %2135 = vmatprep.subr.mxu0 0.0
        %2136 = vmatpush1.msra.mxu0 0.0
        %2137 = vmatprep.subr.mxu0 0.0
        %2138 = vmatpush1.msra.mxu0 0.0
        %2139 = vmatprep.subr.mxu0 0.0
        %2140 = vmatpush1.msra.mxu0 0.0
        %2141 = vmatprep.subr.mxu0 0.0
        %2142 = vmatpush1.msra.mxu0 0.0
        %2143 = vmatprep.subr.mxu0 0.0
        %2144 = vmatpush1.msra.mxu0 0.0
        %2145 = vmatprep.subr.mxu0 0.0
        %2146 = vmatpush1.msra.mxu0 0.0
        %2147 = vmatprep.subr.mxu0 0.0
        %2148 = vmatpush1.msra.mxu0 0.0
        %2149 = vmatprep.subr.mxu0 0.0
        %2150 = vmatpush1.msra.mxu0 0.0
        %2151 = vmatprep.subr.mxu0 0.0
        %2152 = vmatpush1.msra.mxu0 0.0
        %2153 = vmatprep.subr.mxu0 0.0
        %2154 = vmatpush1.msra.mxu0 0.0
        %2155 = vmatprep.mubr.f32.mxu0 0.0
        %2156 = vmatmul.mubr.f32.gmra.mrb[0].mxu0 %v2089
        %v2157 = vpop.f32.mrb[0].mxu0
        %v2158 = vadd.f32 0.0, %v2157
        %v2159 = vpop.f32.mrb[0].mxu0
        %2160 = vdwg.mxu0
        %2162 = vrot.lane.b32.xlu0 %v2158, 24
        %v2163 = vpop.permute.xlu0 %2162
        %vm2165 = vcmask 261312
        %2166 = vst.msk [vmem:[#allocation4] sm:$0xff] %vm2165, %v2163
        %v2167 = vld [vmem:[#allocation4] sm:$0xff]
        %v2168 = vld [vmem:[%s7] sm:$0xff]
        %v2169 = vld [vmem:[%s7 + $0x8] sm:$0xff]
        %v2170 = vld [vmem:[%s7 + $0x10] sm:$0xff]
        %v2171 = vld [vmem:[%s7 + $0x18] sm:$0xff]
        %v2173 = vsel %vm1187, %v2167, 0
        %2175 = vmatprep.subr.mxu0 0.0
        %2176 = vmatpush1.msra.mxu0 %v2168
        %2177 = vmatprep.subr.mxu0 0.0
        %2178 = vmatpush1.msra.mxu0 %v2169
        %2179 = vmatprep.subr.mxu0 0.0
        %2180 = vmatpush1.msra.mxu0 %v2170
        %2181 = vmatprep.subr.mxu0 0.0
        %2182 = vmatpush1.msra.mxu0 %v2171
        %2183 = vmatprep.subr.mxu0 0.0
        %2184 = vmatpush1.msra.mxu0 0.0
        %2185 = vmatprep.subr.mxu0 0.0
        %2186 = vmatpush1.msra.mxu0 0.0
        %2187 = vmatprep.subr.mxu0 0.0
        %2188 = vmatpush1.msra.mxu0 0.0
        %2189 = vmatprep.subr.mxu0 0.0
        %2190 = vmatpush1.msra.mxu0 0.0
        %2191 = vmatprep.subr.mxu0 0.0
        %2192 = vmatpush1.msra.mxu0 0.0
        %2193 = vmatprep.subr.mxu0 0.0
        %2194 = vmatpush1.msra.mxu0 0.0
        %2195 = vmatprep.subr.mxu0 0.0
        %2196 = vmatpush1.msra.mxu0 0.0
        %2197 = vmatprep.subr.mxu0 0.0
        %2198 = vmatpush1.msra.mxu0 0.0
        %2199 = vmatprep.subr.mxu0 0.0
        %2200 = vmatpush1.msra.mxu0 0.0
        %2201 = vmatprep.subr.mxu0 0.0
        %2202 = vmatpush1.msra.mxu0 0.0
        %2203 = vmatprep.subr.mxu0 0.0
        %2204 = vmatpush1.msra.mxu0 0.0
        %2205 = vmatprep.subr.mxu0 0.0
        %2206 = vmatpush1.msra.mxu0 0.0
        %2207 = vmatprep.subr.mxu0 0.0
        %2208 = vmatpush1.msra.mxu0 0.0
        %2209 = vmatprep.subr.mxu0 0.0
        %2210 = vmatpush1.msra.mxu0 0.0
        %2211 = vmatprep.subr.mxu0 0.0
        %2212 = vmatpush1.msra.mxu0 0.0
        %2213 = vmatprep.subr.mxu0 0.0
        %2214 = vmatpush1.msra.mxu0 0.0
        %2215 = vmatprep.subr.mxu0 0.0
        %2216 = vmatpush1.msra.mxu0 0.0
        %2217 = vmatprep.subr.mxu0 0.0
        %2218 = vmatpush1.msra.mxu0 0.0
        %2219 = vmatprep.subr.mxu0 0.0
        %2220 = vmatpush1.msra.mxu0 0.0
        %2221 = vmatprep.subr.mxu0 0.0
        %2222 = vmatpush1.msra.mxu0 0.0
        %2223 = vmatprep.subr.mxu0 0.0
        %2224 = vmatpush1.msra.mxu0 0.0
        %2225 = vmatprep.subr.mxu0 0.0
        %2226 = vmatpush1.msra.mxu0 0.0
        %2227 = vmatprep.subr.mxu0 0.0
        %2228 = vmatpush1.msra.mxu0 0.0
        %2229 = vmatprep.subr.mxu0 0.0
        %2230 = vmatpush1.msra.mxu0 0.0
        %2231 = vmatprep.subr.mxu0 0.0
        %2232 = vmatpush1.msra.mxu0 0.0
        %2233 = vmatprep.subr.mxu0 0.0
        %2234 = vmatpush1.msra.mxu0 0.0
        %2235 = vmatprep.subr.mxu0 0.0
        %2236 = vmatpush1.msra.mxu0 0.0
        %2237 = vmatprep.subr.mxu0 0.0
        %2238 = vmatpush1.msra.mxu0 0.0
        %2239 = vmatprep.mubr.f32.mxu0 0.0
        %2240 = vmatmul.mubr.f32.gmra.mrb[0].mxu0 %v2173
        %v2241 = vpop.f32.mrb[0].mxu0
        %v2242 = vadd.f32 0.0, %v2241
        %v2243 = vpop.f32.mrb[0].mxu0
        %2244 = vdwg.mxu0
        %2245 = vst.msk [vmem:[%s398] sm:$0xff] %vm1187, %v2242
        %s2246 = sand.u32 %s241, 1
        %s2247 = scalar_lea.sflag [#allocation6], %s2246
        %s2248 = sand.u32 %s241, 1
        %s2249 = smul.addr %s2248, 8
        %s2250 = scalar_lea.vmem [#allocation5], %s2249
        %s2251 = sand.u32 %s269, 1
        %s2252 = scalar_lea.sflag [#allocation8], %s2251
        %s2253 = sand.u32 %s269, 1
        %s2254 = smul.addr %s2253, 32
        %s2255 = scalar_lea.vmem [#allocation7], %s2254
        // Predicated region
        $region57: #{tpu_custom_call.1} parent=51 // pred_check
          %p2256 = pneg %p251
        $region58: #{tpu_custom_call.1} parent=51 // pred_check_branch
          %2258 = sbr.rel (%p2256) target = $region60
        $region59: #{tpu_custom_call.1} parent=51 // pred_region
          %s2260 = ssub.s32 128, 128
          %2261 = vsyncadd %s2247, %s2260
          %s2262 = sadd.s32 %s32, %s31
          %s2263 = smul.addr %s2262, 128
          %s2264 = scalar_lea.hbm %s8, %s2263
          %s2266 = sshll.u32 %s2250, 4
          %s2267 = int_to_ptr.vmem [resolvable:$true] %s2266
          %2269 = dma.vmem_to_hbm [thread:$0]  %s2267, 128, %s2264, %s2247
        $region60: #{tpu_custom_call.1} parent=51 // pred_fallthru
          _
        // Predicated region
        $region61: #{tpu_custom_call.1} parent=51 // pred_check
          %p2270 = pneg %p279
        $region62: #{tpu_custom_call.1} parent=51 // pred_check_branch
          %2272 = sbr.rel (%p2270) target = $region64
        $region63: #{tpu_custom_call.1} parent=51 // pred_region
          %s2274 = ssub.s32 512, 512
          %2275 = vsyncadd %s2252, %s2274
          %s2276 = smul.addr %s31, 4
          %s2277 = sadd.s32 %s32, %s2276
          %s2278 = smul.addr %s2277, 128
          %s2279 = scalar_lea.hbm %s9, %s2278
          %s2280 = sshll.u32 %s2255, 4
          %s2281 = int_to_ptr.vmem [resolvable:$true] %s2280
          %2286 = dma.vmem_to_hbm [thread:$0]  %s2281, 512, %s2279, %s2252, 128, 128, 8
        $region64: #{tpu_custom_call.1} parent=51 // pred_fallthru
          _
      $region52: #{tpu_custom_call.1} parent=5 // pred_fallthru
        _
      %p2287 = scmp.le.s32.totalorder 2, %s22
      // Predicated region
      $region65: #{tpu_custom_call.1} parent=5 // pred_check
        %p2288 = pneg %p2287
      $region66: #{tpu_custom_call.1} parent=5 // pred_check_branch
        %2290 = sbr.rel (%p2288) target = $region68
      $region67: #{tpu_custom_call.1} parent=5 // pred_region
        %s2291 = ssub.s32 %s22, 2
        // Predicated region
        $region69: #{tpu_custom_call.1} parent=67 // pred_check
          %p2292 = pneg %p257
        $region70: #{tpu_custom_call.1} parent=67 // pred_check_branch
          %2294 = sbr.rel (%p2292) target = $region72
        $region71: #{tpu_custom_call.1} parent=67 // pred_region
          %s2295 = sand.u32 %s242, 1
          %s2296 = scalar_lea.sflag [#allocation6], %s2295
          %s2297 = sand.u32 %s242, 1
          %s2298 = smul.addr %s2297, 8
          %s2299 = scalar_lea.vmem [#allocation5], %s2298
          %2300 = dma.done %s2296, 128
        $region72: #{tpu_custom_call.1} parent=67 // pred_fallthru
          _
        // Predicated region
        $region73: #{tpu_custom_call.1} parent=67 // pred_check
          %p2301 = pneg %p285
        $region74: #{tpu_custom_call.1} parent=67 // pred_check_branch
          %2303 = sbr.rel (%p2301) target = $region76
        $region75: #{tpu_custom_call.1} parent=67 // pred_region
          %s2304 = sand.u32 %s270, 1
          %s2305 = scalar_lea.sflag [#allocation8], %s2304
          %s2306 = sand.u32 %s270, 1
          %s2307 = smul.addr %s2306, 32
          %s2308 = scalar_lea.vmem [#allocation7], %s2307
          %2309 = dma.done %s2305, 512
        $region76: #{tpu_custom_call.1} parent=67 // pred_fallthru
          _
      $region68: #{tpu_custom_call.1} parent=5 // pred_fallthru
        _
    $region6: #{tpu_custom_call.1} parent=1 // loop_footer
      %s26 = sadd.s32 1, %s22
    $region7: #{tpu_custom_call.1} parent=1 // loop_footer_branch
      %21 = sbr.rel target = $region3
    $region8: #{tpu_custom_call.1} parent=1 // loop_exit
      _
    %2310 = vsyncpa [#allocation6], 1
    %s2311 = scalar_lea.sflag [#allocation6], 1
    %2312 = vsyncpa %s2311, 1
    %2313 = vsyncpa [#allocation8], 1
    %s2314 = scalar_lea.sflag [#allocation8], 1
    %2315 = vsyncpa %s2314, 1

</llo_original>
